<compile_context>
chip_gen: v7x
topology: tpu7x:2x2x1
jax: 0.10.0
libtpu: 0.0.40
codegen_flags: <defaults>
</compile_context>

<pallas_src>
import functools

import jax
import jax.numpy as jnp
from jax.experimental import pallas as pl
from jax.experimental.pallas import tpu as pltpu

# ------------------------- synthetic small config ---------------------------
HIDDEN = 512                   # config.hidden_size               (128-multiple -> lane dense)
MOE_INTERMEDIATE = 512         # config.moe_intermediate_size
SHARED_INTERMEDIATE = 512      # config.shared_expert_intermediate_size
NUM_EXPERTS = 8                # config.num_experts
TOP_K = 2                      # config.num_experts_per_tok
NORM_TOPK_PROB = True          # config.norm_topk_prob
N_SP, M_SP = 2, 8              # venom n:m sparsity (keep input cols j with j % 8 in {0, 2})
TOKEN_TILE = 128               # token rows per grid step (parallel axis) -- tunable


def _kept_indices(k):
    # NMVectorSparsifier mask pattern [1,0,1,0,0,0,0,0] per group of 8 input features.
    base = jnp.arange(0, k, M_SP, dtype=jnp.int32)
    return jnp.stack([base, base + 2], axis=1).reshape(-1)        # k // 4 kept indices


def _nm_mask(in_features):
    j = jnp.arange(in_features)
    return ((j % M_SP == 0) | (j % M_SP == 2)).astype(jnp.float32)


# ------------------------------ Pallas kernel --------------------------------
def _fused_moe_kernel(counts_ref, fetch_ref,             # SMEM (tiles*E,) int32 (scalar prefetch)
                      xc_ref, x_ref,                     # (tT, H/4) bf16, (tT, H) bf16
                      guwc_ref, dwc_ref,                 # (1, H/4, 2*I/4) bf16, (1, I/4, H) bf16
                      comb_ref,                          # (1, tT, 1) f32
                      sguw_ref, sdw_ref,                 # (H, 2*Is) bf16, (Is, H) bf16
                      sgate_ref,                         # (tT, 1) f32 = sigmoid(x @ sgp)
                      o_ref,                             # (tT, H) out dtype
                      acc_ref):                          # (tT, H) f32 VMEM scratch
    del fetch_ref                                        # only consumed by index_maps
    t = pl.program_id(0)
    e = pl.program_id(1)
    n_e = pl.num_programs(1)

    # e == 0: dense shared expert first; initializes the accumulator and overlaps
    # its MXU work with the prefetch of the first routed experts' weights.
    @pl.when(e == 0)
    def _shared():
        x = x_ref[...]
        sgu = jnp.dot(x, sguw_ref[...], preferred_element_type=jnp.float32)
        half = sgu.shape[1] // 2
        sg = sgu[:, :half]
        su = sgu[:, half:]
        sh = (sg * jax.nn.sigmoid(sg)) * su              # SiLU(gate) * up, f32
        sy = jnp.dot(sh.astype(sdw_ref.dtype), sdw_ref[...],
                     preferred_element_type=jnp.float32)
        acc_ref[...] = sgate_ref[...] * sy

    # routed expert e; compute (and, via the fetch-table index_map, the weight DMA)
    # is skipped when no token in this tile selected it.
    @pl.when(counts_ref[t * n_e + e] > 0)
    def _expert():
        xc = xc_ref[...]
        gu = jnp.dot(xc, guwc_ref[0], preferred_element_type=jnp.float32)
        half = gu.shape[1] // 2
        g = gu[:, :half]
        u = gu[:, half:]
        h = (g * jax.nn.sigmoid(g)) * u
        y = jnp.dot(h.astype(dwc_ref.dtype), dwc_ref[0],
                    preferred_element_type=jnp.float32)
        acc_ref[...] += y * comb_ref[0]                  # combine scale kept f32 on y

    @pl.when(e == n_e - 1)
    def _store():
        o_ref[...] = acc_ref[...].astype(o_ref.dtype)


# ------------------------------ pallas wrapper --------------------------------
def fused_moe_pallas(counts, fetch, xc, x, guwc, dwc, comb, sguw, sdw, sgate,
                     *, out_dtype, token_tile=TOKEN_TILE):
    Tp, H = x.shape
    Hc = xc.shape[1]
    E, _, Ic2 = guwc.shape
    Ic = dwc.shape[1]
    Is2 = sguw.shape[1]
    Is = sdw.shape[0]
    assert Tp % token_tile == 0
    grid = (Tp // token_tile, E)
    return pl.pallas_call(
        _fused_moe_kernel,
        out_shape=jax.ShapeDtypeStruct((Tp, H), out_dtype),
        grid_spec=pltpu.PrefetchScalarGridSpec(
            num_scalar_prefetch=2,
            grid=grid,
            in_specs=[
                pl.BlockSpec((token_tile, Hc), lambda t, e, c, f: (t, 0)),
                pl.BlockSpec((token_tile, H), lambda t, e, c, f: (t, 0)),
                # routed-expert weights: fetch-table redirect => no DMA for inactive experts
                pl.BlockSpec((1, Hc, Ic2), lambda t, e, c, f: (f[t * E + e], 0, 0)),
                pl.BlockSpec((1, Ic, H), lambda t, e, c, f: (f[t * E + e], 0, 0)),
                pl.BlockSpec((1, token_tile, 1), lambda t, e, c, f: (e, t, 0)),
                pl.BlockSpec((H, Is2), lambda t, e, c, f: (0, 0)),
                pl.BlockSpec((Is, H), lambda t, e, c, f: (0, 0)),
                pl.BlockSpec((token_tile, 1), lambda t, e, c, f: (t, 0)),
            ],
            out_specs=pl.BlockSpec((token_tile, H), lambda t, e, c, f: (t, 0)),
            scratch_shapes=[pltpu.VMEM((token_tile, H), jnp.float32)],
        ),
        compiler_params=pltpu.CompilerParams(
            dimension_semantics=("parallel", "arbitrary"),
            # ~6 MiB live at tT=128 (double-buffered blocks + shared weights + f32 acc);
            # 32 MiB leaves headroom on v5e/v6e (128 MiB) and fits v7x's 64 MiB/TC.
            vmem_limit_bytes=32 * 1024 * 1024,
        ),
    )(counts, fetch, xc, x, guwc, dwc, comb, sguw, sdw, sgate)


# ------------------------------ weight packing --------------------------------
def pack_params(params):
    """One-time prep (the Pallas analogue of spatha value/metadata packing):
    compact the 2:8-sparse expert weights to their nonzero rows/cols, fuse gate|up,
    cast to bf16."""
    kh = _kept_indices(HIDDEN)
    ki = _kept_indices(MOE_INTERMEDIATE)
    gwc = jnp.take(jnp.take(params["exp_gate_w"], kh, axis=1), ki, axis=2)
    uwc = jnp.take(jnp.take(params["exp_up_w"], kh, axis=1), ki, axis=2)
    dwc = jnp.take(params["exp_down_w"], ki, axis=1)
    guwc = jnp.concatenate([gwc, uwc], axis=2)            # (E, H/4, 2*I/4)
    sguw = jnp.concatenate([params["sh_gate_w"], params["sh_up_w"]], axis=1)  # (H, 2*Is)
    return dict(
        gate_w=params["gate_w"],                           # router stays f32
        kept_h=kh,
        exp_gateup_wc=guwc.astype(jnp.bfloat16),           # (E, H/4, 2*I/4)
        exp_down_wc=dwc.astype(jnp.bfloat16),              # (E, I/4, H)
        sh_gateup_w=sguw.astype(jnp.bfloat16),             # (H, 2*Is)
        sh_down_w=params["sh_down_w"].astype(jnp.bfloat16),
        sh_gate_proj_w=params["sh_gate_proj_w"].astype(jnp.bfloat16),
    )


# ------------------------------- forward pass ---------------------------------
@functools.partial(jax.jit, static_argnames=("token_tile",))
def sp_qwen2_moe_sparse_moe_block(hidden_states, packed, token_tile=TOKEN_TILE):
    """Returns (final_hidden_states (B, S, H), router_logits (B*S, E))."""
    B, S, H = hidden_states.shape
    x = hidden_states.reshape(-1, H)                       # (T, H)
    T = x.shape[0]
    E = NUM_EXPERTS

    # Router + top-k routing: tiny (T,E) math, kept in plain XLA (f32 precision).
    router_logits = jnp.dot(x, packed["gate_w"],
                            preferred_element_type=jnp.float32,
                            precision=jax.lax.Precision.HIGHEST)          # (T, E)
    routing = jax.nn.softmax(router_logits, axis=-1)
    top_vals, top_idx = jax.lax.top_k(routing, TOP_K)
    if NORM_TOPK_PROB:
        top_vals = top_vals / jnp.sum(top_vals, axis=-1, keepdims=True)

    combine = jnp.zeros((T, E), jnp.float32)               # routing weights stay f32
    combine = combine.at[jnp.arange(T)[:, None], top_idx].add(top_vals)
    expert_sel = jnp.sum(jax.nn.one_hot(top_idx, E, dtype=jnp.int32), axis=1)  # (T, E)

    # Pad tokens to a tile multiple (padded rows: zero activations, zero routing).
    T_pad = ((T + token_tile - 1) // token_tile) * token_tile
    pad = T_pad - T
    num_tiles = T_pad // token_tile

    xb = jnp.pad(x.astype(jnp.bfloat16), ((0, pad), (0, 0)))              # (T_pad, H)
    xc = jnp.take(xb, packed["kept_h"], axis=-1)                          # (T_pad, H/4)
    combine_p = jnp.pad(combine, ((0, pad), (0, 0)))
    comb_et1 = combine_p.T[:, :, None]                                    # (E, T_pad, 1)

    # Per-tile expert counts + fetch-index redirection table (inactive expert ->
    # previously fetched expert block, so its weight DMA is elided).
    sel_p = jnp.pad(expert_sel, ((0, pad), (0, 0)))
    counts_te = sel_p.reshape(num_tiles, token_tile, E).sum(axis=1)       # (tiles, E)
    idx = jnp.where(counts_te > 0, jnp.arange(E, dtype=jnp.int32)[None, :],
                    jnp.int32(-1))
    fetch_te = jnp.maximum(jax.lax.cummax(idx, axis=1), 0).astype(jnp.int32)
    counts_flat = counts_te.reshape(-1)
    fetch_flat = fetch_te.reshape(-1)

    # Shared-expert sigmoid gate computed next to the router (removes an N=1
    # matmul and a 1-lane weight block from the kernel).
    sgate = jax.nn.sigmoid(
        jnp.dot(xb, packed["sh_gate_proj_w"],
                preferred_element_type=jnp.float32))                       # (T_pad, 1)

    out = fused_moe_pallas(counts_flat, fetch_flat, xc, xb,
                           packed["exp_gateup_wc"], packed["exp_down_wc"],
                           comb_et1,
                           packed["sh_gateup_w"], packed["sh_down_w"], sgate,
                           out_dtype=hidden_states.dtype, token_tile=token_tile)
    return out[:T].reshape(B, S, H), router_logits


# ------------------------------- param init -----------------------------------
def init_params(key):
    ks = jax.random.split(key, 1 + 3 * NUM_EXPERTS + 4)
    scale = 0.05
    it = iter(range(len(ks)))

    def lin(k, fan_in, fan_out):
        return jax.random.normal(k, (fan_in, fan_out), jnp.float32) * scale

    mask_h = _nm_mask(HIDDEN)[:, None]                # 2:8 mask over the input axis
    mask_i = _nm_mask(MOE_INTERMEDIATE)[:, None]

    gate_w = lin(ks[next(it)], HIDDEN, NUM_EXPERTS)
    exp_gate_w = jnp.stack([lin(ks[next(it)], HIDDEN, MOE_INTERMEDIATE) * mask_h
                            for _ in range(NUM_EXPERTS)])
    exp_up_w = jnp.stack([lin(ks[next(it)], HIDDEN, MOE_INTERMEDIATE) * mask_h
                          for _ in range(NUM_EXPERTS)])
    exp_down_w = jnp.stack([lin(ks[next(it)], MOE_INTERMEDIATE, HIDDEN) * mask_i
                            for _ in range(NUM_EXPERTS)])
    sh_gate_w = lin(ks[next(it)], HIDDEN, SHARED_INTERMEDIATE)
    sh_up_w = lin(ks[next(it)], HIDDEN, SHARED_INTERMEDIATE)
    sh_down_w = lin(ks[next(it)], SHARED_INTERMEDIATE, HIDDEN)
    sh_gate_proj_w = lin(ks[next(it)], HIDDEN, 1)
    return dict(gate_w=gate_w,
                exp_gate_w=exp_gate_w, exp_up_w=exp_up_w, exp_down_w=exp_down_w,
                sh_gate_w=sh_gate_w, sh_up_w=sh_up_w, sh_down_w=sh_down_w,
                sh_gate_proj_w=sh_gate_proj_w)


# ---------------------------- pure-JAX reference -------------------------------
def ref_forward(hidden_states, params):
    """Spec-faithful masked-dense reference, using the same bf16 operands."""
    B, S, H = hidden_states.shape
    x = hidden_states.reshape(-1, H)
    logits = jnp.dot(x, params["gate_w"], preferred_element_type=jnp.float32,
                     precision=jax.lax.Precision.HIGHEST)
    routing = jax.nn.softmax(logits, axis=-1)
    top_vals, top_idx = jax.lax.top_k(routing, TOP_K)
    if NORM_TOPK_PROB:
        top_vals = top_vals / jnp.sum(top_vals, axis=-1, keepdims=True)
    T = x.shape[0]
    combine = jnp.zeros((T, NUM_EXPERTS), jnp.float32)
    combine = combine.at[jnp.arange(T)[:, None], top_idx].add(top_vals)

    xb = x.astype(jnp.bfloat16)

    def mlp(gw, uw, dw):
        g = jnp.dot(xb, gw.astype(jnp.bfloat16), preferred_element_type=jnp.float32)
        u = jnp.dot(xb, uw.astype(jnp.bfloat16), preferred_element_type=jnp.float32)
        h = (g * jax.nn.sigmoid(g)) * u
        return jnp.dot(h.astype(jnp.bfloat16), dw.astype(jnp.bfloat16),
                       preferred_element_type=jnp.float32)

    moe = jnp.zeros((T, H), jnp.float32)
    for e in range(NUM_EXPERTS):
        moe = moe + combine[:, e:e + 1] * mlp(params["exp_gate_w"][e],
                                              params["exp_up_w"][e],
                                              params["exp_down_w"][e])
    gate_logit = jnp.dot(xb, params["sh_gate_proj_w"].astype(jnp.bfloat16),
                         preferred_element_type=jnp.float32)
    shared = jax.nn.sigmoid(gate_logit) * mlp(params["sh_gate_w"], params["sh_up_w"],
                                              params["sh_down_w"])
    return (moe + shared).astype(hidden_states.dtype).reshape(B, S, H), logits


# ----------------------------------- main --------------------------------------
if __name__ == "__main__":
    key = jax.random.PRNGKey(0)
    pkey, xkey = jax.random.split(key)
    params = init_params(pkey)
    packed = pack_params(params)

    B, S = 2, 128                      # T = 256 -> two 128-token tiles (parallel axis >= 2)
    hidden_states = jax.random.normal(xkey, (B, S, HIDDEN), jnp.float32)

    out, router_logits = sp_qwen2_moe_sparse_moe_block(hidden_states, packed)
    jax.block_until_ready((out, router_logits))

    ref_out, ref_logits = ref_forward(hidden_states, params)
    assert out.shape == (B, S, HIDDEN)
    assert router_logits.shape == (B * S, NUM_EXPERTS)
    assert bool(jnp.allclose(router_logits, ref_logits, atol=1e-4, rtol=1e-4))
    assert bool(jnp.allclose(out, ref_out, atol=5e-3, rtol=5e-3))
    print("KERNEL_OK")
</pallas_src>

<mosaic_0001>
module attributes {stable_mosaic.version = 11 : i64} {
  func.func private @main(%arg0: i32) attributes {dimension_semantics = [#tpu.dimension_semantics<core_parallel>], iteration_bounds = array<i64: 2>, tpu.core_type = #tpu.core_type<sc_scalar_subcore>, window_params = []} {
    return
  }
}

module attributes {stable_mosaic.version = 11 : i64} {
  func.func private @main(%arg0: i32) attributes {dimension_semantics = [#tpu.dimension_semantics<core_parallel>], iteration_bounds = array<i64: 2>, tpu.core_type = #tpu.core_type<sc_scalar_subcore>, window_params = []} {
    return
  }
}

module attributes {stable_mosaic.version = 11 : i64} {
  func.func @_fused_moe_kernel(%arg0: i32, %arg1: i32, %arg2: memref<16xi32, #tpu.memory_space<smem>>, %arg3: memref<16xi32, #tpu.memory_space<smem>>, %arg4: memref<128x128xbf16, #tpu.memory_space<vmem>>, %arg5: memref<128x512xbf16, #tpu.memory_space<vmem>>, %arg6: memref<1x128x256xbf16, #tpu.memory_space<vmem>>, %arg7: memref<1x128x512xbf16, #tpu.memory_space<vmem>>, %arg8: memref<1x128x1xf32, #tpu.memory_space<vmem>>, %arg9: memref<512x1024xbf16, #tpu.memory_space<vmem>>, %arg10: memref<512x512xbf16, #tpu.memory_space<vmem>>, %arg11: memref<128x1xf32, #tpu.memory_space<vmem>>, %arg12: memref<128x512xf32, #tpu.memory_space<vmem>>, %arg13: memref<128x512xf32, #tpu.memory_space<vmem>>) attributes {dimension_semantics = [#tpu.dimension_semantics<parallel>, #tpu.dimension_semantics<arbitrary>], iteration_bounds = array<i64: 2, 8>, scalar_prefetch = 2 : i64, scratch_operands = 1 : i64, tpu.core_type = #tpu.core_type<tc>, window_params = [{transform_indices = @transform_0, window_bounds = array<i64: 128, 128>}, {transform_indices = @transform_1, window_bounds = array<i64: 128, 512>}, {transform_indices = @transform_2, window_bounds = array<i64: 1, 128, 256>}, {transform_indices = @transform_3, window_bounds = array<i64: 1, 128, 512>}, {transform_indices = @transform_4, window_bounds = array<i64: 1, 128, 1>}, {pipeline_mode = #tpu.pipeline_mode<synchronous>, transform_indices = @transform_5, window_bounds = array<i64: 512, 1024>}, {pipeline_mode = #tpu.pipeline_mode<synchronous>, transform_indices = @transform_6, window_bounds = array<i64: 512, 512>}, {transform_indices = @transform_7, window_bounds = array<i64: 128, 1>}, {transform_indices = @transform_8, window_bounds = array<i64: 128, 512>}]} {
    %c0_i32 = arith.constant 0 : i32
    %0 = arith.cmpi eq, %arg1, %c0_i32 : i32
    %1 = arith.extui %0 : i1 to i32
    %c0_i32_0 = arith.constant 0 : i32
    %2 = arith.cmpi ne, %1, %c0_i32_0 : i32
    scf.if %2 {
      %c0 = arith.constant 0 : index
      %c0_4 = arith.constant 0 : index
      %13 = vector.load %arg5[%c0, %c0_4] : memref<128x512xbf16, #tpu.memory_space<vmem>>, vector<128x512xbf16>
      %c0_5 = arith.constant 0 : index
      %c0_6 = arith.constant 0 : index
      %14 = vector.load %arg9[%c0_5, %c0_6] : memref<512x1024xbf16, #tpu.memory_space<vmem>>, vector<512x1024xbf16>
      %cst = arith.constant dense<0.000000e+00> : vector<128x1024xf32>
      %15 = tpu.matmul %13, %14, %cst {dimension_numbers = #tpu.dot_dimension_numbers<[1], [0], [0], [1], [0, 0, 1, 1], [], []>} : vector<128x512xbf16>, vector<512x1024xbf16>, vector<128x1024xf32> -> vector<128x1024xf32>
      %16 = vector.extract_strided_slice %15 {offsets = [0, 0], sizes = [128, 512], strides = [1, 1]} : vector<128x1024xf32> to vector<128x512xf32>
      %17 = vector.extract_strided_slice %15 {offsets = [0, 512], sizes = [128, 512], strides = [1, 1]} : vector<128x1024xf32> to vector<128x512xf32>
      %18 = arith.negf %16 : vector<128x512xf32>
      %19 = math.exp %18 : vector<128x512xf32>
      %cst_7 = arith.constant 1.000000e+00 : f32
      %20 = vector.broadcast %cst_7 : f32 to vector<128x512xf32>
      %21 = arith.addf %20, %19 : vector<128x512xf32>
      %22 = arith.divf %20, %21 : vector<128x512xf32>
      %23 = arith.mulf %16, %22 : vector<128x512xf32>
      %24 = arith.mulf %23, %17 : vector<128x512xf32>
      %25 = arith.truncf %24 : vector<128x512xf32> to vector<128x512xbf16>
      %c0_8 = arith.constant 0 : index
      %c0_9 = arith.constant 0 : index
      %26 = vector.load %arg10[%c0_8, %c0_9] : memref<512x512xbf16, #tpu.memory_space<vmem>>, vector<512x512xbf16>
      %cst_10 = arith.constant dense<0.000000e+00> : vector<128x512xf32>
      %27 = tpu.matmul %25, %26, %cst_10 {dimension_numbers = #tpu.dot_dimension_numbers<[1], [0], [0], [1], [0, 0, 1, 1], [], []>} : vector<128x512xbf16>, vector<512x512xbf16>, vector<128x512xf32> -> vector<128x512xf32>
      %c0_11 = arith.constant 0 : index
      %c0_12 = arith.constant 0 : index
      %28 = vector.load %arg11[%c0_11, %c0_12] : memref<128x1xf32, #tpu.memory_space<vmem>>, vector<128x1xf32>
      %29 = vector.broadcast %28 : vector<128x1xf32> to vector<128x512xf32>
      %30 = arith.mulf %29, %27 : vector<128x512xf32>
      %c0_13 = arith.constant 0 : index
      %c0_14 = arith.constant 0 : index
      %31 = vector.load %arg13[%c0_13, %c0_14] : memref<128x512xf32, #tpu.memory_space<vmem>>, vector<128x512xf32>
      tpu.vector_store %arg13[%c0_13, %c0_14], %30 {strides = array<i32>} : memref<128x512xf32, #tpu.memory_space<vmem>>, vector<128x512xf32>,
    } else {
    }
    %c8_i32 = arith.constant 8 : i32
    %3 = arith.muli %arg0, %c8_i32 : i32
    %4 = arith.addi %3, %arg1 : i32
    %5 = arith.index_cast %4 : i32 to index
    %6 = memref.load %arg2[%5] : memref<16xi32, #tpu.memory_space<smem>>
    %c0_i32_1 = arith.constant 0 : i32
    %7 = arith.cmpi sgt, %6, %c0_i32_1 : i32
    %8 = arith.extui %7 : i1 to i32
    %c0_i32_2 = arith.constant 0 : i32
    %9 = arith.cmpi ne, %8, %c0_i32_2 : i32
    scf.if %9 {
      %c0 = arith.constant 0 : index
      %c0_4 = arith.constant 0 : index
      %13 = vector.load %arg4[%c0, %c0_4] : memref<128x128xbf16, #tpu.memory_space<vmem>>, vector<128x128xbf16>
      %c0_5 = arith.constant 0 : index
      %c0_6 = arith.constant 0 : index
      %c0_7 = arith.constant 0 : index
      %14 = vector.load %arg6[%c0_5, %c0_6, %c0_7] : memref<1x128x256xbf16, #tpu.memory_space<vmem>>, vector<1x128x256xbf16>
      %15 = vector.shape_cast %14 : vector<1x128x256xbf16> to vector<128x256xbf16>
      %cst = arith.constant dense<0.000000e+00> : vector<128x256xf32>
      %16 = tpu.matmul %13, %15, %cst {dimension_numbers = #tpu.dot_dimension_numbers<[1], [0], [0], [1], [0, 0, 1, 1], [], []>} : vector<128x128xbf16>, vector<128x256xbf16>, vector<128x256xf32> -> vector<128x256xf32>
      %17 = vector.extract_strided_slice %16 {offsets = [0, 0], sizes = [128, 128], strides = [1, 1]} : vector<128x256xf32> to vector<128x128xf32>
      %18 = vector.extract_strided_slice %16 {offsets = [0, 128], sizes = [128, 128], strides = [1, 1]} : vector<128x256xf32> to vector<128x128xf32>
      %19 = arith.negf %17 : vector<128x128xf32>
      %20 = math.exp %19 : vector<128x128xf32>
      %cst_8 = arith.constant 1.000000e+00 : f32
      %21 = vector.broadcast %cst_8 : f32 to vector<128x128xf32>
      %22 = arith.addf %21, %20 : vector<128x128xf32>
      %23 = arith.divf %21, %22 : vector<128x128xf32>
      %24 = arith.mulf %17, %23 : vector<128x128xf32>
      %25 = arith.mulf %24, %18 : vector<128x128xf32>
      %26 = arith.truncf %25 : vector<128x128xf32> to vector<128x128xbf16>
      %c0_9 = arith.constant 0 : index
      %c0_10 = arith.constant 0 : index
      %c0_11 = arith.constant 0 : index
      %27 = vector.load %arg7[%c0_9, %c0_10, %c0_11] : memref<1x128x512xbf16, #tpu.memory_space<vmem>>, vector<1x128x512xbf16>
      %28 = vector.shape_cast %27 : vector<1x128x512xbf16> to vector<128x512xbf16>
      %cst_12 = arith.constant dense<0.000000e+00> : vector<128x512xf32>
      %29 = tpu.matmul %26, %28, %cst_12 {dimension_numbers = #tpu.dot_dimension_numbers<[1], [0], [0], [1], [0, 0, 1, 1], [], []>} : vector<128x128xbf16>, vector<128x512xbf16>, vector<128x512xf32> -> vector<128x512xf32>
      %c0_13 = arith.constant 0 : index
      %c0_14 = arith.constant 0 : index
      %30 = vector.load %arg13[%c0_13, %c0_14] : memref<128x512xf32, #tpu.memory_space<vmem>>, vector<128x512xf32>
      %c0_15 = arith.constant 0 : index
      %c0_16 = arith.constant 0 : index
      %c0_17 = arith.constant 0 : index
      %31 = vector.load %arg8[%c0_15, %c0_16, %c0_17] : memref<1x128x1xf32, #tpu.memory_space<vmem>>, vector<1x128x1xf32>
      %32 = vector.shape_cast %31 : vector<1x128x1xf32> to vector<128x1xf32>
      %33 = vector.broadcast %32 : vector<128x1xf32> to vector<128x512xf32>
      %34 = arith.mulf %29, %33 : vector<128x512xf32>
      %35 = arith.addf %30, %34 : vector<128x512xf32>
      %c0_18 = arith.constant 0 : index
      %c0_19 = arith.constant 0 : index
      %36 = vector.load %arg13[%c0_18, %c0_19] : memref<128x512xf32, #tpu.memory_space<vmem>>, vector<128x512xf32>
      tpu.vector_store %arg13[%c0_18, %c0_19], %35 {strides = array<i32>} : memref<128x512xf32, #tpu.memory_space<vmem>>, vector<128x512xf32>,
    } else {
    }
    %c7_i32 = arith.constant 7 : i32
    %10 = arith.cmpi eq, %arg1, %c7_i32 : i32
    %11 = arith.extui %10 : i1 to i32
    %c0_i32_3 = arith.constant 0 : i32
    %12 = arith.cmpi ne, %11, %c0_i32_3 : i32
    scf.if %12 {
      %c0 = arith.constant 0 : index
      %c0_4 = arith.constant 0 : index
      %13 = vector.load %arg13[%c0, %c0_4] : memref<128x512xf32, #tpu.memory_space<vmem>>, vector<128x512xf32>
      %c0_5 = arith.constant 0 : index
      %c0_6 = arith.constant 0 : index
      %14 = vector.load %arg12[%c0_5, %c0_6] : memref<128x512xf32, #tpu.memory_space<vmem>>, vector<128x512xf32>
      tpu.vector_store %arg12[%c0_5, %c0_6], %13 {strides = array<i32>} : memref<128x512xf32, #tpu.memory_space<vmem>>, vector<128x512xf32>,
    } else {
    }
    return
  }
  func.func @transform_0(%arg0: i32, %arg1: i32, %arg2: memref<16xi32, #tpu.memory_space<smem>>, %arg3: memref<16xi32, #tpu.memory_space<smem>>) -> (i32, i32) {
    %c0_i32 = arith.constant 0 : i32
    %c0_i32_0 = arith.constant 0 : i32
    return %arg0, %c0_i32 : i32, i32
  }
  func.func @transform_1(%arg0: i32, %arg1: i32, %arg2: memref<16xi32, #tpu.memory_space<smem>>, %arg3: memref<16xi32, #tpu.memory_space<smem>>) -> (i32, i32) {
    %c0_i32 = arith.constant 0 : i32
    %c0_i32_0 = arith.constant 0 : i32
    return %arg0, %c0_i32 : i32, i32
  }
  func.func @transform_2(%arg0: i32, %arg1: i32, %arg2: memref<16xi32, #tpu.memory_space<smem>>, %arg3: memref<16xi32, #tpu.memory_space<smem>>) -> (i32, i32, i32) {
    %c8_i32 = arith.constant 8 : i32
    %0 = arith.muli %arg0, %c8_i32 : i32
    %1 = arith.addi %0, %arg1 : i32
    %2 = arith.index_cast %1 : i32 to index
    %3 = memref.load %arg3[%2] : memref<16xi32, #tpu.memory_space<smem>>
    %c0_i32 = arith.constant 0 : i32
    %c0_i32_0 = arith.constant 0 : i32
    %c0_i32_1 = arith.constant 0 : i32
    return %3, %c0_i32, %c0_i32_0 : i32, i32, i32
  }
  func.func @transform_3(%arg0: i32, %arg1: i32, %arg2: memref<16xi32, #tpu.memory_space<smem>>, %arg3: memref<16xi32, #tpu.memory_space<smem>>) -> (i32, i32, i32) {
    %c8_i32 = arith.constant 8 : i32
    %0 = arith.muli %arg0, %c8_i32 : i32
    %1 = arith.addi %0, %arg1 : i32
    %2 = arith.index_cast %1 : i32 to index
    %3 = memref.load %arg3[%2] : memref<16xi32, #tpu.memory_space<smem>>
    %c0_i32 = arith.constant 0 : i32
    %c0_i32_0 = arith.constant 0 : i32
    %c0_i32_1 = arith.constant 0 : i32
    return %3, %c0_i32, %c0_i32_0 : i32, i32, i32
  }
  func.func @transform_4(%arg0: i32, %arg1: i32, %arg2: memref<16xi32, #tpu.memory_space<smem>>, %arg3: memref<16xi32, #tpu.memory_space<smem>>) -> (i32, i32, i32) {
    %c0_i32 = arith.constant 0 : i32
    %c0_i32_0 = arith.constant 0 : i32
    return %arg1, %arg0, %c0_i32 : i32, i32, i32
  }
  func.func @transform_5(%arg0: i32, %arg1: i32, %arg2: memref<16xi32, #tpu.memory_space<smem>>, %arg3: memref<16xi32, #tpu.memory_space<smem>>) -> (i32, i32) {
    %c0_i32 = arith.constant 0 : i32
    %c0_i32_0 = arith.constant 0 : i32
    %c0_i32_1 = arith.constant 0 : i32
    return %c0_i32, %c0_i32_0 : i32, i32
  }
  func.func @transform_6(%arg0: i32, %arg1: i32, %arg2: memref<16xi32, #tpu.memory_space<smem>>, %arg3: memref<16xi32, #tpu.memory_space<smem>>) -> (i32, i32) {
    %c0_i32 = arith.constant 0 : i32
    %c0_i32_0 = arith.constant 0 : i32
    %c0_i32_1 = arith.constant 0 : i32
    return %c0_i32, %c0_i32_0 : i32, i32
  }
  func.func @transform_7(%arg0: i32, %arg1: i32, %arg2: memref<16xi32, #tpu.memory_space<smem>>, %arg3: memref<16xi32, #tpu.memory_space<smem>>) -> (i32, i32) {
    %c0_i32 = arith.constant 0 : i32
    %c0_i32_0 = arith.constant 0 : i32
    return %arg0, %c0_i32 : i32, i32
  }
  func.func @transform_8(%arg0: i32, %arg1: i32, %arg2: memref<16xi32, #tpu.memory_space<smem>>, %arg3: memref<16xi32, #tpu.memory_space<smem>>) -> (i32, i32) {
    %c0_i32 = arith.constant 0 : i32
    %c0_i32_0 = arith.constant 0 : i32
    return %arg0, %c0_i32 : i32, i32
  }
}

</mosaic_0001>

<llo_original>
// kernel: sp_qwen2_moe_sparse_moe_block.1
$region0: #{sp_qwen2_moe_sparse_moe_block.1}
  #allocation0 [shape = 'u32[]', space=smem, size = 0x4, offset = 0x4, fixed_abs, tag = 'smem constant byte address 0x4 - core index']
  #allocation1 [shape = 'u32[144,128]{1,0:T(1,128)}', space=vmem, size = 0x12000, scoped, tag = 'internal scratch']
  #allocation2 [shape = 'f32[128,512]{1,0:T(8,128)}', space=vmem, size = 0x40000, scoped, tag = 'scratch operand']
  #allocation3 [shape = 's32[1]{0}', space=sflag, size = 0x4, scoped, tag = 'scoped memory for sp_qwen2_moe_sparse_moe_block.1']
  #allocation4 [shape = 'u8[512]{0}', space=smem, size = 0x200, scoped, tag = 'prefetched SMEM operand 0']
  #allocation5 [shape = 'u8[512]{0}', space=smem, size = 0x200, scoped, tag = 'prefetched SMEM operand 1']
  %s0 = inlined_call_operand.vmem [shape: s32[16], index: 0, kind: input, shape index: {}]
  %s1 = inlined_call_operand.vmem [shape: s32[16], index: 1, kind: input, shape index: {}]
  %s2 = inlined_call_operand.vmem [shape: bf16[256,128], index: 2, kind: input, shape index: {}]
  %s3 = inlined_call_operand.vmem [shape: bf16[256,512], index: 3, kind: input, shape index: {}]
  %s4 = inlined_call_operand.vmem [shape: bf16[8,128,256], index: 4, kind: input, shape index: {}]
  %s5 = inlined_call_operand.hbm [shape: bf16[8,128,512], index: 5, kind: input, shape index: {}]
  %s6 = inlined_call_operand.vmem [shape: f32[8,256,1], index: 6, kind: input, shape index: {}]
  %s7 = inlined_call_operand.hbm [shape: bf16[512,1024], index: 7, kind: input, shape index: {}]
  %s8 = inlined_call_operand.hbm [shape: bf16[512,512], index: 8, kind: input, shape index: {}]
  %s9 = inlined_call_operand.vmem [shape: f32[256,1], index: 9, kind: input, shape index: {}]
  %s10 = inlined_call_operand.hbm [shape: f32[256,512], index: 10, kind: output, shape index: {}]
  %s11 = sld [smem:[#allocation0]]
  $region89: #{sp_qwen2_moe_sparse_moe_block.1} parent=0
    _
  %s13 = ssub.s32 1, %s11
  %s14 = scalar_select 0, %s13, %s11
  %s15 = sshll.u32 %s0, 4
  %s16 = int_to_ptr.vmem [resolvable:$true] %s15
  %18 = dma.vmem_to_smem %s16, 16, [#allocation4], [#allocation3]
  %s19 = sshll.u32 %s1, 4
  %s20 = int_to_ptr.vmem [resolvable:$true] %s19
  %22 = dma.vmem_to_smem %s20, 16, [#allocation5], [#allocation3]
  %23 = dma.done [#allocation3], 32
  %24 = sfence
  $region1: #{sp_qwen2_moe_sparse_moe_block.1} parent=0
    #allocation6 [shape = 'u8[262144]{0}', space=vmem, size = 0x40000, scoped, tag = 'input window, operand 5']
    #allocation7 [shape = 's32[2]{0}', space=sflag, size = 0x8, scoped, tag = 'scoped memory for sp_qwen2_moe_sparse_moe_block.1']
    #allocation8 [shape = 's32[2]{0}', space=sflag, size = 0x8, scoped, tag = 'scoped memory for sp_qwen2_moe_sparse_moe_block.1']
    #allocation9 [shape = 'u8[1048576]{0}', space=vmem, size = 0x100000, scoped, tag = 'input window, operand 7, single buffered']
    #allocation10 [shape = 's32[1]{0}', space=sflag, size = 0x4, scoped, tag = 'scoped memory for sp_qwen2_moe_sparse_moe_block.1']
    #allocation11 [shape = 'u8[524288]{0}', space=vmem, size = 0x80000, scoped, tag = 'input window, operand 8, single buffered']
    #allocation12 [shape = 'u8[524288]{0}', space=vmem, size = 0x80000, scoped, tag = 'output window, operand 0']
    %25 = vsyncpa [#allocation7], 0
    %s26 = scalar_lea.sflag [#allocation7], 1
    %27 = vsyncpa %s26, 0
    %28 = vsyncpa [#allocation10], 0
    %29 = vsyncpa [#allocation8], 0
    %s30 = scalar_lea.sflag [#allocation8], 1
    %31 = vsyncpa %s30, 0
    loop: start=0, step=1, limit=18
    $region2: #{sp_qwen2_moe_sparse_moe_block.1} parent=1 // loop_pre_header
      _
    $region3: #{sp_qwen2_moe_sparse_moe_block.1} parent=1 // loop_header
      %s33 = sphi 0, %s37
      %p34 = scmp.ge.s32.totalorder %s33, 18
      %s40 = sphi 0, %s52
      %s41 = sphi 0, %s48
      %s42 = sphi 0, %s40
      %s43 = sphi 0, %s41
      %s44 = sphi 0, %s42
      %s45 = sphi 0, %s43
      %s55 = sphi 0, %s57
      %s58 = sphi 0, %s55
      %s59 = sphi 0, %s58
      %s75 = sphi 0, %s59
      %s81 = sphi 0, %s83
      %s84 = sphi 0, %s81
      %s85 = sphi 0, %s84
      %s101 = sphi 0, %s85
      %s113 = sphi 0, %s115
      %s116 = sphi 0, %s113
      %s117 = sphi 0, %s116
      %s133 = sphi 0, %s117
      %s145 = sphi 0, %s147
      %s148 = sphi 0, %s145
      %s149 = sphi 0, %s148
      %s165 = sphi 0, %s149
      %s173 = sphi 0, %s175
      %s176 = sphi 0, %s173
      %s177 = sphi 0, %s176
      %s193 = sphi 0, %s177
      %s197 = sphi 0, %s197
      %s199 = sphi 0, %s197
      %s200 = sphi 0, %s199
      %s214 = sphi 0, %s200
      %s218 = sphi 0, %s218
      %s220 = sphi 0, %s218
      %s221 = sphi 0, %s220
      %s235 = sphi 0, %s221
      %s241 = sphi 0, %s243
      %s244 = sphi 0, %s241
      %s245 = sphi 0, %s244
      %s261 = sphi 0, %s245
      %s267 = sphi 0, %s269
      %s270 = sphi 0, %s267
      %s271 = sphi 0, %s270
      %s287 = sphi 0, %s271
    $region4: #{sp_qwen2_moe_sparse_moe_block.1} parent=1 // loop_header_branch
      %36 = sbr.rel (%p34) target = $region8
    $region5: #{sp_qwen2_moe_sparse_moe_block.1} parent=1 // loop_body
      %s38 = ssub.s32 %s33, 1
      %s39 = ssub.s32 %s33, 2
      %s46 = sadd.s32 1, %s41
      %p47 = scmp.ge.s32.totalorder %s46, 8
      %s48 = scalar_select %p47, 0, %s46
      %s49 = sadd.s32 1, %s40
      %s50 = scalar_select %p47, %s49, %s40
      %p51 = scmp.ge.s32.totalorder %s50, 2
      %s52 = scalar_select %p51, 0, %s50
      %s53 = ssub.s32 %s40, %s52
      %p54 = scmp.eq.s32.totalorder %s53, 0
      %s56 = sadd.s32 %s55, 1
      %s57 = scalar_select %p54, %s55, %s56
      %p60 = pneg %p54
      %p61 = scmp.eq.s32.totalorder %s33, 15
      %p62 = por %p60, %p61
      %p63 = scmp.ne.s32.totalorder %s55, %s58
      %p64 = scmp.eq.s32.totalorder %s33, 0
      %p65 = por %p63, %p64
      %p66 = scmp.ne.s32.totalorder %s55, %s58
      %p67 = scmp.eq.s32.totalorder %s38, 15
      %p68 = por %p66, %p67
      %p69 = scmp.ne.s32.totalorder %s58, %s59
      %p70 = scmp.eq.s32.totalorder %s38, 0
      %p71 = por %p69, %p70
      %p72 = scmp.ne.s32.totalorder %s58, %s59
      %p73 = scmp.eq.s32.totalorder %s39, 15
      %p74 = por %p72, %p73
      %p76 = scmp.ne.s32.totalorder %s59, %s75
      %p77 = scmp.eq.s32.totalorder %s39, 0
      %p78 = por %p76, %p77
      %s79 = ssub.s32 %s40, %s52
      %p80 = scmp.eq.s32.totalorder %s79, 0
      %s82 = sadd.s32 %s81, 1
      %s83 = scalar_select %p80, %s81, %s82
      %p86 = pneg %p80
      %p87 = scmp.eq.s32.totalorder %s33, 15
      %p88 = por %p86, %p87
      %p89 = scmp.ne.s32.totalorder %s81, %s84
      %p90 = scmp.eq.s32.totalorder %s33, 0
      %p91 = por %p89, %p90
      %p92 = scmp.ne.s32.totalorder %s81, %s84
      %p93 = scmp.eq.s32.totalorder %s38, 15
      %p94 = por %p92, %p93
      %p95 = scmp.ne.s32.totalorder %s84, %s85
      %p96 = scmp.eq.s32.totalorder %s38, 0
      %p97 = por %p95, %p96
      %p98 = scmp.ne.s32.totalorder %s84, %s85
      %p99 = scmp.eq.s32.totalorder %s39, 15
      %p100 = por %p98, %p99
      %p102 = scmp.ne.s32.totalorder %s85, %s101
      %p103 = scmp.eq.s32.totalorder %s39, 0
      %p104 = por %p102, %p103
      %s105 = smul.u32 %s40, 8
      %s106 = sadd.s32 %s105, %s41
      %s107 = sld [smem:[#allocation5 + %s106]]
      %s108 = smul.u32 %s52, 8
      %s109 = sadd.s32 %s108, %s48
      %s110 = sld [smem:[#allocation5 + %s109]]
      %s111 = ssub.s32 %s107, %s110
      %p112 = scmp.eq.s32.totalorder %s111, 0
      %s114 = sadd.s32 %s113, 1
      %s115 = scalar_select %p112, %s113, %s114
      %p118 = pneg %p112
      %p119 = scmp.eq.s32.totalorder %s33, 15
      %p120 = por %p118, %p119
      %p121 = scmp.ne.s32.totalorder %s113, %s116
      %p122 = scmp.eq.s32.totalorder %s33, 0
      %p123 = por %p121, %p122
      %p124 = scmp.ne.s32.totalorder %s113, %s116
      %p125 = scmp.eq.s32.totalorder %s38, 15
      %p126 = por %p124, %p125
      %p127 = scmp.ne.s32.totalorder %s116, %s117
      %p128 = scmp.eq.s32.totalorder %s38, 0
      %p129 = por %p127, %p128
      %p130 = scmp.ne.s32.totalorder %s116, %s117
      %p131 = scmp.eq.s32.totalorder %s39, 15
      %p132 = por %p130, %p131
      %p134 = scmp.ne.s32.totalorder %s117, %s133
      %p135 = scmp.eq.s32.totalorder %s39, 0
      %p136 = por %p134, %p135
      %s137 = smul.u32 %s40, 8
      %s138 = sadd.s32 %s137, %s41
      %s139 = sld [smem:[#allocation5 + %s138]]
      %s140 = smul.u32 %s52, 8
      %s141 = sadd.s32 %s140, %s48
      %s142 = sld [smem:[#allocation5 + %s141]]
      %s143 = ssub.s32 %s139, %s142
      %p144 = scmp.eq.s32.totalorder %s143, 0
      %s146 = sadd.s32 %s145, 1
      %s147 = scalar_select %p144, %s145, %s146
      %p150 = pneg %p144
      %p151 = scmp.eq.s32.totalorder %s33, 15
      %p152 = por %p150, %p151
      %p153 = scmp.ne.s32.totalorder %s145, %s148
      %p154 = scmp.eq.s32.totalorder %s33, 0
      %p155 = por %p153, %p154
      %p156 = scmp.ne.s32.totalorder %s145, %s148
      %p157 = scmp.eq.s32.totalorder %s38, 15
      %p158 = por %p156, %p157
      %p159 = scmp.ne.s32.totalorder %s148, %s149
      %p160 = scmp.eq.s32.totalorder %s38, 0
      %p161 = por %p159, %p160
      %p162 = scmp.ne.s32.totalorder %s148, %s149
      %p163 = scmp.eq.s32.totalorder %s39, 15
      %p164 = por %p162, %p163
      %p166 = scmp.ne.s32.totalorder %s149, %s165
      %p167 = scmp.eq.s32.totalorder %s39, 0
      %p168 = por %p166, %p167
      %s169 = ssub.s32 %s41, %s48
      %s170 = ssub.s32 %s40, %s52
      %s171 = sor.u32 %s169, %s170
      %p172 = scmp.eq.s32.totalorder %s171, 0
      %s174 = sadd.s32 %s173, 1
      %s175 = scalar_select %p172, %s173, %s174
      %p178 = pneg %p172
      %p179 = scmp.eq.s32.totalorder %s33, 15
      %p180 = por %p178, %p179
      %p181 = scmp.ne.s32.totalorder %s173, %s176
      %p182 = scmp.eq.s32.totalorder %s33, 0
      %p183 = por %p181, %p182
      %p184 = scmp.ne.s32.totalorder %s173, %s176
      %p185 = scmp.eq.s32.totalorder %s38, 15
      %p186 = por %p184, %p185
      %p187 = scmp.ne.s32.totalorder %s176, %s177
      %p188 = scmp.eq.s32.totalorder %s38, 0
      %p189 = por %p187, %p188
      %p190 = scmp.ne.s32.totalorder %s176, %s177
      %p191 = scmp.eq.s32.totalorder %s39, 15
      %p192 = por %p190, %p191
      %p194 = scmp.ne.s32.totalorder %s177, %s193
      %p195 = scmp.eq.s32.totalorder %s39, 0
      %p196 = por %p194, %p195
      %s198 = sadd.s32 %s197, 1
      %p201 = scmp.eq.s32.totalorder %s33, 15
      %p202 = scmp.ne.s32.totalorder %s197, %s199
      %p203 = scmp.eq.s32.totalorder %s33, 0
      %p204 = por %p202, %p203
      %p205 = scmp.ne.s32.totalorder %s197, %s199
      %p206 = scmp.eq.s32.totalorder %s38, 15
      %p207 = por %p205, %p206
      %p208 = scmp.ne.s32.totalorder %s199, %s200
      %p209 = scmp.eq.s32.totalorder %s38, 0
      %p210 = por %p208, %p209
      %p211 = scmp.ne.s32.totalorder %s199, %s200
      %p212 = scmp.eq.s32.totalorder %s39, 15
      %p213 = por %p211, %p212
      %p215 = scmp.ne.s32.totalorder %s200, %s214
      %p216 = scmp.eq.s32.totalorder %s39, 0
      %p217 = por %p215, %p216
      %s219 = sadd.s32 %s218, 1
      %p222 = scmp.eq.s32.totalorder %s33, 15
      %p223 = scmp.ne.s32.totalorder %s218, %s220
      %p224 = scmp.eq.s32.totalorder %s33, 0
      %p225 = por %p223, %p224
      %p226 = scmp.ne.s32.totalorder %s218, %s220
      %p227 = scmp.eq.s32.totalorder %s38, 15
      %p228 = por %p226, %p227
      %p229 = scmp.ne.s32.totalorder %s220, %s221
      %p230 = scmp.eq.s32.totalorder %s38, 0
      %p231 = por %p229, %p230
      %p232 = scmp.ne.s32.totalorder %s220, %s221
      %p233 = scmp.eq.s32.totalorder %s39, 15
      %p234 = por %p232, %p233
      %p236 = scmp.ne.s32.totalorder %s221, %s235
      %p237 = scmp.eq.s32.totalorder %s39, 0
      %p238 = por %p236, %p237
      %s239 = ssub.s32 %s40, %s52
      %p240 = scmp.eq.s32.totalorder %s239, 0
      %s242 = sadd.s32 %s241, 1
      %s243 = scalar_select %p240, %s241, %s242
      %p246 = pneg %p240
      %p247 = scmp.eq.s32.totalorder %s33, 15
      %p248 = por %p246, %p247
      %p249 = scmp.ne.s32.totalorder %s241, %s244
      %p250 = scmp.eq.s32.totalorder %s33, 0
      %p251 = por %p249, %p250
      %p252 = scmp.ne.s32.totalorder %s241, %s244
      %p253 = scmp.eq.s32.totalorder %s38, 15
      %p254 = por %p252, %p253
      %p255 = scmp.ne.s32.totalorder %s244, %s245
      %p256 = scmp.eq.s32.totalorder %s38, 0
      %p257 = por %p255, %p256
      %p258 = scmp.ne.s32.totalorder %s244, %s245
      %p259 = scmp.eq.s32.totalorder %s39, 15
      %p260 = por %p258, %p259
      %p262 = scmp.ne.s32.totalorder %s245, %s261
      %p263 = scmp.eq.s32.totalorder %s39, 0
      %p264 = por %p262, %p263
      %s265 = ssub.s32 %s40, %s52
      %p266 = scmp.eq.s32.totalorder %s265, 0
      %s268 = sadd.s32 %s267, 1
      %s269 = scalar_select %p266, %s267, %s268
      %p272 = pneg %p266
      %p273 = scmp.eq.s32.totalorder %s33, 15
      %p274 = por %p272, %p273
      %p275 = scmp.ne.s32.totalorder %s267, %s270
      %p276 = scmp.eq.s32.totalorder %s33, 0
      %p277 = por %p275, %p276
      %p278 = scmp.ne.s32.totalorder %s267, %s270
      %p279 = scmp.eq.s32.totalorder %s38, 15
      %p280 = por %p278, %p279
      %p281 = scmp.ne.s32.totalorder %s270, %s271
      %p282 = scmp.eq.s32.totalorder %s38, 0
      %p283 = por %p281, %p282
      %p284 = scmp.ne.s32.totalorder %s270, %s271
      %p285 = scmp.eq.s32.totalorder %s39, 15
      %p286 = por %p284, %p285
      %p288 = scmp.ne.s32.totalorder %s271, %s287
      %p289 = scmp.eq.s32.totalorder %s39, 0
      %p290 = por %p288, %p289
      %p291 = scmp.le.s32.totalorder 1, %s33
      %p292 = scmp.lt.s32.totalorder %s33, 17
      %p293 = pnand %p291, %p292
      %p294 = pneg %p293
      // Predicated region
      $region9: #{sp_qwen2_moe_sparse_moe_block.1} parent=5 // pred_check
        _
      $region10: #{sp_qwen2_moe_sparse_moe_block.1} parent=5 // pred_check_branch
        %296 = sbr.rel (%p293) target = $region12
      $region11: #{sp_qwen2_moe_sparse_moe_block.1} parent=5 // pred_region
        %s297 = ssub.s32 %s33, 1
        // Predicated region
        $region13: #{sp_qwen2_moe_sparse_moe_block.1} parent=11 // pred_check
          %p298 = pneg %p210
        $region14: #{sp_qwen2_moe_sparse_moe_block.1} parent=11 // pred_check_branch
          %300 = sbr.rel (%p298) target = $region16
        $region15: #{sp_qwen2_moe_sparse_moe_block.1} parent=11 // pred_region
          %s302 = ssub.s32 32768, 32768
          %303 = vsyncadd [#allocation10], %s302
          %s304 = sshll.u32 [#allocation9], 4
          %s305 = int_to_ptr.vmem [resolvable:$true] %s304
          %310 = dma.hbm_to_vmem [thread:$0]  %s7, 32768, %s305, [#allocation10], 512, 512, 32
        $region16: #{sp_qwen2_moe_sparse_moe_block.1} parent=11 // pred_fallthru
          _
        // Predicated region
        $region17: #{sp_qwen2_moe_sparse_moe_block.1} parent=11 // pred_check
          %p311 = pneg %p231
        $region18: #{sp_qwen2_moe_sparse_moe_block.1} parent=11 // pred_check_branch
          %313 = sbr.rel (%p311) target = $region20
        $region19: #{sp_qwen2_moe_sparse_moe_block.1} parent=11 // pred_region
          %s315 = ssub.s32 16384, 16384
          %316 = vsyncadd [#allocation10], %s315
          %s317 = sshll.u32 [#allocation11], 4
          %s318 = int_to_ptr.vmem [resolvable:$true] %s317
          %323 = dma.hbm_to_vmem [thread:$0]  %s8, 16384, %s318, [#allocation10], 256, 256, 16
        $region20: #{sp_qwen2_moe_sparse_moe_block.1} parent=11 // pred_fallthru
          _
      $region12: #{sp_qwen2_moe_sparse_moe_block.1} parent=5 // pred_fallthru
        _
      %p324 = scmp.lt.s32.totalorder %s33, 16
      // Predicated region
      $region21: #{sp_qwen2_moe_sparse_moe_block.1} parent=5 // pred_check
        %p325 = pneg %p324
      $region22: #{sp_qwen2_moe_sparse_moe_block.1} parent=5 // pred_check_branch
        %327 = sbr.rel (%p325) target = $region24
      $region23: #{sp_qwen2_moe_sparse_moe_block.1} parent=5 // pred_region
        // Predicated region
        $region25: #{sp_qwen2_moe_sparse_moe_block.1} parent=23 // pred_check
          %p328 = pneg %p65
        $region26: #{sp_qwen2_moe_sparse_moe_block.1} parent=23 // pred_check_branch
          %330 = sbr.rel (%p328) target = $region28
        $region27: #{sp_qwen2_moe_sparse_moe_block.1} parent=23 // pred_region
          %s331 = smul.u32 16, %s40
          %p332 = scmp.lt.s32.totalorder %s331, 31
          %s333 = scalar_select %p332, %s331, 31
          %s334 = smul.addr %s333, 4
          %s335 = scalar_lea.vmem %s2, %s334
          %s336 = smul.u32 16, %s40
        $region28: #{sp_qwen2_moe_sparse_moe_block.1} parent=23 // pred_fallthru
          _
        // Predicated region
        $region29: #{sp_qwen2_moe_sparse_moe_block.1} parent=23 // pred_check
          %p337 = pneg %p91
        $region30: #{sp_qwen2_moe_sparse_moe_block.1} parent=23 // pred_check_branch
          %339 = sbr.rel (%p337) target = $region32
        $region31: #{sp_qwen2_moe_sparse_moe_block.1} parent=23 // pred_region
          %s340 = smul.u32 16, %s40
          %p341 = scmp.lt.s32.totalorder %s340, 31
          %s342 = scalar_select %p341, %s340, 31
          %s343 = smul.addr %s342, 4
          %s344 = smul.addr %s343, 4
          %s345 = scalar_lea.vmem %s3, %s344
          %s346 = smul.u32 16, %s40
        $region32: #{sp_qwen2_moe_sparse_moe_block.1} parent=23 // pred_fallthru
          _
        // Predicated region
        $region33: #{sp_qwen2_moe_sparse_moe_block.1} parent=23 // pred_check
          %p347 = pneg %p123
        $region34: #{sp_qwen2_moe_sparse_moe_block.1} parent=23 // pred_check_branch
          %349 = sbr.rel (%p347) target = $region36
        $region35: #{sp_qwen2_moe_sparse_moe_block.1} parent=23 // pred_region
          %s350 = smul.u32 %s40, 8
          %s351 = sadd.s32 %s350, %s41
          %s352 = sld [smem:[#allocation5 + %s351]]
          %p353 = scmp.lt.s32.totalorder %s352, 7
          %s354 = scalar_select %p353, %s352, 7
          %s355 = smul.addr %s354, 32
          %s356 = smul.addr %s355, 4
          %s357 = scalar_lea.vmem %s4, %s356
          %s358 = smul.u32 %s40, 8
          %s359 = sadd.s32 %s358, %s41
          %s360 = sld [smem:[#allocation5 + %s359]]
        $region36: #{sp_qwen2_moe_sparse_moe_block.1} parent=23 // pred_fallthru
          _
        // Predicated region
        $region37: #{sp_qwen2_moe_sparse_moe_block.1} parent=23 // pred_check
          %p361 = pneg %p155
        $region38: #{sp_qwen2_moe_sparse_moe_block.1} parent=23 // pred_check_branch
          %363 = sbr.rel (%p361) target = $region40
        $region39: #{sp_qwen2_moe_sparse_moe_block.1} parent=23 // pred_region
          %s364 = sand.u32 %s145, 1
          %s365 = scalar_lea.sflag [#allocation7], %s364
          %s366 = sand.u32 %s145, 1
          %s367 = smul.addr %s366, 256
          %s368 = scalar_lea.vmem [#allocation6], %s367
          %s369 = smul.u32 %s40, 8
          %s370 = sadd.s32 %s369, %s41
          %s371 = sld [smem:[#allocation5 + %s370]]
          %s373 = ssub.s32 4096, 4096
          %374 = vsyncadd %s365, %s373
          %s375 = smul.addr %s371, 64
          %s376 = smul.addr %s375, 64
          %s377 = scalar_lea.hbm %s5, %s376
          %s378 = sshll.u32 %s368, 4
          %s379 = int_to_ptr.vmem [resolvable:$true] %s378
          %384 = dma.hbm_to_vmem [thread:$0]  %s377, 4096, %s379, %s365, 256, 256, 16
        $region40: #{sp_qwen2_moe_sparse_moe_block.1} parent=23 // pred_fallthru
          _
        // Predicated region
        $region41: #{sp_qwen2_moe_sparse_moe_block.1} parent=23 // pred_check
          %p385 = pneg %p183
        $region42: #{sp_qwen2_moe_sparse_moe_block.1} parent=23 // pred_check_branch
          %387 = sbr.rel (%p385) target = $region44
        $region43: #{sp_qwen2_moe_sparse_moe_block.1} parent=23 // pred_region
          %s388 = smul.u32 16, %s40
          %p389 = scmp.lt.s32.totalorder %s41, 7
          %s390 = scalar_select %p389, %s41, 7
          %p391 = scmp.lt.s32.totalorder %s388, 31
          %s392 = scalar_select %p391, %s388, 31
          %s393 = smul.addr %s390, 32
          %s394 = sadd.s32 %s392, %s393
          %s395 = smul.addr %s394, 8
          %s396 = scalar_lea.vmem %s6, %s395
          %s397 = smul.u32 16, %s40
        $region44: #{sp_qwen2_moe_sparse_moe_block.1} parent=23 // pred_fallthru
          _
        // Predicated region
        $region45: #{sp_qwen2_moe_sparse_moe_block.1} parent=23 // pred_check
          %p398 = pneg %p251
        $region46: #{sp_qwen2_moe_sparse_moe_block.1} parent=23 // pred_check_branch
          %400 = sbr.rel (%p398) target = $region48
        $region47: #{sp_qwen2_moe_sparse_moe_block.1} parent=23 // pred_region
          %s401 = smul.u32 16, %s40
          %p402 = scmp.lt.s32.totalorder %s401, 31
          %s403 = scalar_select %p402, %s401, 31
          %s404 = smul.addr %s403, 8
          %s405 = scalar_lea.vmem %s9, %s404
          %s406 = smul.u32 16, %s40
        $region48: #{sp_qwen2_moe_sparse_moe_block.1} parent=23 // pred_fallthru
          _
      $region24: #{sp_qwen2_moe_sparse_moe_block.1} parent=5 // pred_fallthru
        _
      %p407 = scmp.le.s32.totalorder 1, %s33
      %p408 = scmp.lt.s32.totalorder %s33, 17
      %p409 = pnand %p407, %p408
      %p410 = pneg %p409
      // Predicated region
      $region49: #{sp_qwen2_moe_sparse_moe_block.1} parent=5 // pred_check
        _
      $region50: #{sp_qwen2_moe_sparse_moe_block.1} parent=5 // pred_check_branch
        %412 = sbr.rel (%p409) target = $region52
      $region51: #{sp_qwen2_moe_sparse_moe_block.1} parent=5 // pred_region
        %s413 = ssub.s32 %s33, 1
        %s414 = sand.u32 %s148, 1
        %s415 = scalar_lea.sflag [#allocation7], %s414
        %s416 = sand.u32 %s148, 1
        %s417 = smul.addr %s416, 256
        %s418 = scalar_lea.vmem [#allocation6], %s417
        // Predicated region
        $region53: #{sp_qwen2_moe_sparse_moe_block.1} parent=51 // pred_check
          %p419 = pneg %p161
        $region54: #{sp_qwen2_moe_sparse_moe_block.1} parent=51 // pred_check_branch
          %421 = sbr.rel (%p419) target = $region56
        $region55: #{sp_qwen2_moe_sparse_moe_block.1} parent=51 // pred_region
          %422 = dma.done %s415, 4096
        $region56: #{sp_qwen2_moe_sparse_moe_block.1} parent=51 // pred_fallthru
          _
        // Predicated region
        $region57: #{sp_qwen2_moe_sparse_moe_block.1} parent=51 // pred_check
          %p423 = pneg %p210
        $region58: #{sp_qwen2_moe_sparse_moe_block.1} parent=51 // pred_check_branch
          %425 = sbr.rel (%p423) target = $region60
        $region59: #{sp_qwen2_moe_sparse_moe_block.1} parent=51 // pred_region
          %426 = dma.done [#allocation10], 32768
        $region60: #{sp_qwen2_moe_sparse_moe_block.1} parent=51 // pred_fallthru
          _
        // Predicated region
        $region61: #{sp_qwen2_moe_sparse_moe_block.1} parent=51 // pred_check
          %p427 = pneg %p231
        $region62: #{sp_qwen2_moe_sparse_moe_block.1} parent=51 // pred_check_branch
          %429 = sbr.rel (%p427) target = $region64
        $region63: #{sp_qwen2_moe_sparse_moe_block.1} parent=51 // pred_region
          %430 = dma.done [#allocation10], 16384
        $region64: #{sp_qwen2_moe_sparse_moe_block.1} parent=51 // pred_fallthru
          _
        %s431 = smul.u32 16, %s42
        %p432 = scmp.lt.s32.totalorder %s431, 31
        %s433 = scalar_select %p432, %s431, 31
        %s434 = smul.addr %s433, 4
        %s435 = scalar_lea.vmem %s2, %s434
        %p436 = pneg %p71
        %p437 = pneg %p68
        %s438 = smul.u32 16, %s42
        %p439 = scmp.lt.s32.totalorder %s438, 31
        %s440 = scalar_select %p439, %s438, 31
        %s441 = smul.addr %s440, 4
        %s442 = smul.addr %s441, 4
        %s443 = scalar_lea.vmem %s3, %s442
        %p444 = pneg %p97
        %p445 = pneg %p94
        %s446 = smul.u32 %s42, 8
        %s447 = sadd.s32 %s446, %s43
        %s448 = sld [smem:[#allocation5 + %s447]]
        %p449 = scmp.lt.s32.totalorder %s448, 7
        %s450 = scalar_select %p449, %s448, 7
        %s451 = smul.addr %s450, 32
        %s452 = smul.addr %s451, 4
        %s453 = scalar_lea.vmem %s4, %s452
        %p454 = pneg %p129
        %p455 = pneg %p126
        %s456 = sand.u32 %s148, 1
        %s457 = scalar_lea.sflag [#allocation7], %s456
        %s458 = sand.u32 %s148, 1
        %s459 = smul.addr %s458, 256
        %s460 = scalar_lea.vmem [#allocation6], %s459
        %p461 = pneg %p161
        %p462 = pneg %p158
        %s463 = smul.u32 16, %s42
        %p464 = scmp.lt.s32.totalorder %s43, 7
        %s465 = scalar_select %p464, %s43, 7
        %p466 = scmp.lt.s32.totalorder %s463, 31
        %s467 = scalar_select %p466, %s463, 31
        %s468 = smul.addr %s465, 32
        %s469 = sadd.s32 %s467, %s468
        %s470 = smul.addr %s469, 8
        %s471 = scalar_lea.vmem %s6, %s470
        %p472 = pneg %p189
        %p473 = pneg %p186
        %p474 = pneg %p210
        %p475 = pneg %p207
        %p476 = pneg %p231
        %p477 = pneg %p228
        %s478 = smul.u32 16, %s42
        %p479 = scmp.lt.s32.totalorder %s478, 31
        %s480 = scalar_select %p479, %s478, 31
        %s481 = smul.addr %s480, 8
        %s482 = scalar_lea.vmem %s9, %s481
        %p483 = pneg %p257
        %p484 = pneg %p254
        %p485 = pneg %p283
        %p486 = pneg %p280
        %s487 = sand.u32 %s270, 1
        %s488 = scalar_lea.sflag [#allocation8], %s487
        %s489 = sand.u32 %s270, 1
        %s490 = smul.addr %s489, 512
        %s491 = scalar_lea.vmem [#allocation12], %s490
        %s492 = smul.u32 16, %s42
        %p493 = scmp.lt.s32.totalorder %s492, 31
        %s494 = scalar_select %p493, %s492, 31
        %s495 = smul.addr %s494, 4
        %s496 = scalar_lea.vmem %s2, %s495
        %s497 = smul.u32 16, %s42
        %s498 = smul.u32 16, %s42
        %p499 = scmp.lt.s32.totalorder %s498, 31
        %s500 = scalar_select %p499, %s498, 31
        %s501 = smul.addr %s500, 4
        %s502 = smul.addr %s501, 4
        %s503 = scalar_lea.vmem %s3, %s502
        %s504 = smul.u32 16, %s42
        %s505 = smul.u32 %s42, 8
        %s506 = sadd.s32 %s505, %s43
        %s507 = sld [smem:[#allocation5 + %s506]]
        %p508 = scmp.lt.s32.totalorder %s507, 7
        %s509 = scalar_select %p508, %s507, 7
        %s510 = smul.addr %s509, 32
        %s511 = smul.addr %s510, 4
        %s512 = scalar_lea.vmem %s4, %s511
        %s513 = smul.u32 %s42, 8
        %s514 = sadd.s32 %s513, %s43
        %s515 = sld [smem:[#allocation5 + %s514]]
        %s516 = smul.u32 %s42, 8
        %s517 = sadd.s32 %s516, %s43
        %s518 = sld [smem:[#allocation5 + %s517]]
        %s519 = smul.u32 16, %s42
        %p520 = scmp.lt.s32.totalorder %s43, 7
        %s521 = scalar_select %p520, %s43, 7
        %p522 = scmp.lt.s32.totalorder %s519, 31
        %s523 = scalar_select %p522, %s519, 31
        %s524 = smul.addr %s521, 32
        %s525 = sadd.s32 %s523, %s524
        %s526 = smul.addr %s525, 8
        %s527 = scalar_lea.vmem %s6, %s526
        %s528 = smul.u32 16, %s42
        %s529 = smul.u32 16, %s42
        %p530 = scmp.lt.s32.totalorder %s529, 31
        %s531 = scalar_select %p530, %s529, 31
        %s532 = smul.addr %s531, 8
        %s533 = scalar_lea.vmem %s9, %s532
        %s534 = smul.u32 16, %s42
        %s535 = smul.u32 16, %s42
        %p537 = scmp.eq.s32.totalorder %s43, 0
        // Predicated region
        $region65: #{sp_qwen2_moe_sparse_moe_block.1} parent=51 // pred_check
          %p538 = pneg %p537
        $region66: #{sp_qwen2_moe_sparse_moe_block.1} parent=51 // pred_check_branch
          %540 = sbr.rel (%p538) target = $region68
        $region67: #{sp_qwen2_moe_sparse_moe_block.1} parent=51 // pred_region
          %v541 = vld [vmem:[%s503] sm:$0xff]
          %v542 = vld [vmem:[%s503 + $0x8] sm:$0xff]
          %v543 = vld [vmem:[%s503 + $0x10] sm:$0xff]
          %v544 = vld [vmem:[%s503 + $0x18] sm:$0xff]
          %v545 = vld [vmem:[%s503 + $0x20] sm:$0xff]
          %v546 = vld [vmem:[%s503 + $0x28] sm:$0xff]
          %v547 = vld [vmem:[%s503 + $0x30] sm:$0xff]
          %v548 = vld [vmem:[%s503 + $0x38] sm:$0xff]
          %v549 = vld [vmem:[%s503 + $0x40] sm:$0xff]
          %v550 = vld [vmem:[%s503 + $0x48] sm:$0xff]
          %v551 = vld [vmem:[%s503 + $0x50] sm:$0xff]
          %v552 = vld [vmem:[%s503 + $0x58] sm:$0xff]
          %v553 = vld [vmem:[%s503 + $0x60] sm:$0xff]
          %v554 = vld [vmem:[%s503 + $0x68] sm:$0xff]
          %v555 = vld [vmem:[%s503 + $0x70] sm:$0xff]
          %v556 = vld [vmem:[%s503 + $0x78] sm:$0xff]
          %v557 = vld [vmem:[%s503 + $0x80] sm:$0xff]
          %v558 = vld [vmem:[%s503 + $0x88] sm:$0xff]
          %v559 = vld [vmem:[%s503 + $0x90] sm:$0xff]
          %v560 = vld [vmem:[%s503 + $0x98] sm:$0xff]
          %v561 = vld [vmem:[%s503 + $0xa0] sm:$0xff]
          %v562 = vld [vmem:[%s503 + $0xa8] sm:$0xff]
          %v563 = vld [vmem:[%s503 + $0xb0] sm:$0xff]
          %v564 = vld [vmem:[%s503 + $0xb8] sm:$0xff]
          %v565 = vld [vmem:[%s503 + $0xc0] sm:$0xff]
          %v566 = vld [vmem:[%s503 + $0xc8] sm:$0xff]
          %v567 = vld [vmem:[%s503 + $0xd0] sm:$0xff]
          %v568 = vld [vmem:[%s503 + $0xd8] sm:$0xff]
          %v569 = vld [vmem:[%s503 + $0xe0] sm:$0xff]
          %v570 = vld [vmem:[%s503 + $0xe8] sm:$0xff]
          %v571 = vld [vmem:[%s503 + $0xf0] sm:$0xff]
          %v572 = vld [vmem:[%s503 + $0xf8] sm:$0xff]
          %v573 = vld [vmem:[#allocation9] sm:$0xff]
          %v574 = vld [vmem:[#allocation9 + $0x8] sm:$0xff]
          %v575 = vld [vmem:[#allocation9 + $0x10] sm:$0xff]
          %v576 = vld [vmem:[#allocation9 + $0x18] sm:$0xff]
          %v577 = vld [vmem:[#allocation9 + $0x20] sm:$0xff]
          %v578 = vld [vmem:[#allocation9 + $0x28] sm:$0xff]
          %v579 = vld [vmem:[#allocation9 + $0x30] sm:$0xff]
          %v580 = vld [vmem:[#allocation9 + $0x38] sm:$0xff]
          %v581 = vld [vmem:[#allocation9 + $0x40] sm:$0xff]
          %v582 = vld [vmem:[#allocation9 + $0x48] sm:$0xff]
          %v583 = vld [vmem:[#allocation9 + $0x50] sm:$0xff]
          %v584 = vld [vmem:[#allocation9 + $0x58] sm:$0xff]
          %v585 = vld [vmem:[#allocation9 + $0x60] sm:$0xff]
          %v586 = vld [vmem:[#allocation9 + $0x68] sm:$0xff]
          %v587 = vld [vmem:[#allocation9 + $0x70] sm:$0xff]
          %v588 = vld [vmem:[#allocation9 + $0x78] sm:$0xff]
          %v589 = vld [vmem:[#allocation9 + $0x80] sm:$0xff]
          %v590 = vld [vmem:[#allocation9 + $0x88] sm:$0xff]
          %v591 = vld [vmem:[#allocation9 + $0x90] sm:$0xff]
          %v592 = vld [vmem:[#allocation9 + $0x98] sm:$0xff]
          %v593 = vld [vmem:[#allocation9 + $0xa0] sm:$0xff]
          %v594 = vld [vmem:[#allocation9 + $0xa8] sm:$0xff]
          %v595 = vld [vmem:[#allocation9 + $0xb0] sm:$0xff]
          %v596 = vld [vmem:[#allocation9 + $0xb8] sm:$0xff]
          %v597 = vld [vmem:[#allocation9 + $0xc0] sm:$0xff]
          %v598 = vld [vmem:[#allocation9 + $0xc8] sm:$0xff]
          %v599 = vld [vmem:[#allocation9 + $0xd0] sm:$0xff]
          %v600 = vld [vmem:[#allocation9 + $0xd8] sm:$0xff]
          %v601 = vld [vmem:[#allocation9 + $0xe0] sm:$0xff]
          %v602 = vld [vmem:[#allocation9 + $0xe8] sm:$0xff]
          %v603 = vld [vmem:[#allocation9 + $0xf0] sm:$0xff]
          %v604 = vld [vmem:[#allocation9 + $0xf8] sm:$0xff]
          %v605 = vld [vmem:[#allocation9 + $0x100] sm:$0xff]
          %v606 = vld [vmem:[#allocation9 + $0x108] sm:$0xff]
          %v607 = vld [vmem:[#allocation9 + $0x110] sm:$0xff]
          %v608 = vld [vmem:[#allocation9 + $0x118] sm:$0xff]
          %v609 = vld [vmem:[#allocation9 + $0x120] sm:$0xff]
          %v610 = vld [vmem:[#allocation9 + $0x128] sm:$0xff]
          %v611 = vld [vmem:[#allocation9 + $0x130] sm:$0xff]
          %v612 = vld [vmem:[#allocation9 + $0x138] sm:$0xff]
          %v613 = vld [vmem:[#allocation9 + $0x140] sm:$0xff]
          %v614 = vld [vmem:[#allocation9 + $0x148] sm:$0xff]
          %v615 = vld [vmem:[#allocation9 + $0x150] sm:$0xff]
          %v616 = vld [vmem:[#allocation9 + $0x158] sm:$0xff]
          %v617 = vld [vmem:[#allocation9 + $0x160] sm:$0xff]
          %v618 = vld [vmem:[#allocation9 + $0x168] sm:$0xff]
          %v619 = vld [vmem:[#allocation9 + $0x170] sm:$0xff]
          %v620 = vld [vmem:[#allocation9 + $0x178] sm:$0xff]
          %v621 = vld [vmem:[#allocation9 + $0x180] sm:$0xff]
          %v622 = vld [vmem:[#allocation9 + $0x188] sm:$0xff]
          %v623 = vld [vmem:[#allocation9 + $0x190] sm:$0xff]
          %v624 = vld [vmem:[#allocation9 + $0x198] sm:$0xff]
          %v625 = vld [vmem:[#allocation9 + $0x1a0] sm:$0xff]
          %v626 = vld [vmem:[#allocation9 + $0x1a8] sm:$0xff]
          %v627 = vld [vmem:[#allocation9 + $0x1b0] sm:$0xff]
          %v628 = vld [vmem:[#allocation9 + $0x1b8] sm:$0xff]
          %v629 = vld [vmem:[#allocation9 + $0x1c0] sm:$0xff]
          %v630 = vld [vmem:[#allocation9 + $0x1c8] sm:$0xff]
          %v631 = vld [vmem:[#allocation9 + $0x1d0] sm:$0xff]
          %v632 = vld [vmem:[#allocation9 + $0x1d8] sm:$0xff]
          %v633 = vld [vmem:[#allocation9 + $0x1e0] sm:$0xff]
          %v634 = vld [vmem:[#allocation9 + $0x1e8] sm:$0xff]
          %v635 = vld [vmem:[#allocation9 + $0x1f0] sm:$0xff]
          %v636 = vld [vmem:[#allocation9 + $0x1f8] sm:$0xff]
          %v637 = vld [vmem:[#allocation9 + $0x200] sm:$0xff]
          %v638 = vld [vmem:[#allocation9 + $0x208] sm:$0xff]
          %v639 = vld [vmem:[#allocation9 + $0x210] sm:$0xff]
          %v640 = vld [vmem:[#allocation9 + $0x218] sm:$0xff]
          %v641 = vld [vmem:[#allocation9 + $0x220] sm:$0xff]
          %v642 = vld [vmem:[#allocation9 + $0x228] sm:$0xff]
          %v643 = vld [vmem:[#allocation9 + $0x230] sm:$0xff]
          %v644 = vld [vmem:[#allocation9 + $0x238] sm:$0xff]
          %v645 = vld [vmem:[#allocation9 + $0x240] sm:$0xff]
          %v646 = vld [vmem:[#allocation9 + $0x248] sm:$0xff]
          %v647 = vld [vmem:[#allocation9 + $0x250] sm:$0xff]
          %v648 = vld [vmem:[#allocation9 + $0x258] sm:$0xff]
          %v649 = vld [vmem:[#allocation9 + $0x260] sm:$0xff]
          %v650 = vld [vmem:[#allocation9 + $0x268] sm:$0xff]
          %v651 = vld [vmem:[#allocation9 + $0x270] sm:$0xff]
          %v652 = vld [vmem:[#allocation9 + $0x278] sm:$0xff]
          %v653 = vld [vmem:[#allocation9 + $0x280] sm:$0xff]
          %v654 = vld [vmem:[#allocation9 + $0x288] sm:$0xff]
          %v655 = vld [vmem:[#allocation9 + $0x290] sm:$0xff]
          %v656 = vld [vmem:[#allocation9 + $0x298] sm:$0xff]
          %v657 = vld [vmem:[#allocation9 + $0x2a0] sm:$0xff]
          %v658 = vld [vmem:[#allocation9 + $0x2a8] sm:$0xff]
          %v659 = vld [vmem:[#allocation9 + $0x2b0] sm:$0xff]
          %v660 = vld [vmem:[#allocation9 + $0x2b8] sm:$0xff]
          %v661 = vld [vmem:[#allocation9 + $0x2c0] sm:$0xff]
          %v662 = vld [vmem:[#allocation9 + $0x2c8] sm:$0xff]
          %v663 = vld [vmem:[#allocation9 + $0x2d0] sm:$0xff]
          %v664 = vld [vmem:[#allocation9 + $0x2d8] sm:$0xff]
          %v665 = vld [vmem:[#allocation9 + $0x2e0] sm:$0xff]
          %v666 = vld [vmem:[#allocation9 + $0x2e8] sm:$0xff]
          %v667 = vld [vmem:[#allocation9 + $0x2f0] sm:$0xff]
          %v668 = vld [vmem:[#allocation9 + $0x2f8] sm:$0xff]
          %v669 = vld [vmem:[#allocation9 + $0x300] sm:$0xff]
          %v670 = vld [vmem:[#allocation9 + $0x308] sm:$0xff]
          %v671 = vld [vmem:[#allocation9 + $0x310] sm:$0xff]
          %v672 = vld [vmem:[#allocation9 + $0x318] sm:$0xff]
          %v673 = vld [vmem:[#allocation9 + $0x320] sm:$0xff]
          %v674 = vld [vmem:[#allocation9 + $0x328] sm:$0xff]
          %v675 = vld [vmem:[#allocation9 + $0x330] sm:$0xff]
          %v676 = vld [vmem:[#allocation9 + $0x338] sm:$0xff]
          %v677 = vld [vmem:[#allocation9 + $0x340] sm:$0xff]
          %v678 = vld [vmem:[#allocation9 + $0x348] sm:$0xff]
          %v679 = vld [vmem:[#allocation9 + $0x350] sm:$0xff]
          %v680 = vld [vmem:[#allocation9 + $0x358] sm:$0xff]
          %v681 = vld [vmem:[#allocation9 + $0x360] sm:$0xff]
          %v682 = vld [vmem:[#allocation9 + $0x368] sm:$0xff]
          %v683 = vld [vmem:[#allocation9 + $0x370] sm:$0xff]
          %v684 = vld [vmem:[#allocation9 + $0x378] sm:$0xff]
          %v685 = vld [vmem:[#allocation9 + $0x380] sm:$0xff]
          %v686 = vld [vmem:[#allocation9 + $0x388] sm:$0xff]
          %v687 = vld [vmem:[#allocation9 + $0x390] sm:$0xff]
          %v688 = vld [vmem:[#allocation9 + $0x398] sm:$0xff]
          %v689 = vld [vmem:[#allocation9 + $0x3a0] sm:$0xff]
          %v690 = vld [vmem:[#allocation9 + $0x3a8] sm:$0xff]
          %v691 = vld [vmem:[#allocation9 + $0x3b0] sm:$0xff]
          %v692 = vld [vmem:[#allocation9 + $0x3b8] sm:$0xff]
          %v693 = vld [vmem:[#allocation9 + $0x3c0] sm:$0xff]
          %v694 = vld [vmem:[#allocation9 + $0x3c8] sm:$0xff]
          %v695 = vld [vmem:[#allocation9 + $0x3d0] sm:$0xff]
          %v696 = vld [vmem:[#allocation9 + $0x3d8] sm:$0xff]
          %v697 = vld [vmem:[#allocation9 + $0x3e0] sm:$0xff]
          %v698 = vld [vmem:[#allocation9 + $0x3e8] sm:$0xff]
          %v699 = vld [vmem:[#allocation9 + $0x3f0] sm:$0xff]
          %v700 = vld [vmem:[#allocation9 + $0x3f8] sm:$0xff]
          %v701 = vld [vmem:[#allocation9 + $0x400] sm:$0xff]
          %v702 = vld [vmem:[#allocation9 + $0x408] sm:$0xff]
          %v703 = vld [vmem:[#allocation9 + $0x410] sm:$0xff]
          %v704 = vld [vmem:[#allocation9 + $0x418] sm:$0xff]
          %v705 = vld [vmem:[#allocation9 + $0x420] sm:$0xff]
          %v706 = vld [vmem:[#allocation9 + $0x428] sm:$0xff]
          %v707 = vld [vmem:[#allocation9 + $0x430] sm:$0xff]
          %v708 = vld [vmem:[#allocation9 + $0x438] sm:$0xff]
          %v709 = vld [vmem:[#allocation9 + $0x440] sm:$0xff]
          %v710 = vld [vmem:[#allocation9 + $0x448] sm:$0xff]
          %v711 = vld [vmem:[#allocation9 + $0x450] sm:$0xff]
          %v712 = vld [vmem:[#allocation9 + $0x458] sm:$0xff]
          %v713 = vld [vmem:[#allocation9 + $0x460] sm:$0xff]
          %v714 = vld [vmem:[#allocation9 + $0x468] sm:$0xff]
          %v715 = vld [vmem:[#allocation9 + $0x470] sm:$0xff]
          %v716 = vld [vmem:[#allocation9 + $0x478] sm:$0xff]
          %v717 = vld [vmem:[#allocation9 + $0x480] sm:$0xff]
          %v718 = vld [vmem:[#allocation9 + $0x488] sm:$0xff]
          %v719 = vld [vmem:[#allocation9 + $0x490] sm:$0xff]
          %v720 = vld [vmem:[#allocation9 + $0x498] sm:$0xff]
          %v721 = vld [vmem:[#allocation9 + $0x4a0] sm:$0xff]
          %v722 = vld [vmem:[#allocation9 + $0x4a8] sm:$0xff]
          %v723 = vld [vmem:[#allocation9 + $0x4b0] sm:$0xff]
          %v724 = vld [vmem:[#allocation9 + $0x4b8] sm:$0xff]
          %v725 = vld [vmem:[#allocation9 + $0x4c0] sm:$0xff]
          %v726 = vld [vmem:[#allocation9 + $0x4c8] sm:$0xff]
          %v727 = vld [vmem:[#allocation9 + $0x4d0] sm:$0xff]
          %v728 = vld [vmem:[#allocation9 + $0x4d8] sm:$0xff]
          %v729 = vld [vmem:[#allocation9 + $0x4e0] sm:$0xff]
          %v730 = vld [vmem:[#allocation9 + $0x4e8] sm:$0xff]
          %v731 = vld [vmem:[#allocation9 + $0x4f0] sm:$0xff]
          %v732 = vld [vmem:[#allocation9 + $0x4f8] sm:$0xff]
          %v733 = vld [vmem:[#allocation9 + $0x500] sm:$0xff]
          %v734 = vld [vmem:[#allocation9 + $0x508] sm:$0xff]
          %v735 = vld [vmem:[#allocation9 + $0x510] sm:$0xff]
          %v736 = vld [vmem:[#allocation9 + $0x518] sm:$0xff]
          %v737 = vld [vmem:[#allocation9 + $0x520] sm:$0xff]
          %v738 = vld [vmem:[#allocation9 + $0x528] sm:$0xff]
          %v739 = vld [vmem:[#allocation9 + $0x530] sm:$0xff]
          %v740 = vld [vmem:[#allocation9 + $0x538] sm:$0xff]
          %v741 = vld [vmem:[#allocation9 + $0x540] sm:$0xff]
          %v742 = vld [vmem:[#allocation9 + $0x548] sm:$0xff]
          %v743 = vld [vmem:[#allocation9 + $0x550] sm:$0xff]
          %v744 = vld [vmem:[#allocation9 + $0x558] sm:$0xff]
          %v745 = vld [vmem:[#allocation9 + $0x560] sm:$0xff]
          %v746 = vld [vmem:[#allocation9 + $0x568] sm:$0xff]
          %v747 = vld [vmem:[#allocation9 + $0x570] sm:$0xff]
          %v748 = vld [vmem:[#allocation9 + $0x578] sm:$0xff]
          %v749 = vld [vmem:[#allocation9 + $0x580] sm:$0xff]
          %v750 = vld [vmem:[#allocation9 + $0x588] sm:$0xff]
          %v751 = vld [vmem:[#allocation9 + $0x590] sm:$0xff]
          %v752 = vld [vmem:[#allocation9 + $0x598] sm:$0xff]
          %v753 = vld [vmem:[#allocation9 + $0x5a0] sm:$0xff]
          %v754 = vld [vmem:[#allocation9 + $0x5a8] sm:$0xff]
          %v755 = vld [vmem:[#allocation9 + $0x5b0] sm:$0xff]
          %v756 = vld [vmem:[#allocation9 + $0x5b8] sm:$0xff]
          %v757 = vld [vmem:[#allocation9 + $0x5c0] sm:$0xff]
          %v758 = vld [vmem:[#allocation9 + $0x5c8] sm:$0xff]
          %v759 = vld [vmem:[#allocation9 + $0x5d0] sm:$0xff]
          %v760 = vld [vmem:[#allocation9 + $0x5d8] sm:$0xff]
          %v761 = vld [vmem:[#allocation9 + $0x5e0] sm:$0xff]
          %v762 = vld [vmem:[#allocation9 + $0x5e8] sm:$0xff]
          %v763 = vld [vmem:[#allocation9 + $0x5f0] sm:$0xff]
          %v764 = vld [vmem:[#allocation9 + $0x5f8] sm:$0xff]
          %v765 = vld [vmem:[#allocation9 + $0x600] sm:$0xff]
          %v766 = vld [vmem:[#allocation9 + $0x608] sm:$0xff]
          %v767 = vld [vmem:[#allocation9 + $0x610] sm:$0xff]
          %v768 = vld [vmem:[#allocation9 + $0x618] sm:$0xff]
          %v769 = vld [vmem:[#allocation9 + $0x620] sm:$0xff]
          %v770 = vld [vmem:[#allocation9 + $0x628] sm:$0xff]
          %v771 = vld [vmem:[#allocation9 + $0x630] sm:$0xff]
          %v772 = vld [vmem:[#allocation9 + $0x638] sm:$0xff]
          %v773 = vld [vmem:[#allocation9 + $0x640] sm:$0xff]
          %v774 = vld [vmem:[#allocation9 + $0x648] sm:$0xff]
          %v775 = vld [vmem:[#allocation9 + $0x650] sm:$0xff]
          %v776 = vld [vmem:[#allocation9 + $0x658] sm:$0xff]
          %v777 = vld [vmem:[#allocation9 + $0x660] sm:$0xff]
          %v778 = vld [vmem:[#allocation9 + $0x668] sm:$0xff]
          %v779 = vld [vmem:[#allocation9 + $0x670] sm:$0xff]
          %v780 = vld [vmem:[#allocation9 + $0x678] sm:$0xff]
          %v781 = vld [vmem:[#allocation9 + $0x680] sm:$0xff]
          %v782 = vld [vmem:[#allocation9 + $0x688] sm:$0xff]
          %v783 = vld [vmem:[#allocation9 + $0x690] sm:$0xff]
          %v784 = vld [vmem:[#allocation9 + $0x698] sm:$0xff]
          %v785 = vld [vmem:[#allocation9 + $0x6a0] sm:$0xff]
          %v786 = vld [vmem:[#allocation9 + $0x6a8] sm:$0xff]
          %v787 = vld [vmem:[#allocation9 + $0x6b0] sm:$0xff]
          %v788 = vld [vmem:[#allocation9 + $0x6b8] sm:$0xff]
          %v789 = vld [vmem:[#allocation9 + $0x6c0] sm:$0xff]
          %v790 = vld [vmem:[#allocation9 + $0x6c8] sm:$0xff]
          %v791 = vld [vmem:[#allocation9 + $0x6d0] sm:$0xff]
          %v792 = vld [vmem:[#allocation9 + $0x6d8] sm:$0xff]
          %v793 = vld [vmem:[#allocation9 + $0x6e0] sm:$0xff]
          %v794 = vld [vmem:[#allocation9 + $0x6e8] sm:$0xff]
          %v795 = vld [vmem:[#allocation9 + $0x6f0] sm:$0xff]
          %v796 = vld [vmem:[#allocation9 + $0x6f8] sm:$0xff]
          %v797 = vld [vmem:[#allocation9 + $0x700] sm:$0xff]
          %v798 = vld [vmem:[#allocation9 + $0x708] sm:$0xff]
          %v799 = vld [vmem:[#allocation9 + $0x710] sm:$0xff]
          %v800 = vld [vmem:[#allocation9 + $0x718] sm:$0xff]
          %v801 = vld [vmem:[#allocation9 + $0x720] sm:$0xff]
          %v802 = vld [vmem:[#allocation9 + $0x728] sm:$0xff]
          %v803 = vld [vmem:[#allocation9 + $0x730] sm:$0xff]
          %v804 = vld [vmem:[#allocation9 + $0x738] sm:$0xff]
          %v805 = vld [vmem:[#allocation9 + $0x740] sm:$0xff]
          %v806 = vld [vmem:[#allocation9 + $0x748] sm:$0xff]
          %v807 = vld [vmem:[#allocation9 + $0x750] sm:$0xff]
          %v808 = vld [vmem:[#allocation9 + $0x758] sm:$0xff]
          %v809 = vld [vmem:[#allocation9 + $0x760] sm:$0xff]
          %v810 = vld [vmem:[#allocation9 + $0x768] sm:$0xff]
          %v811 = vld [vmem:[#allocation9 + $0x770] sm:$0xff]
          %v812 = vld [vmem:[#allocation9 + $0x778] sm:$0xff]
          %v813 = vld [vmem:[#allocation9 + $0x780] sm:$0xff]
          %v814 = vld [vmem:[#allocation9 + $0x788] sm:$0xff]
          %v815 = vld [vmem:[#allocation9 + $0x790] sm:$0xff]
          %v816 = vld [vmem:[#allocation9 + $0x798] sm:$0xff]
          %v817 = vld [vmem:[#allocation9 + $0x7a0] sm:$0xff]
          %v818 = vld [vmem:[#allocation9 + $0x7a8] sm:$0xff]
          %v819 = vld [vmem:[#allocation9 + $0x7b0] sm:$0xff]
          %v820 = vld [vmem:[#allocation9 + $0x7b8] sm:$0xff]
          %v821 = vld [vmem:[#allocation9 + $0x7c0] sm:$0xff]
          %v822 = vld [vmem:[#allocation9 + $0x7c8] sm:$0xff]
          %v823 = vld [vmem:[#allocation9 + $0x7d0] sm:$0xff]
          %v824 = vld [vmem:[#allocation9 + $0x7d8] sm:$0xff]
          %v825 = vld [vmem:[#allocation9 + $0x7e0] sm:$0xff]
          %v826 = vld [vmem:[#allocation9 + $0x7e8] sm:$0xff]
          %v827 = vld [vmem:[#allocation9 + $0x7f0] sm:$0xff]
          %v828 = vld [vmem:[#allocation9 + $0x7f8] sm:$0xff]
          %v861 = vunpack.c.l.b16 %v541
          %v862 = vunpack.c.h.b16 %v541
          %v863 = vunpack.c.l.b16 %v542
          %v864 = vunpack.c.h.b16 %v542
          %v865 = vunpack.c.l.b16 %v543
          %v866 = vunpack.c.h.b16 %v543
          %v867 = vunpack.c.l.b16 %v544
          %v868 = vunpack.c.h.b16 %v544
          %v869 = vunpack.c.l.b16 %v545
          %v870 = vunpack.c.h.b16 %v545
          %v871 = vunpack.c.l.b16 %v546
          %v872 = vunpack.c.h.b16 %v546
          %v873 = vunpack.c.l.b16 %v547
          %v874 = vunpack.c.h.b16 %v547
          %v875 = vunpack.c.l.b16 %v548
          %v876 = vunpack.c.h.b16 %v548
          %v877 = vunpack.c.l.b16 %v549
          %v878 = vunpack.c.h.b16 %v549
          %v879 = vunpack.c.l.b16 %v550
          %v880 = vunpack.c.h.b16 %v550
          %v881 = vunpack.c.l.b16 %v551
          %v882 = vunpack.c.h.b16 %v551
          %v883 = vunpack.c.l.b16 %v552
          %v884 = vunpack.c.h.b16 %v552
          %v885 = vunpack.c.l.b16 %v553
          %v886 = vunpack.c.h.b16 %v553
          %v887 = vunpack.c.l.b16 %v554
          %v888 = vunpack.c.h.b16 %v554
          %v889 = vunpack.c.l.b16 %v555
          %v890 = vunpack.c.h.b16 %v555
          %v891 = vunpack.c.l.b16 %v556
          %v892 = vunpack.c.h.b16 %v556
          %v893 = vunpack.c.l.b16 %v557
          %v894 = vunpack.c.h.b16 %v557
          %v895 = vunpack.c.l.b16 %v558
          %v896 = vunpack.c.h.b16 %v558
          %v897 = vunpack.c.l.b16 %v559
          %v898 = vunpack.c.h.b16 %v559
          %v899 = vunpack.c.l.b16 %v560
          %v900 = vunpack.c.h.b16 %v560
          %v901 = vunpack.c.l.b16 %v561
          %v902 = vunpack.c.h.b16 %v561
          %v903 = vunpack.c.l.b16 %v562
          %v904 = vunpack.c.h.b16 %v562
          %v905 = vunpack.c.l.b16 %v563
          %v906 = vunpack.c.h.b16 %v563
          %v907 = vunpack.c.l.b16 %v564
          %v908 = vunpack.c.h.b16 %v564
          %v909 = vunpack.c.l.b16 %v565
          %v910 = vunpack.c.h.b16 %v565
          %v911 = vunpack.c.l.b16 %v566
          %v912 = vunpack.c.h.b16 %v566
          %v913 = vunpack.c.l.b16 %v567
          %v914 = vunpack.c.h.b16 %v567
          %v915 = vunpack.c.l.b16 %v568
          %v916 = vunpack.c.h.b16 %v568
          %v917 = vunpack.c.l.b16 %v569
          %v918 = vunpack.c.h.b16 %v569
          %v919 = vunpack.c.l.b16 %v570
          %v920 = vunpack.c.h.b16 %v570
          %v921 = vunpack.c.l.b16 %v571
          %v922 = vunpack.c.h.b16 %v571
          %v923 = vunpack.c.l.b16 %v572
          %v924 = vunpack.c.h.b16 %v572
          %v925 = vpack.c.b16 %v865, %v861
          %v926 = vpack.c.b16 %v866, %v862
          %v927 = vpack.c.b16 %v867, %v863
          %v928 = vpack.c.b16 %v868, %v864
          %v929 = vpack.c.b16 %v873, %v869
          %v930 = vpack.c.b16 %v874, %v870
          %v931 = vpack.c.b16 %v875, %v871
          %v932 = vpack.c.b16 %v876, %v872
          %v933 = vpack.c.b16 %v881, %v877
          %v934 = vpack.c.b16 %v882, %v878
          %v935 = vpack.c.b16 %v883, %v879
          %v936 = vpack.c.b16 %v884, %v880
          %v937 = vpack.c.b16 %v889, %v885
          %v938 = vpack.c.b16 %v890, %v886
          %v939 = vpack.c.b16 %v891, %v887
          %v940 = vpack.c.b16 %v892, %v888
          %v941 = vpack.c.b16 %v897, %v893
          %v942 = vpack.c.b16 %v898, %v894
          %v943 = vpack.c.b16 %v899, %v895
          %v944 = vpack.c.b16 %v900, %v896
          %v945 = vpack.c.b16 %v905, %v901
          %v946 = vpack.c.b16 %v906, %v902
          %v947 = vpack.c.b16 %v907, %v903
          %v948 = vpack.c.b16 %v908, %v904
          %v949 = vpack.c.b16 %v913, %v909
          %v950 = vpack.c.b16 %v914, %v910
          %v951 = vpack.c.b16 %v915, %v911
          %v952 = vpack.c.b16 %v916, %v912
          %v953 = vpack.c.b16 %v921, %v917
          %v954 = vpack.c.b16 %v922, %v918
          %v955 = vpack.c.b16 %v923, %v919
          %v956 = vpack.c.b16 %v924, %v920
          %v1245 = vunpack.c.l.b16 %v573
          %v1246 = vunpack.c.h.b16 %v573
          %v1247 = vunpack.c.l.b16 %v574
          %v1248 = vunpack.c.h.b16 %v574
          %v1249 = vunpack.c.l.b16 %v575
          %v1250 = vunpack.c.h.b16 %v575
          %v1251 = vunpack.c.l.b16 %v576
          %v1252 = vunpack.c.h.b16 %v576
          %v1253 = vunpack.c.l.b16 %v577
          %v1254 = vunpack.c.h.b16 %v577
          %v1255 = vunpack.c.l.b16 %v578
          %v1256 = vunpack.c.h.b16 %v578
          %v1257 = vunpack.c.l.b16 %v579
          %v1258 = vunpack.c.h.b16 %v579
          %v1259 = vunpack.c.l.b16 %v580
          %v1260 = vunpack.c.h.b16 %v580
          %v1261 = vunpack.c.l.b16 %v581
          %v1262 = vunpack.c.h.b16 %v581
          %v1263 = vunpack.c.l.b16 %v582
          %v1264 = vunpack.c.h.b16 %v582
          %v1265 = vunpack.c.l.b16 %v583
          %v1266 = vunpack.c.h.b16 %v583
          %v1267 = vunpack.c.l.b16 %v584
          %v1268 = vunpack.c.h.b16 %v584
          %v1269 = vunpack.c.l.b16 %v585
          %v1270 = vunpack.c.h.b16 %v585
          %v1271 = vunpack.c.l.b16 %v586
          %v1272 = vunpack.c.h.b16 %v586
          %v1273 = vunpack.c.l.b16 %v587
          %v1274 = vunpack.c.h.b16 %v587
          %v1275 = vunpack.c.l.b16 %v588
          %v1276 = vunpack.c.h.b16 %v588
          %v1277 = vunpack.c.l.b16 %v589
          %v1278 = vunpack.c.h.b16 %v589
          %v1279 = vunpack.c.l.b16 %v590
          %v1280 = vunpack.c.h.b16 %v590
          %v1281 = vunpack.c.l.b16 %v591
          %v1282 = vunpack.c.h.b16 %v591
          %v1283 = vunpack.c.l.b16 %v592
          %v1284 = vunpack.c.h.b16 %v592
          %v1285 = vunpack.c.l.b16 %v593
          %v1286 = vunpack.c.h.b16 %v593
          %v1287 = vunpack.c.l.b16 %v594
          %v1288 = vunpack.c.h.b16 %v594
          %v1289 = vunpack.c.l.b16 %v595
          %v1290 = vunpack.c.h.b16 %v595
          %v1291 = vunpack.c.l.b16 %v596
          %v1292 = vunpack.c.h.b16 %v596
          %v1293 = vunpack.c.l.b16 %v597
          %v1294 = vunpack.c.h.b16 %v597
          %v1295 = vunpack.c.l.b16 %v598
          %v1296 = vunpack.c.h.b16 %v598
          %v1297 = vunpack.c.l.b16 %v599
          %v1298 = vunpack.c.h.b16 %v599
          %v1299 = vunpack.c.l.b16 %v600
          %v1300 = vunpack.c.h.b16 %v600
          %v1301 = vunpack.c.l.b16 %v601
          %v1302 = vunpack.c.h.b16 %v601
          %v1303 = vunpack.c.l.b16 %v602
          %v1304 = vunpack.c.h.b16 %v602
          %v1305 = vunpack.c.l.b16 %v603
          %v1306 = vunpack.c.h.b16 %v603
          %v1307 = vunpack.c.l.b16 %v604
          %v1308 = vunpack.c.h.b16 %v604
          %v1309 = vunpack.c.l.b16 %v605
          %v1310 = vunpack.c.h.b16 %v605
          %v1311 = vunpack.c.l.b16 %v606
          %v1312 = vunpack.c.h.b16 %v606
          %v1313 = vunpack.c.l.b16 %v607
          %v1314 = vunpack.c.h.b16 %v607
          %v1315 = vunpack.c.l.b16 %v608
          %v1316 = vunpack.c.h.b16 %v608
          %v1317 = vunpack.c.l.b16 %v609
          %v1318 = vunpack.c.h.b16 %v609
          %v1319 = vunpack.c.l.b16 %v610
          %v1320 = vunpack.c.h.b16 %v610
          %v1321 = vunpack.c.l.b16 %v611
          %v1322 = vunpack.c.h.b16 %v611
          %v1323 = vunpack.c.l.b16 %v612
          %v1324 = vunpack.c.h.b16 %v612
          %v1325 = vunpack.c.l.b16 %v613
          %v1326 = vunpack.c.h.b16 %v613
          %v1327 = vunpack.c.l.b16 %v614
          %v1328 = vunpack.c.h.b16 %v614
          %v1329 = vunpack.c.l.b16 %v615
          %v1330 = vunpack.c.h.b16 %v615
          %v1331 = vunpack.c.l.b16 %v616
          %v1332 = vunpack.c.h.b16 %v616
          %v1333 = vunpack.c.l.b16 %v617
          %v1334 = vunpack.c.h.b16 %v617
          %v1335 = vunpack.c.l.b16 %v618
          %v1336 = vunpack.c.h.b16 %v618
          %v1337 = vunpack.c.l.b16 %v619
          %v1338 = vunpack.c.h.b16 %v619
          %v1339 = vunpack.c.l.b16 %v620
          %v1340 = vunpack.c.h.b16 %v620
          %v1341 = vunpack.c.l.b16 %v621
          %v1342 = vunpack.c.h.b16 %v621
          %v1343 = vunpack.c.l.b16 %v622
          %v1344 = vunpack.c.h.b16 %v622
          %v1345 = vunpack.c.l.b16 %v623
          %v1346 = vunpack.c.h.b16 %v623
          %v1347 = vunpack.c.l.b16 %v624
          %v1348 = vunpack.c.h.b16 %v624
          %v1349 = vunpack.c.l.b16 %v625
          %v1350 = vunpack.c.h.b16 %v625
          %v1351 = vunpack.c.l.b16 %v626
          %v1352 = vunpack.c.h.b16 %v626
          %v1353 = vunpack.c.l.b16 %v627
          %v1354 = vunpack.c.h.b16 %v627
          %v1355 = vunpack.c.l.b16 %v628
          %v1356 = vunpack.c.h.b16 %v628
          %v1357 = vunpack.c.l.b16 %v629
          %v1358 = vunpack.c.h.b16 %v629
          %v1359 = vunpack.c.l.b16 %v630
          %v1360 = vunpack.c.h.b16 %v630
          %v1361 = vunpack.c.l.b16 %v631
          %v1362 = vunpack.c.h.b16 %v631
          %v1363 = vunpack.c.l.b16 %v632
          %v1364 = vunpack.c.h.b16 %v632
          %v1365 = vunpack.c.l.b16 %v633
          %v1366 = vunpack.c.h.b16 %v633
          %v1367 = vunpack.c.l.b16 %v634
          %v1368 = vunpack.c.h.b16 %v634
          %v1369 = vunpack.c.l.b16 %v635
          %v1370 = vunpack.c.h.b16 %v635
          %v1371 = vunpack.c.l.b16 %v636
          %v1372 = vunpack.c.h.b16 %v636
          %v1373 = vunpack.c.l.b16 %v637
          %v1374 = vunpack.c.h.b16 %v637
          %v1375 = vunpack.c.l.b16 %v638
          %v1376 = vunpack.c.h.b16 %v638
          %v1377 = vunpack.c.l.b16 %v639
          %v1378 = vunpack.c.h.b16 %v639
          %v1379 = vunpack.c.l.b16 %v640
          %v1380 = vunpack.c.h.b16 %v640
          %v1381 = vunpack.c.l.b16 %v641
          %v1382 = vunpack.c.h.b16 %v641
          %v1383 = vunpack.c.l.b16 %v642
          %v1384 = vunpack.c.h.b16 %v642
          %v1385 = vunpack.c.l.b16 %v643
          %v1386 = vunpack.c.h.b16 %v643
          %v1387 = vunpack.c.l.b16 %v644
          %v1388 = vunpack.c.h.b16 %v644
          %v1389 = vunpack.c.l.b16 %v645
          %v1390 = vunpack.c.h.b16 %v645
          %v1391 = vunpack.c.l.b16 %v646
          %v1392 = vunpack.c.h.b16 %v646
          %v1393 = vunpack.c.l.b16 %v647
          %v1394 = vunpack.c.h.b16 %v647
          %v1395 = vunpack.c.l.b16 %v648
          %v1396 = vunpack.c.h.b16 %v648
          %v1397 = vunpack.c.l.b16 %v649
          %v1398 = vunpack.c.h.b16 %v649
          %v1399 = vunpack.c.l.b16 %v650
          %v1400 = vunpack.c.h.b16 %v650
          %v1401 = vunpack.c.l.b16 %v651
          %v1402 = vunpack.c.h.b16 %v651
          %v1403 = vunpack.c.l.b16 %v652
          %v1404 = vunpack.c.h.b16 %v652
          %v1405 = vunpack.c.l.b16 %v653
          %v1406 = vunpack.c.h.b16 %v653
          %v1407 = vunpack.c.l.b16 %v654
          %v1408 = vunpack.c.h.b16 %v654
          %v1409 = vunpack.c.l.b16 %v655
          %v1410 = vunpack.c.h.b16 %v655
          %v1411 = vunpack.c.l.b16 %v656
          %v1412 = vunpack.c.h.b16 %v656
          %v1413 = vunpack.c.l.b16 %v657
          %v1414 = vunpack.c.h.b16 %v657
          %v1415 = vunpack.c.l.b16 %v658
          %v1416 = vunpack.c.h.b16 %v658
          %v1417 = vunpack.c.l.b16 %v659
          %v1418 = vunpack.c.h.b16 %v659
          %v1419 = vunpack.c.l.b16 %v660
          %v1420 = vunpack.c.h.b16 %v660
          %v1421 = vunpack.c.l.b16 %v661
          %v1422 = vunpack.c.h.b16 %v661
          %v1423 = vunpack.c.l.b16 %v662
          %v1424 = vunpack.c.h.b16 %v662
          %v1425 = vunpack.c.l.b16 %v663
          %v1426 = vunpack.c.h.b16 %v663
          %v1427 = vunpack.c.l.b16 %v664
          %v1428 = vunpack.c.h.b16 %v664
          %v1429 = vunpack.c.l.b16 %v665
          %v1430 = vunpack.c.h.b16 %v665
          %v1431 = vunpack.c.l.b16 %v666
          %v1432 = vunpack.c.h.b16 %v666
          %v1433 = vunpack.c.l.b16 %v667
          %v1434 = vunpack.c.h.b16 %v667
          %v1435 = vunpack.c.l.b16 %v668
          %v1436 = vunpack.c.h.b16 %v668
          %v1437 = vunpack.c.l.b16 %v669
          %v1438 = vunpack.c.h.b16 %v669
          %v1439 = vunpack.c.l.b16 %v670
          %v1440 = vunpack.c.h.b16 %v670
          %v1441 = vunpack.c.l.b16 %v671
          %v1442 = vunpack.c.h.b16 %v671
          %v1443 = vunpack.c.l.b16 %v672
          %v1444 = vunpack.c.h.b16 %v672
          %v1445 = vunpack.c.l.b16 %v673
          %v1446 = vunpack.c.h.b16 %v673
          %v1447 = vunpack.c.l.b16 %v674
          %v1448 = vunpack.c.h.b16 %v674
          %v1449 = vunpack.c.l.b16 %v675
          %v1450 = vunpack.c.h.b16 %v675
          %v1451 = vunpack.c.l.b16 %v676
          %v1452 = vunpack.c.h.b16 %v676
          %v1453 = vunpack.c.l.b16 %v677
          %v1454 = vunpack.c.h.b16 %v677
          %v1455 = vunpack.c.l.b16 %v678
          %v1456 = vunpack.c.h.b16 %v678
          %v1457 = vunpack.c.l.b16 %v679
          %v1458 = vunpack.c.h.b16 %v679
          %v1459 = vunpack.c.l.b16 %v680
          %v1460 = vunpack.c.h.b16 %v680
          %v1461 = vunpack.c.l.b16 %v681
          %v1462 = vunpack.c.h.b16 %v681
          %v1463 = vunpack.c.l.b16 %v682
          %v1464 = vunpack.c.h.b16 %v682
          %v1465 = vunpack.c.l.b16 %v683
          %v1466 = vunpack.c.h.b16 %v683
          %v1467 = vunpack.c.l.b16 %v684
          %v1468 = vunpack.c.h.b16 %v684
          %v1469 = vunpack.c.l.b16 %v685
          %v1470 = vunpack.c.h.b16 %v685
          %v1471 = vunpack.c.l.b16 %v686
          %v1472 = vunpack.c.h.b16 %v686
          %v1473 = vunpack.c.l.b16 %v687
          %v1474 = vunpack.c.h.b16 %v687
          %v1475 = vunpack.c.l.b16 %v688
          %v1476 = vunpack.c.h.b16 %v688
          %v1477 = vunpack.c.l.b16 %v689
          %v1478 = vunpack.c.h.b16 %v689
          %v1479 = vunpack.c.l.b16 %v690
          %v1480 = vunpack.c.h.b16 %v690
          %v1481 = vunpack.c.l.b16 %v691
          %v1482 = vunpack.c.h.b16 %v691
          %v1483 = vunpack.c.l.b16 %v692
          %v1484 = vunpack.c.h.b16 %v692
          %v1485 = vunpack.c.l.b16 %v693
          %v1486 = vunpack.c.h.b16 %v693
          %v1487 = vunpack.c.l.b16 %v694
          %v1488 = vunpack.c.h.b16 %v694
          %v1489 = vunpack.c.l.b16 %v695
          %v1490 = vunpack.c.h.b16 %v695
          %v1491 = vunpack.c.l.b16 %v696
          %v1492 = vunpack.c.h.b16 %v696
          %v1493 = vunpack.c.l.b16 %v697
          %v1494 = vunpack.c.h.b16 %v697
          %v1495 = vunpack.c.l.b16 %v698
          %v1496 = vunpack.c.h.b16 %v698
          %v1497 = vunpack.c.l.b16 %v699
          %v1498 = vunpack.c.h.b16 %v699
          %v1499 = vunpack.c.l.b16 %v700
          %v1500 = vunpack.c.h.b16 %v700
          %v1501 = vunpack.c.l.b16 %v701
          %v1502 = vunpack.c.h.b16 %v701
          %v1503 = vunpack.c.l.b16 %v702
          %v1504 = vunpack.c.h.b16 %v702
          %v1505 = vunpack.c.l.b16 %v703
          %v1506 = vunpack.c.h.b16 %v703
          %v1507 = vunpack.c.l.b16 %v704
          %v1508 = vunpack.c.h.b16 %v704
          %v1509 = vunpack.c.l.b16 %v705
          %v1510 = vunpack.c.h.b16 %v705
          %v1511 = vunpack.c.l.b16 %v706
          %v1512 = vunpack.c.h.b16 %v706
          %v1513 = vunpack.c.l.b16 %v707
          %v1514 = vunpack.c.h.b16 %v707
          %v1515 = vunpack.c.l.b16 %v708
          %v1516 = vunpack.c.h.b16 %v708
          %v1517 = vunpack.c.l.b16 %v709
          %v1518 = vunpack.c.h.b16 %v709
          %v1519 = vunpack.c.l.b16 %v710
          %v1520 = vunpack.c.h.b16 %v710
          %v1521 = vunpack.c.l.b16 %v711
          %v1522 = vunpack.c.h.b16 %v711
          %v1523 = vunpack.c.l.b16 %v712
          %v1524 = vunpack.c.h.b16 %v712
          %v1525 = vunpack.c.l.b16 %v713
          %v1526 = vunpack.c.h.b16 %v713
          %v1527 = vunpack.c.l.b16 %v714
          %v1528 = vunpack.c.h.b16 %v714
          %v1529 = vunpack.c.l.b16 %v715
          %v1530 = vunpack.c.h.b16 %v715
          %v1531 = vunpack.c.l.b16 %v716
          %v1532 = vunpack.c.h.b16 %v716
          %v1533 = vunpack.c.l.b16 %v717
          %v1534 = vunpack.c.h.b16 %v717
          %v1535 = vunpack.c.l.b16 %v718
          %v1536 = vunpack.c.h.b16 %v718
          %v1537 = vunpack.c.l.b16 %v719
          %v1538 = vunpack.c.h.b16 %v719
          %v1539 = vunpack.c.l.b16 %v720
          %v1540 = vunpack.c.h.b16 %v720
          %v1541 = vunpack.c.l.b16 %v721
          %v1542 = vunpack.c.h.b16 %v721
          %v1543 = vunpack.c.l.b16 %v722
          %v1544 = vunpack.c.h.b16 %v722
          %v1545 = vunpack.c.l.b16 %v723
          %v1546 = vunpack.c.h.b16 %v723
          %v1547 = vunpack.c.l.b16 %v724
          %v1548 = vunpack.c.h.b16 %v724
          %v1549 = vunpack.c.l.b16 %v725
          %v1550 = vunpack.c.h.b16 %v725
          %v1551 = vunpack.c.l.b16 %v726
          %v1552 = vunpack.c.h.b16 %v726
          %v1553 = vunpack.c.l.b16 %v727
          %v1554 = vunpack.c.h.b16 %v727
          %v1555 = vunpack.c.l.b16 %v728
          %v1556 = vunpack.c.h.b16 %v728
          %v1557 = vunpack.c.l.b16 %v729
          %v1558 = vunpack.c.h.b16 %v729
          %v1559 = vunpack.c.l.b16 %v730
          %v1560 = vunpack.c.h.b16 %v730
          %v1561 = vunpack.c.l.b16 %v731
          %v1562 = vunpack.c.h.b16 %v731
          %v1563 = vunpack.c.l.b16 %v732
          %v1564 = vunpack.c.h.b16 %v732
          %v1565 = vunpack.c.l.b16 %v733
          %v1566 = vunpack.c.h.b16 %v733
          %v1567 = vunpack.c.l.b16 %v734
          %v1568 = vunpack.c.h.b16 %v734
          %v1569 = vunpack.c.l.b16 %v735
          %v1570 = vunpack.c.h.b16 %v735
          %v1571 = vunpack.c.l.b16 %v736
          %v1572 = vunpack.c.h.b16 %v736
          %v1573 = vunpack.c.l.b16 %v737
          %v1574 = vunpack.c.h.b16 %v737
          %v1575 = vunpack.c.l.b16 %v738
          %v1576 = vunpack.c.h.b16 %v738
          %v1577 = vunpack.c.l.b16 %v739
          %v1578 = vunpack.c.h.b16 %v739
          %v1579 = vunpack.c.l.b16 %v740
          %v1580 = vunpack.c.h.b16 %v740
          %v1581 = vunpack.c.l.b16 %v741
          %v1582 = vunpack.c.h.b16 %v741
          %v1583 = vunpack.c.l.b16 %v742
          %v1584 = vunpack.c.h.b16 %v742
          %v1585 = vunpack.c.l.b16 %v743
          %v1586 = vunpack.c.h.b16 %v743
          %v1587 = vunpack.c.l.b16 %v744
          %v1588 = vunpack.c.h.b16 %v744
          %v1589 = vunpack.c.l.b16 %v745
          %v1590 = vunpack.c.h.b16 %v745
          %v1591 = vunpack.c.l.b16 %v746
          %v1592 = vunpack.c.h.b16 %v746
          %v1593 = vunpack.c.l.b16 %v747
          %v1594 = vunpack.c.h.b16 %v747
          %v1595 = vunpack.c.l.b16 %v748
          %v1596 = vunpack.c.h.b16 %v748
          %v1597 = vunpack.c.l.b16 %v749
          %v1598 = vunpack.c.h.b16 %v749
          %v1599 = vunpack.c.l.b16 %v750
          %v1600 = vunpack.c.h.b16 %v750
          %v1601 = vunpack.c.l.b16 %v751
          %v1602 = vunpack.c.h.b16 %v751
          %v1603 = vunpack.c.l.b16 %v752
          %v1604 = vunpack.c.h.b16 %v752
          %v1605 = vunpack.c.l.b16 %v753
          %v1606 = vunpack.c.h.b16 %v753
          %v1607 = vunpack.c.l.b16 %v754
          %v1608 = vunpack.c.h.b16 %v754
          %v1609 = vunpack.c.l.b16 %v755
          %v1610 = vunpack.c.h.b16 %v755
          %v1611 = vunpack.c.l.b16 %v756
          %v1612 = vunpack.c.h.b16 %v756
          %v1613 = vunpack.c.l.b16 %v757
          %v1614 = vunpack.c.h.b16 %v757
          %v1615 = vunpack.c.l.b16 %v758
          %v1616 = vunpack.c.h.b16 %v758
          %v1617 = vunpack.c.l.b16 %v759
          %v1618 = vunpack.c.h.b16 %v759
          %v1619 = vunpack.c.l.b16 %v760
          %v1620 = vunpack.c.h.b16 %v760
          %v1621 = vunpack.c.l.b16 %v761
          %v1622 = vunpack.c.h.b16 %v761
          %v1623 = vunpack.c.l.b16 %v762
          %v1624 = vunpack.c.h.b16 %v762
          %v1625 = vunpack.c.l.b16 %v763
          %v1626 = vunpack.c.h.b16 %v763
          %v1627 = vunpack.c.l.b16 %v764
          %v1628 = vunpack.c.h.b16 %v764
          %v1629 = vunpack.c.l.b16 %v765
          %v1630 = vunpack.c.h.b16 %v765
          %v1631 = vunpack.c.l.b16 %v766
          %v1632 = vunpack.c.h.b16 %v766
          %v1633 = vunpack.c.l.b16 %v767
          %v1634 = vunpack.c.h.b16 %v767
          %v1635 = vunpack.c.l.b16 %v768
          %v1636 = vunpack.c.h.b16 %v768
          %v1637 = vunpack.c.l.b16 %v769
          %v1638 = vunpack.c.h.b16 %v769
          %v1639 = vunpack.c.l.b16 %v770
          %v1640 = vunpack.c.h.b16 %v770
          %v1641 = vunpack.c.l.b16 %v771
          %v1642 = vunpack.c.h.b16 %v771
          %v1643 = vunpack.c.l.b16 %v772
          %v1644 = vunpack.c.h.b16 %v772
          %v1645 = vunpack.c.l.b16 %v773
          %v1646 = vunpack.c.h.b16 %v773
          %v1647 = vunpack.c.l.b16 %v774
          %v1648 = vunpack.c.h.b16 %v774
          %v1649 = vunpack.c.l.b16 %v775
          %v1650 = vunpack.c.h.b16 %v775
          %v1651 = vunpack.c.l.b16 %v776
          %v1652 = vunpack.c.h.b16 %v776
          %v1653 = vunpack.c.l.b16 %v777
          %v1654 = vunpack.c.h.b16 %v777
          %v1655 = vunpack.c.l.b16 %v778
          %v1656 = vunpack.c.h.b16 %v778
          %v1657 = vunpack.c.l.b16 %v779
          %v1658 = vunpack.c.h.b16 %v779
          %v1659 = vunpack.c.l.b16 %v780
          %v1660 = vunpack.c.h.b16 %v780
          %v1661 = vunpack.c.l.b16 %v781
          %v1662 = vunpack.c.h.b16 %v781
          %v1663 = vunpack.c.l.b16 %v782
          %v1664 = vunpack.c.h.b16 %v782
          %v1665 = vunpack.c.l.b16 %v783
          %v1666 = vunpack.c.h.b16 %v783
          %v1667 = vunpack.c.l.b16 %v784
          %v1668 = vunpack.c.h.b16 %v784
          %v1669 = vunpack.c.l.b16 %v785
          %v1670 = vunpack.c.h.b16 %v785
          %v1671 = vunpack.c.l.b16 %v786
          %v1672 = vunpack.c.h.b16 %v786
          %v1673 = vunpack.c.l.b16 %v787
          %v1674 = vunpack.c.h.b16 %v787
          %v1675 = vunpack.c.l.b16 %v788
          %v1676 = vunpack.c.h.b16 %v788
          %v1677 = vunpack.c.l.b16 %v789
          %v1678 = vunpack.c.h.b16 %v789
          %v1679 = vunpack.c.l.b16 %v790
          %v1680 = vunpack.c.h.b16 %v790
          %v1681 = vunpack.c.l.b16 %v791
          %v1682 = vunpack.c.h.b16 %v791
          %v1683 = vunpack.c.l.b16 %v792
          %v1684 = vunpack.c.h.b16 %v792
          %v1685 = vunpack.c.l.b16 %v793
          %v1686 = vunpack.c.h.b16 %v793
          %v1687 = vunpack.c.l.b16 %v794
          %v1688 = vunpack.c.h.b16 %v794
          %v1689 = vunpack.c.l.b16 %v795
          %v1690 = vunpack.c.h.b16 %v795
          %v1691 = vunpack.c.l.b16 %v796
          %v1692 = vunpack.c.h.b16 %v796
          %v1693 = vunpack.c.l.b16 %v797
          %v1694 = vunpack.c.h.b16 %v797
          %v1695 = vunpack.c.l.b16 %v798
          %v1696 = vunpack.c.h.b16 %v798
          %v1697 = vunpack.c.l.b16 %v799
          %v1698 = vunpack.c.h.b16 %v799
          %v1699 = vunpack.c.l.b16 %v800
          %v1700 = vunpack.c.h.b16 %v800
          %v1701 = vunpack.c.l.b16 %v801
          %v1702 = vunpack.c.h.b16 %v801
          %v1703 = vunpack.c.l.b16 %v802
          %v1704 = vunpack.c.h.b16 %v802
          %v1705 = vunpack.c.l.b16 %v803
          %v1706 = vunpack.c.h.b16 %v803
          %v1707 = vunpack.c.l.b16 %v804
          %v1708 = vunpack.c.h.b16 %v804
          %v1709 = vunpack.c.l.b16 %v805
          %v1710 = vunpack.c.h.b16 %v805
          %v1711 = vunpack.c.l.b16 %v806
          %v1712 = vunpack.c.h.b16 %v806
          %v1713 = vunpack.c.l.b16 %v807
          %v1714 = vunpack.c.h.b16 %v807
          %v1715 = vunpack.c.l.b16 %v808
          %v1716 = vunpack.c.h.b16 %v808
          %v1717 = vunpack.c.l.b16 %v809
          %v1718 = vunpack.c.h.b16 %v809
          %v1719 = vunpack.c.l.b16 %v810
          %v1720 = vunpack.c.h.b16 %v810
          %v1721 = vunpack.c.l.b16 %v811
          %v1722 = vunpack.c.h.b16 %v811
          %v1723 = vunpack.c.l.b16 %v812
          %v1724 = vunpack.c.h.b16 %v812
          %v1725 = vunpack.c.l.b16 %v813
          %v1726 = vunpack.c.h.b16 %v813
          %v1727 = vunpack.c.l.b16 %v814
          %v1728 = vunpack.c.h.b16 %v814
          %v1729 = vunpack.c.l.b16 %v815
          %v1730 = vunpack.c.h.b16 %v815
          %v1731 = vunpack.c.l.b16 %v816
          %v1732 = vunpack.c.h.b16 %v816
          %v1733 = vunpack.c.l.b16 %v817
          %v1734 = vunpack.c.h.b16 %v817
          %v1735 = vunpack.c.l.b16 %v818
          %v1736 = vunpack.c.h.b16 %v818
          %v1737 = vunpack.c.l.b16 %v819
          %v1738 = vunpack.c.h.b16 %v819
          %v1739 = vunpack.c.l.b16 %v820
          %v1740 = vunpack.c.h.b16 %v820
          %v1741 = vunpack.c.l.b16 %v821
          %v1742 = vunpack.c.h.b16 %v821
          %v1743 = vunpack.c.l.b16 %v822
          %v1744 = vunpack.c.h.b16 %v822
          %v1745 = vunpack.c.l.b16 %v823
          %v1746 = vunpack.c.h.b16 %v823
          %v1747 = vunpack.c.l.b16 %v824
          %v1748 = vunpack.c.h.b16 %v824
          %v1749 = vunpack.c.l.b16 %v825
          %v1750 = vunpack.c.h.b16 %v825
          %v1751 = vunpack.c.l.b16 %v826
          %v1752 = vunpack.c.h.b16 %v826
          %v1753 = vunpack.c.l.b16 %v827
          %v1754 = vunpack.c.h.b16 %v827
          %v1755 = vunpack.c.l.b16 %v828
          %v1756 = vunpack.c.h.b16 %v828
          %v1757 = vpack.c.b16 %v1253, %v1245
          %v1758 = vpack.c.b16 %v1254, %v1246
          %v1759 = vpack.c.b16 %v1255, %v1247
          %v1760 = vpack.c.b16 %v1256, %v1248
          %v1761 = vpack.c.b16 %v1257, %v1249
          %v1762 = vpack.c.b16 %v1258, %v1250
          %v1763 = vpack.c.b16 %v1259, %v1251
          %v1764 = vpack.c.b16 %v1260, %v1252
          %v1765 = vpack.c.b16 %v1269, %v1261
          %v1766 = vpack.c.b16 %v1270, %v1262
          %v1767 = vpack.c.b16 %v1271, %v1263
          %v1768 = vpack.c.b16 %v1272, %v1264
          %v1769 = vpack.c.b16 %v1273, %v1265
          %v1770 = vpack.c.b16 %v1274, %v1266
          %v1771 = vpack.c.b16 %v1275, %v1267
          %v1772 = vpack.c.b16 %v1276, %v1268
          %v1773 = vpack.c.b16 %v1285, %v1277
          %v1774 = vpack.c.b16 %v1286, %v1278
          %v1775 = vpack.c.b16 %v1287, %v1279
          %v1776 = vpack.c.b16 %v1288, %v1280
          %v1777 = vpack.c.b16 %v1289, %v1281
          %v1778 = vpack.c.b16 %v1290, %v1282
          %v1779 = vpack.c.b16 %v1291, %v1283
          %v1780 = vpack.c.b16 %v1292, %v1284
          %v1781 = vpack.c.b16 %v1301, %v1293
          %v1782 = vpack.c.b16 %v1302, %v1294
          %v1783 = vpack.c.b16 %v1303, %v1295
          %v1784 = vpack.c.b16 %v1304, %v1296
          %v1785 = vpack.c.b16 %v1305, %v1297
          %v1786 = vpack.c.b16 %v1306, %v1298
          %v1787 = vpack.c.b16 %v1307, %v1299
          %v1788 = vpack.c.b16 %v1308, %v1300
          %v1789 = vpack.c.b16 %v1317, %v1309
          %v1790 = vpack.c.b16 %v1318, %v1310
          %v1791 = vpack.c.b16 %v1319, %v1311
          %v1792 = vpack.c.b16 %v1320, %v1312
          %v1793 = vpack.c.b16 %v1321, %v1313
          %v1794 = vpack.c.b16 %v1322, %v1314
          %v1795 = vpack.c.b16 %v1323, %v1315
          %v1796 = vpack.c.b16 %v1324, %v1316
          %v1797 = vpack.c.b16 %v1333, %v1325
          %v1798 = vpack.c.b16 %v1334, %v1326
          %v1799 = vpack.c.b16 %v1335, %v1327
          %v1800 = vpack.c.b16 %v1336, %v1328
          %v1801 = vpack.c.b16 %v1337, %v1329
          %v1802 = vpack.c.b16 %v1338, %v1330
          %v1803 = vpack.c.b16 %v1339, %v1331
          %v1804 = vpack.c.b16 %v1340, %v1332
          %v1805 = vpack.c.b16 %v1349, %v1341
          %v1806 = vpack.c.b16 %v1350, %v1342
          %v1807 = vpack.c.b16 %v1351, %v1343
          %v1808 = vpack.c.b16 %v1352, %v1344
          %v1809 = vpack.c.b16 %v1353, %v1345
          %v1810 = vpack.c.b16 %v1354, %v1346
          %v1811 = vpack.c.b16 %v1355, %v1347
          %v1812 = vpack.c.b16 %v1356, %v1348
          %v1813 = vpack.c.b16 %v1365, %v1357
          %v1814 = vpack.c.b16 %v1366, %v1358
          %v1815 = vpack.c.b16 %v1367, %v1359
          %v1816 = vpack.c.b16 %v1368, %v1360
          %v1817 = vpack.c.b16 %v1369, %v1361
          %v1818 = vpack.c.b16 %v1370, %v1362
          %v1819 = vpack.c.b16 %v1371, %v1363
          %v1820 = vpack.c.b16 %v1372, %v1364
          %v1821 = vpack.c.b16 %v1381, %v1373
          %v1822 = vpack.c.b16 %v1382, %v1374
          %v1823 = vpack.c.b16 %v1383, %v1375
          %v1824 = vpack.c.b16 %v1384, %v1376
          %v1825 = vpack.c.b16 %v1385, %v1377
          %v1826 = vpack.c.b16 %v1386, %v1378
          %v1827 = vpack.c.b16 %v1387, %v1379
          %v1828 = vpack.c.b16 %v1388, %v1380
          %v1829 = vpack.c.b16 %v1397, %v1389
          %v1830 = vpack.c.b16 %v1398, %v1390
          %v1831 = vpack.c.b16 %v1399, %v1391
          %v1832 = vpack.c.b16 %v1400, %v1392
          %v1833 = vpack.c.b16 %v1401, %v1393
          %v1834 = vpack.c.b16 %v1402, %v1394
          %v1835 = vpack.c.b16 %v1403, %v1395
          %v1836 = vpack.c.b16 %v1404, %v1396
          %v1837 = vpack.c.b16 %v1413, %v1405
          %v1838 = vpack.c.b16 %v1414, %v1406
          %v1839 = vpack.c.b16 %v1415, %v1407
          %v1840 = vpack.c.b16 %v1416, %v1408
          %v1841 = vpack.c.b16 %v1417, %v1409
          %v1842 = vpack.c.b16 %v1418, %v1410
          %v1843 = vpack.c.b16 %v1419, %v1411
          %v1844 = vpack.c.b16 %v1420, %v1412
          %v1845 = vpack.c.b16 %v1429, %v1421
          %v1846 = vpack.c.b16 %v1430, %v1422
          %v1847 = vpack.c.b16 %v1431, %v1423
          %v1848 = vpack.c.b16 %v1432, %v1424
          %v1849 = vpack.c.b16 %v1433, %v1425
          %v1850 = vpack.c.b16 %v1434, %v1426
          %v1851 = vpack.c.b16 %v1435, %v1427
          %v1852 = vpack.c.b16 %v1436, %v1428
          %v1853 = vpack.c.b16 %v1445, %v1437
          %v1854 = vpack.c.b16 %v1446, %v1438
          %v1855 = vpack.c.b16 %v1447, %v1439
          %v1856 = vpack.c.b16 %v1448, %v1440
          %v1857 = vpack.c.b16 %v1449, %v1441
          %v1858 = vpack.c.b16 %v1450, %v1442
          %v1859 = vpack.c.b16 %v1451, %v1443
          %v1860 = vpack.c.b16 %v1452, %v1444
          %v1861 = vpack.c.b16 %v1461, %v1453
          %v1862 = vpack.c.b16 %v1462, %v1454
          %v1863 = vpack.c.b16 %v1463, %v1455
          %v1864 = vpack.c.b16 %v1464, %v1456
          %v1865 = vpack.c.b16 %v1465, %v1457
          %v1866 = vpack.c.b16 %v1466, %v1458
          %v1867 = vpack.c.b16 %v1467, %v1459
          %v1868 = vpack.c.b16 %v1468, %v1460
          %v1869 = vpack.c.b16 %v1477, %v1469
          %v1870 = vpack.c.b16 %v1478, %v1470
          %v1871 = vpack.c.b16 %v1479, %v1471
          %v1872 = vpack.c.b16 %v1480, %v1472
          %v1873 = vpack.c.b16 %v1481, %v1473
          %v1874 = vpack.c.b16 %v1482, %v1474
          %v1875 = vpack.c.b16 %v1483, %v1475
          %v1876 = vpack.c.b16 %v1484, %v1476
          %v1877 = vpack.c.b16 %v1493, %v1485
          %v1878 = vpack.c.b16 %v1494, %v1486
          %v1879 = vpack.c.b16 %v1495, %v1487
          %v1880 = vpack.c.b16 %v1496, %v1488
          %v1881 = vpack.c.b16 %v1497, %v1489
          %v1882 = vpack.c.b16 %v1498, %v1490
          %v1883 = vpack.c.b16 %v1499, %v1491
          %v1884 = vpack.c.b16 %v1500, %v1492
          %v1885 = vpack.c.b16 %v1509, %v1501
          %v1886 = vpack.c.b16 %v1510, %v1502
          %v1887 = vpack.c.b16 %v1511, %v1503
          %v1888 = vpack.c.b16 %v1512, %v1504
          %v1889 = vpack.c.b16 %v1513, %v1505
          %v1890 = vpack.c.b16 %v1514, %v1506
          %v1891 = vpack.c.b16 %v1515, %v1507
          %v1892 = vpack.c.b16 %v1516, %v1508
          %v1893 = vpack.c.b16 %v1525, %v1517
          %v1894 = vpack.c.b16 %v1526, %v1518
          %v1895 = vpack.c.b16 %v1527, %v1519
          %v1896 = vpack.c.b16 %v1528, %v1520
          %v1897 = vpack.c.b16 %v1529, %v1521
          %v1898 = vpack.c.b16 %v1530, %v1522
          %v1899 = vpack.c.b16 %v1531, %v1523
          %v1900 = vpack.c.b16 %v1532, %v1524
          %v1901 = vpack.c.b16 %v1541, %v1533
          %v1902 = vpack.c.b16 %v1542, %v1534
          %v1903 = vpack.c.b16 %v1543, %v1535
          %v1904 = vpack.c.b16 %v1544, %v1536
          %v1905 = vpack.c.b16 %v1545, %v1537
          %v1906 = vpack.c.b16 %v1546, %v1538
          %v1907 = vpack.c.b16 %v1547, %v1539
          %v1908 = vpack.c.b16 %v1548, %v1540
          %v1909 = vpack.c.b16 %v1557, %v1549
          %v1910 = vpack.c.b16 %v1558, %v1550
          %v1911 = vpack.c.b16 %v1559, %v1551
          %v1912 = vpack.c.b16 %v1560, %v1552
          %v1913 = vpack.c.b16 %v1561, %v1553
          %v1914 = vpack.c.b16 %v1562, %v1554
          %v1915 = vpack.c.b16 %v1563, %v1555
          %v1916 = vpack.c.b16 %v1564, %v1556
          %v1917 = vpack.c.b16 %v1573, %v1565
          %v1918 = vpack.c.b16 %v1574, %v1566
          %v1919 = vpack.c.b16 %v1575, %v1567
          %v1920 = vpack.c.b16 %v1576, %v1568
          %v1921 = vpack.c.b16 %v1577, %v1569
          %v1922 = vpack.c.b16 %v1578, %v1570
          %v1923 = vpack.c.b16 %v1579, %v1571
          %v1924 = vpack.c.b16 %v1580, %v1572
          %v1925 = vpack.c.b16 %v1589, %v1581
          %v1926 = vpack.c.b16 %v1590, %v1582
          %v1927 = vpack.c.b16 %v1591, %v1583
          %v1928 = vpack.c.b16 %v1592, %v1584
          %v1929 = vpack.c.b16 %v1593, %v1585
          %v1930 = vpack.c.b16 %v1594, %v1586
          %v1931 = vpack.c.b16 %v1595, %v1587
          %v1932 = vpack.c.b16 %v1596, %v1588
          %v1933 = vpack.c.b16 %v1605, %v1597
          %v1934 = vpack.c.b16 %v1606, %v1598
          %v1935 = vpack.c.b16 %v1607, %v1599
          %v1936 = vpack.c.b16 %v1608, %v1600
          %v1937 = vpack.c.b16 %v1609, %v1601
          %v1938 = vpack.c.b16 %v1610, %v1602
          %v1939 = vpack.c.b16 %v1611, %v1603
          %v1940 = vpack.c.b16 %v1612, %v1604
          %v1941 = vpack.c.b16 %v1621, %v1613
          %v1942 = vpack.c.b16 %v1622, %v1614
          %v1943 = vpack.c.b16 %v1623, %v1615
          %v1944 = vpack.c.b16 %v1624, %v1616
          %v1945 = vpack.c.b16 %v1625, %v1617
          %v1946 = vpack.c.b16 %v1626, %v1618
          %v1947 = vpack.c.b16 %v1627, %v1619
          %v1948 = vpack.c.b16 %v1628, %v1620
          %v1949 = vpack.c.b16 %v1637, %v1629
          %v1950 = vpack.c.b16 %v1638, %v1630
          %v1951 = vpack.c.b16 %v1639, %v1631
          %v1952 = vpack.c.b16 %v1640, %v1632
          %v1953 = vpack.c.b16 %v1641, %v1633
          %v1954 = vpack.c.b16 %v1642, %v1634
          %v1955 = vpack.c.b16 %v1643, %v1635
          %v1956 = vpack.c.b16 %v1644, %v1636
          %v1957 = vpack.c.b16 %v1653, %v1645
          %v1958 = vpack.c.b16 %v1654, %v1646
          %v1959 = vpack.c.b16 %v1655, %v1647
          %v1960 = vpack.c.b16 %v1656, %v1648
          %v1961 = vpack.c.b16 %v1657, %v1649
          %v1962 = vpack.c.b16 %v1658, %v1650
          %v1963 = vpack.c.b16 %v1659, %v1651
          %v1964 = vpack.c.b16 %v1660, %v1652
          %v1965 = vpack.c.b16 %v1669, %v1661
          %v1966 = vpack.c.b16 %v1670, %v1662
          %v1967 = vpack.c.b16 %v1671, %v1663
          %v1968 = vpack.c.b16 %v1672, %v1664
          %v1969 = vpack.c.b16 %v1673, %v1665
          %v1970 = vpack.c.b16 %v1674, %v1666
          %v1971 = vpack.c.b16 %v1675, %v1667
          %v1972 = vpack.c.b16 %v1676, %v1668
          %v1973 = vpack.c.b16 %v1685, %v1677
          %v1974 = vpack.c.b16 %v1686, %v1678
          %v1975 = vpack.c.b16 %v1687, %v1679
          %v1976 = vpack.c.b16 %v1688, %v1680
          %v1977 = vpack.c.b16 %v1689, %v1681
          %v1978 = vpack.c.b16 %v1690, %v1682
          %v1979 = vpack.c.b16 %v1691, %v1683
          %v1980 = vpack.c.b16 %v1692, %v1684
          %v1981 = vpack.c.b16 %v1701, %v1693
          %v1982 = vpack.c.b16 %v1702, %v1694
          %v1983 = vpack.c.b16 %v1703, %v1695
          %v1984 = vpack.c.b16 %v1704, %v1696
          %v1985 = vpack.c.b16 %v1705, %v1697
          %v1986 = vpack.c.b16 %v1706, %v1698
          %v1987 = vpack.c.b16 %v1707, %v1699
          %v1988 = vpack.c.b16 %v1708, %v1700
          %v1989 = vpack.c.b16 %v1717, %v1709
          %v1990 = vpack.c.b16 %v1718, %v1710
          %v1991 = vpack.c.b16 %v1719, %v1711
          %v1992 = vpack.c.b16 %v1720, %v1712
          %v1993 = vpack.c.b16 %v1721, %v1713
          %v1994 = vpack.c.b16 %v1722, %v1714
          %v1995 = vpack.c.b16 %v1723, %v1715
          %v1996 = vpack.c.b16 %v1724, %v1716
          %v1997 = vpack.c.b16 %v1733, %v1725
          %v1998 = vpack.c.b16 %v1734, %v1726
          %v1999 = vpack.c.b16 %v1735, %v1727
          %v2000 = vpack.c.b16 %v1736, %v1728
          %v2001 = vpack.c.b16 %v1737, %v1729
          %v2002 = vpack.c.b16 %v1738, %v1730
          %v2003 = vpack.c.b16 %v1739, %v1731
          %v2004 = vpack.c.b16 %v1740, %v1732
          %v2005 = vpack.c.b16 %v1749, %v1741
          %v2006 = vpack.c.b16 %v1750, %v1742
          %v2007 = vpack.c.b16 %v1751, %v1743
          %v2008 = vpack.c.b16 %v1752, %v1744
          %v2009 = vpack.c.b16 %v1753, %v1745
          %v2010 = vpack.c.b16 %v1754, %v1746
          %v2011 = vpack.c.b16 %v1755, %v1747
          %v2012 = vpack.c.b16 %v1756, %v1748
          %2269 = vmatprep.subr.bf16.mxu0 %v1758
          %2270 = vmatpush1.bf16.msra.mxu0 %v1757
          %2271 = vmatprep.subr.bf16.mxu0 %v1766
          %2272 = vmatpush1.bf16.msra.mxu0 %v1765
          %2273 = vmatprep.subr.bf16.mxu0 %v1774
          %2274 = vmatpush1.bf16.msra.mxu0 %v1773
          %2275 = vmatprep.subr.bf16.mxu0 %v1782
          %2276 = vmatpush1.bf16.msra.mxu0 %v1781
          %2277 = vmatprep.subr.bf16.mxu0 %v1790
          %2278 = vmatpush1.bf16.msra.mxu0 %v1789
          %2279 = vmatprep.subr.bf16.mxu0 %v1798
          %2280 = vmatpush1.bf16.msra.mxu0 %v1797
          %2281 = vmatprep.subr.bf16.mxu0 %v1806
          %2282 = vmatpush1.bf16.msra.mxu0 %v1805
          %2283 = vmatprep.subr.bf16.mxu0 %v1814
          %2284 = vmatpush1.bf16.msra.mxu0 %v1813
          %2285 = vmatprep.subr.bf16.mxu0 %v1822
          %2286 = vmatpush1.bf16.msra.mxu0 %v1821
          %2287 = vmatprep.subr.bf16.mxu0 %v1830
          %2288 = vmatpush1.bf16.msra.mxu0 %v1829
          %2289 = vmatprep.subr.bf16.mxu0 %v1838
          %2290 = vmatpush1.bf16.msra.mxu0 %v1837
          %2291 = vmatprep.subr.bf16.mxu0 %v1846
          %2292 = vmatpush1.bf16.msra.mxu0 %v1845
          %2293 = vmatprep.subr.bf16.mxu0 %v1854
          %2294 = vmatpush1.bf16.msra.mxu0 %v1853
          %2295 = vmatprep.subr.bf16.mxu0 %v1862
          %2296 = vmatpush1.bf16.msra.mxu0 %v1861
          %2297 = vmatprep.subr.bf16.mxu0 %v1870
          %2298 = vmatpush1.bf16.msra.mxu0 %v1869
          %2299 = vmatprep.subr.bf16.mxu0 %v1878
          %2300 = vmatpush1.bf16.msra.mxu0 %v1877
          %2301 = vmatprep.mubr.bf16.mxu0 %v926
          %2302 = vmatmul.mubr.bf16.gmra.mrb[0].mxu0 %v925
          %v2303 = vpop.f32.mrb[0].mxu0
          %v2304 = vadd.f32 0.0, %v2303
          %v2305 = vpop.f32.mrb[0].mxu0
          %v2306 = vadd.f32 0.0, %v2305
          %v2307 = vpop.f32.mrb[0].mxu0
          %v2308 = vadd.f32 0.0, %v2307
          %v2309 = vpop.f32.mrb[0].mxu0
          %v2310 = vadd.f32 0.0, %v2309
          %2311 = vmatprep.mubr.bf16.mxu0 %v930
          %2312 = vmatmul.mubr.bf16.gmra.mrb[0].mxu0 %v929
          %v2313 = vpop.f32.mrb[0].mxu0
          %v2314 = vadd.f32 0.0, %v2313
          %v2315 = vpop.f32.mrb[0].mxu0
          %v2316 = vadd.f32 0.0, %v2315
          %v2317 = vpop.f32.mrb[0].mxu0
          %v2318 = vadd.f32 0.0, %v2317
          %v2319 = vpop.f32.mrb[0].mxu0
          %v2320 = vadd.f32 0.0, %v2319
          %2321 = vmatprep.mubr.bf16.mxu0 %v934
          %2322 = vmatmul.mubr.bf16.gmra.mrb[0].mxu0 %v933
          %v2323 = vpop.f32.mrb[0].mxu0
          %v2324 = vadd.f32 0.0, %v2323
          %v2325 = vpop.f32.mrb[0].mxu0
          %v2326 = vadd.f32 0.0, %v2325
          %v2327 = vpop.f32.mrb[0].mxu0
          %v2328 = vadd.f32 0.0, %v2327
          %v2329 = vpop.f32.mrb[0].mxu0
          %v2330 = vadd.f32 0.0, %v2329
          %2331 = vmatprep.mubr.bf16.mxu0 %v938
          %2332 = vmatmul.mubr.bf16.gmra.mrb[0].mxu0 %v937
          %v2333 = vpop.f32.mrb[0].mxu0
          %v2334 = vadd.f32 0.0, %v2333
          %v2335 = vpop.f32.mrb[0].mxu0
          %v2336 = vadd.f32 0.0, %v2335
          %v2337 = vpop.f32.mrb[0].mxu0
          %v2338 = vadd.f32 0.0, %v2337
          %v2339 = vpop.f32.mrb[0].mxu0
          %v2340 = vadd.f32 0.0, %v2339
          %2341 = vmatprep.mubr.bf16.mxu0 %v942
          %2342 = vmatmul.mubr.bf16.gmra.mrb[0].mxu0 %v941
          %v2343 = vpop.f32.mrb[0].mxu0
          %v2344 = vadd.f32 0.0, %v2343
          %v2345 = vpop.f32.mrb[0].mxu0
          %v2346 = vadd.f32 0.0, %v2345
          %v2347 = vpop.f32.mrb[0].mxu0
          %v2348 = vadd.f32 0.0, %v2347
          %v2349 = vpop.f32.mrb[0].mxu0
          %v2350 = vadd.f32 0.0, %v2349
          %2351 = vmatprep.mubr.bf16.mxu0 %v946
          %2352 = vmatmul.mubr.bf16.gmra.mrb[0].mxu0 %v945
          %v2353 = vpop.f32.mrb[0].mxu0
          %v2354 = vadd.f32 0.0, %v2353
          %v2355 = vpop.f32.mrb[0].mxu0
          %v2356 = vadd.f32 0.0, %v2355
          %v2357 = vpop.f32.mrb[0].mxu0
          %v2358 = vadd.f32 0.0, %v2357
          %v2359 = vpop.f32.mrb[0].mxu0
          %v2360 = vadd.f32 0.0, %v2359
          %2361 = vmatprep.mubr.bf16.mxu0 %v950
          %2362 = vmatmul.mubr.bf16.gmra.mrb[0].mxu0 %v949
          %v2363 = vpop.f32.mrb[0].mxu0
          %v2364 = vadd.f32 0.0, %v2363
          %v2365 = vpop.f32.mrb[0].mxu0
          %v2366 = vadd.f32 0.0, %v2365
          %v2367 = vpop.f32.mrb[0].mxu0
          %v2368 = vadd.f32 0.0, %v2367
          %v2369 = vpop.f32.mrb[0].mxu0
          %v2370 = vadd.f32 0.0, %v2369
          %2371 = vmatprep.mubr.bf16.mxu0 %v954
          %2372 = vmatmul.mubr.bf16.gmra.mrb[0].mxu0 %v953
          %v2373 = vpop.f32.mrb[0].mxu0
          %v2374 = vadd.f32 0.0, %v2373
          %v2375 = vpop.f32.mrb[0].mxu0
          %v2376 = vadd.f32 0.0, %v2375
          %v2377 = vpop.f32.mrb[0].mxu0
          %v2378 = vadd.f32 0.0, %v2377
          %v2379 = vpop.f32.mrb[0].mxu0
          %v2380 = vadd.f32 0.0, %v2379
          %2381 = vdwg.mxu0
          %2382 = vmatprep.subr.bf16.mxu0 %v1886
          %2383 = vmatpush1.bf16.msra.mxu0 %v1885
          %2384 = vmatprep.subr.bf16.mxu0 %v1894
          %2385 = vmatpush1.bf16.msra.mxu0 %v1893
          %2386 = vmatprep.subr.bf16.mxu0 %v1902
          %2387 = vmatpush1.bf16.msra.mxu0 %v1901
          %2388 = vmatprep.subr.bf16.mxu0 %v1910
          %2389 = vmatpush1.bf16.msra.mxu0 %v1909
          %2390 = vmatprep.subr.bf16.mxu0 %v1918
          %2391 = vmatpush1.bf16.msra.mxu0 %v1917
          %2392 = vmatprep.subr.bf16.mxu0 %v1926
          %2393 = vmatpush1.bf16.msra.mxu0 %v1925
          %2394 = vmatprep.subr.bf16.mxu0 %v1934
          %2395 = vmatpush1.bf16.msra.mxu0 %v1933
          %2396 = vmatprep.subr.bf16.mxu0 %v1942
          %2397 = vmatpush1.bf16.msra.mxu0 %v1941
          %2398 = vmatprep.subr.bf16.mxu0 %v1950
          %2399 = vmatpush1.bf16.msra.mxu0 %v1949
          %2400 = vmatprep.subr.bf16.mxu0 %v1958
          %2401 = vmatpush1.bf16.msra.mxu0 %v1957
          %2402 = vmatprep.subr.bf16.mxu0 %v1966
          %2403 = vmatpush1.bf16.msra.mxu0 %v1965
          %2404 = vmatprep.subr.bf16.mxu0 %v1974
          %2405 = vmatpush1.bf16.msra.mxu0 %v1973
          %2406 = vmatprep.subr.bf16.mxu0 %v1982
          %2407 = vmatpush1.bf16.msra.mxu0 %v1981
          %2408 = vmatprep.subr.bf16.mxu0 %v1990
          %2409 = vmatpush1.bf16.msra.mxu0 %v1989
          %2410 = vmatprep.subr.bf16.mxu0 %v1998
          %2411 = vmatpush1.bf16.msra.mxu0 %v1997
          %2412 = vmatprep.subr.bf16.mxu0 %v2006
          %2413 = vmatpush1.bf16.msra.mxu0 %v2005
          %2414 = vmatprep.mubr.bf16.mxu0 %v928
          %2415 = vmatmul.mubr.bf16.gmra.mrb[0].mxu0 %v927
          %v2416 = vpop.f32.mrb[0].mxu0
          %v2417 = vadd.f32 %v2304, %v2416
          %v2418 = vpop.f32.mrb[0].mxu0
          %v2419 = vadd.f32 %v2306, %v2418
          %v2420 = vpop.f32.mrb[0].mxu0
          %v2421 = vadd.f32 %v2308, %v2420
          %v2422 = vpop.f32.mrb[0].mxu0
          %v2423 = vadd.f32 %v2310, %v2422
          %2424 = vmatprep.mubr.bf16.mxu0 %v932
          %2425 = vmatmul.mubr.bf16.gmra.mrb[0].mxu0 %v931
          %v2426 = vpop.f32.mrb[0].mxu0
          %v2427 = vadd.f32 %v2314, %v2426
          %v2428 = vpop.f32.mrb[0].mxu0
          %v2429 = vadd.f32 %v2316, %v2428
          %v2430 = vpop.f32.mrb[0].mxu0
          %v2431 = vadd.f32 %v2318, %v2430
          %v2432 = vpop.f32.mrb[0].mxu0
          %v2433 = vadd.f32 %v2320, %v2432
          %2434 = vmatprep.mubr.bf16.mxu0 %v936
          %2435 = vmatmul.mubr.bf16.gmra.mrb[0].mxu0 %v935
          %v2436 = vpop.f32.mrb[0].mxu0
          %v2437 = vadd.f32 %v2324, %v2436
          %v2438 = vpop.f32.mrb[0].mxu0
          %v2439 = vadd.f32 %v2326, %v2438
          %v2440 = vpop.f32.mrb[0].mxu0
          %v2441 = vadd.f32 %v2328, %v2440
          %v2442 = vpop.f32.mrb[0].mxu0
          %v2443 = vadd.f32 %v2330, %v2442
          %2444 = vmatprep.mubr.bf16.mxu0 %v940
          %2445 = vmatmul.mubr.bf16.gmra.mrb[0].mxu0 %v939
          %v2446 = vpop.f32.mrb[0].mxu0
          %v2447 = vadd.f32 %v2334, %v2446
          %v2448 = vpop.f32.mrb[0].mxu0
          %v2449 = vadd.f32 %v2336, %v2448
          %v2450 = vpop.f32.mrb[0].mxu0
          %v2451 = vadd.f32 %v2338, %v2450
          %v2452 = vpop.f32.mrb[0].mxu0
          %v2453 = vadd.f32 %v2340, %v2452
          %2454 = vmatprep.mubr.bf16.mxu0 %v944
          %2455 = vmatmul.mubr.bf16.gmra.mrb[0].mxu0 %v943
          %v2456 = vpop.f32.mrb[0].mxu0
          %v2457 = vadd.f32 %v2344, %v2456
          %v2458 = vpop.f32.mrb[0].mxu0
          %v2459 = vadd.f32 %v2346, %v2458
          %v2460 = vpop.f32.mrb[0].mxu0
          %v2461 = vadd.f32 %v2348, %v2460
          %v2462 = vpop.f32.mrb[0].mxu0
          %v2463 = vadd.f32 %v2350, %v2462
          %2464 = vmatprep.mubr.bf16.mxu0 %v948
          %2465 = vmatmul.mubr.bf16.gmra.mrb[0].mxu0 %v947
          %v2466 = vpop.f32.mrb[0].mxu0
          %v2467 = vadd.f32 %v2354, %v2466
          %v2468 = vpop.f32.mrb[0].mxu0
          %v2469 = vadd.f32 %v2356, %v2468
          %v2470 = vpop.f32.mrb[0].mxu0
          %v2471 = vadd.f32 %v2358, %v2470
          %v2472 = vpop.f32.mrb[0].mxu0
          %v2473 = vadd.f32 %v2360, %v2472
          %2474 = vmatprep.mubr.bf16.mxu0 %v952
          %2475 = vmatmul.mubr.bf16.gmra.mrb[0].mxu0 %v951
          %v2476 = vpop.f32.mrb[0].mxu0
          %v2477 = vadd.f32 %v2364, %v2476
          %v2478 = vpop.f32.mrb[0].mxu0
          %v2479 = vadd.f32 %v2366, %v2478
          %v2480 = vpop.f32.mrb[0].mxu0
          %v2481 = vadd.f32 %v2368, %v2480
          %v2482 = vpop.f32.mrb[0].mxu0
          %v2483 = vadd.f32 %v2370, %v2482
          %2484 = vmatprep.mubr.bf16.mxu0 %v956
          %2485 = vmatmul.mubr.bf16.gmra.mrb[0].mxu0 %v955
          %v2486 = vpop.f32.mrb[0].mxu0
          %v2487 = vadd.f32 %v2374, %v2486
          %v2488 = vpop.f32.mrb[0].mxu0
          %v2489 = vadd.f32 %v2376, %v2488
          %v2490 = vpop.f32.mrb[0].mxu0
          %v2491 = vadd.f32 %v2378, %v2490
          %v2492 = vpop.f32.mrb[0].mxu0
          %v2493 = vadd.f32 %v2380, %v2492
          %2494 = vdwg.mxu0
          %2495 = vmatprep.subr.bf16.mxu0 %v1760
          %2496 = vmatpush1.bf16.msra.mxu0 %v1759
          %2497 = vmatprep.subr.bf16.mxu0 %v1768
          %2498 = vmatpush1.bf16.msra.mxu0 %v1767
          %2499 = vmatprep.subr.bf16.mxu0 %v1776
          %2500 = vmatpush1.bf16.msra.mxu0 %v1775
          %2501 = vmatprep.subr.bf16.mxu0 %v1784
          %2502 = vmatpush1.bf16.msra.mxu0 %v1783
          %2503 = vmatprep.subr.bf16.mxu0 %v1792
          %2504 = vmatpush1.bf16.msra.mxu0 %v1791
          %2505 = vmatprep.subr.bf16.mxu0 %v1800
          %2506 = vmatpush1.bf16.msra.mxu0 %v1799
          %2507 = vmatprep.subr.bf16.mxu0 %v1808
          %2508 = vmatpush1.bf16.msra.mxu0 %v1807
          %2509 = vmatprep.subr.bf16.mxu0 %v1816
          %2510 = vmatpush1.bf16.msra.mxu0 %v1815
          %2511 = vmatprep.subr.bf16.mxu0 %v1824
          %2512 = vmatpush1.bf16.msra.mxu0 %v1823
          %2513 = vmatprep.subr.bf16.mxu0 %v1832
          %2514 = vmatpush1.bf16.msra.mxu0 %v1831
          %2515 = vmatprep.subr.bf16.mxu0 %v1840
          %2516 = vmatpush1.bf16.msra.mxu0 %v1839
          %2517 = vmatprep.subr.bf16.mxu0 %v1848
          %2518 = vmatpush1.bf16.msra.mxu0 %v1847
          %2519 = vmatprep.subr.bf16.mxu0 %v1856
          %2520 = vmatpush1.bf16.msra.mxu0 %v1855
          %2521 = vmatprep.subr.bf16.mxu0 %v1864
          %2522 = vmatpush1.bf16.msra.mxu0 %v1863
          %2523 = vmatprep.subr.bf16.mxu0 %v1872
          %2524 = vmatpush1.bf16.msra.mxu0 %v1871
          %2525 = vmatprep.subr.bf16.mxu0 %v1880
          %2526 = vmatpush1.bf16.msra.mxu0 %v1879
          %2527 = vmatprep.mubr.bf16.mxu0 %v926
          %2528 = vmatmul.mubr.bf16.gmra.mrb[0].mxu0 %v925
          %v2529 = vpop.f32.mrb[0].mxu0
          %v2530 = vadd.f32 0.0, %v2529
          %v2531 = vpop.f32.mrb[0].mxu0
          %v2532 = vadd.f32 0.0, %v2531
          %v2533 = vpop.f32.mrb[0].mxu0
          %v2534 = vadd.f32 0.0, %v2533
          %v2535 = vpop.f32.mrb[0].mxu0
          %v2536 = vadd.f32 0.0, %v2535
          %2537 = vmatprep.mubr.bf16.mxu0 %v930
          %2538 = vmatmul.mubr.bf16.gmra.mrb[0].mxu0 %v929
          %v2539 = vpop.f32.mrb[0].mxu0
          %v2540 = vadd.f32 0.0, %v2539
          %v2541 = vpop.f32.mrb[0].mxu0
          %v2542 = vadd.f32 0.0, %v2541
          %v2543 = vpop.f32.mrb[0].mxu0
          %v2544 = vadd.f32 0.0, %v2543
          %v2545 = vpop.f32.mrb[0].mxu0
          %v2546 = vadd.f32 0.0, %v2545
          %2547 = vmatprep.mubr.bf16.mxu0 %v934
          %2548 = vmatmul.mubr.bf16.gmra.mrb[0].mxu0 %v933
          %v2549 = vpop.f32.mrb[0].mxu0
          %v2550 = vadd.f32 0.0, %v2549
          %v2551 = vpop.f32.mrb[0].mxu0
          %v2552 = vadd.f32 0.0, %v2551
          %v2553 = vpop.f32.mrb[0].mxu0
          %v2554 = vadd.f32 0.0, %v2553
          %v2555 = vpop.f32.mrb[0].mxu0
          %v2556 = vadd.f32 0.0, %v2555
          %2557 = vmatprep.mubr.bf16.mxu0 %v938
          %2558 = vmatmul.mubr.bf16.gmra.mrb[0].mxu0 %v937
          %v2559 = vpop.f32.mrb[0].mxu0
          %v2560 = vadd.f32 0.0, %v2559
          %v2561 = vpop.f32.mrb[0].mxu0
          %v2562 = vadd.f32 0.0, %v2561
          %v2563 = vpop.f32.mrb[0].mxu0
          %v2564 = vadd.f32 0.0, %v2563
          %v2565 = vpop.f32.mrb[0].mxu0
          %v2566 = vadd.f32 0.0, %v2565
          %2567 = vmatprep.mubr.bf16.mxu0 %v942
          %2568 = vmatmul.mubr.bf16.gmra.mrb[0].mxu0 %v941
          %v2569 = vpop.f32.mrb[0].mxu0
          %v2570 = vadd.f32 0.0, %v2569
          %v2571 = vpop.f32.mrb[0].mxu0
          %v2572 = vadd.f32 0.0, %v2571
          %v2573 = vpop.f32.mrb[0].mxu0
          %v2574 = vadd.f32 0.0, %v2573
          %v2575 = vpop.f32.mrb[0].mxu0
          %v2576 = vadd.f32 0.0, %v2575
          %2577 = vmatprep.mubr.bf16.mxu0 %v946
          %2578 = vmatmul.mubr.bf16.gmra.mrb[0].mxu0 %v945
          %v2579 = vpop.f32.mrb[0].mxu0
          %v2580 = vadd.f32 0.0, %v2579
          %v2581 = vpop.f32.mrb[0].mxu0
          %v2582 = vadd.f32 0.0, %v2581
          %v2583 = vpop.f32.mrb[0].mxu0
          %v2584 = vadd.f32 0.0, %v2583
          %v2585 = vpop.f32.mrb[0].mxu0
          %v2586 = vadd.f32 0.0, %v2585
          %2587 = vmatprep.mubr.bf16.mxu0 %v950
          %2588 = vmatmul.mubr.bf16.gmra.mrb[0].mxu0 %v949
          %v2589 = vpop.f32.mrb[0].mxu0
          %v2590 = vadd.f32 0.0, %v2589
          %v2591 = vpop.f32.mrb[0].mxu0
          %v2592 = vadd.f32 0.0, %v2591
          %v2593 = vpop.f32.mrb[0].mxu0
          %v2594 = vadd.f32 0.0, %v2593
          %v2595 = vpop.f32.mrb[0].mxu0
          %v2596 = vadd.f32 0.0, %v2595
          %2597 = vmatprep.mubr.bf16.mxu0 %v954
          %2598 = vmatmul.mubr.bf16.gmra.mrb[0].mxu0 %v953
          %v2599 = vpop.f32.mrb[0].mxu0
          %v2600 = vadd.f32 0.0, %v2599
          %v2601 = vpop.f32.mrb[0].mxu0
          %v2602 = vadd.f32 0.0, %v2601
          %v2603 = vpop.f32.mrb[0].mxu0
          %v2604 = vadd.f32 0.0, %v2603
          %v2605 = vpop.f32.mrb[0].mxu0
          %v2606 = vadd.f32 0.0, %v2605
          %2607 = vdwg.mxu0
          %2608 = vmatprep.subr.bf16.mxu0 %v1888
          %2609 = vmatpush1.bf16.msra.mxu0 %v1887
          %2610 = vmatprep.subr.bf16.mxu0 %v1896
          %2611 = vmatpush1.bf16.msra.mxu0 %v1895
          %2612 = vmatprep.subr.bf16.mxu0 %v1904
          %2613 = vmatpush1.bf16.msra.mxu0 %v1903
          %2614 = vmatprep.subr.bf16.mxu0 %v1912
          %2615 = vmatpush1.bf16.msra.mxu0 %v1911
          %2616 = vmatprep.subr.bf16.mxu0 %v1920
          %2617 = vmatpush1.bf16.msra.mxu0 %v1919
          %2618 = vmatprep.subr.bf16.mxu0 %v1928
          %2619 = vmatpush1.bf16.msra.mxu0 %v1927
          %2620 = vmatprep.subr.bf16.mxu0 %v1936
          %2621 = vmatpush1.bf16.msra.mxu0 %v1935
          %2622 = vmatprep.subr.bf16.mxu0 %v1944
          %2623 = vmatpush1.bf16.msra.mxu0 %v1943
          %2624 = vmatprep.subr.bf16.mxu0 %v1952
          %2625 = vmatpush1.bf16.msra.mxu0 %v1951
          %2626 = vmatprep.subr.bf16.mxu0 %v1960
          %2627 = vmatpush1.bf16.msra.mxu0 %v1959
          %2628 = vmatprep.subr.bf16.mxu0 %v1968
          %2629 = vmatpush1.bf16.msra.mxu0 %v1967
          %2630 = vmatprep.subr.bf16.mxu0 %v1976
          %2631 = vmatpush1.bf16.msra.mxu0 %v1975
          %2632 = vmatprep.subr.bf16.mxu0 %v1984
          %2633 = vmatpush1.bf16.msra.mxu0 %v1983
          %2634 = vmatprep.subr.bf16.mxu0 %v1992
          %2635 = vmatpush1.bf16.msra.mxu0 %v1991
          %2636 = vmatprep.subr.bf16.mxu0 %v2000
          %2637 = vmatpush1.bf16.msra.mxu0 %v1999
          %2638 = vmatprep.subr.bf16.mxu0 %v2008
          %2639 = vmatpush1.bf16.msra.mxu0 %v2007
          %2640 = vmatprep.mubr.bf16.mxu0 %v928
          %2641 = vmatmul.mubr.bf16.gmra.mrb[0].mxu0 %v927
          %v2642 = vpop.f32.mrb[0].mxu0
          %v2643 = vadd.f32 %v2530, %v2642
          %v2644 = vpop.f32.mrb[0].mxu0
          %v2645 = vadd.f32 %v2532, %v2644
          %v2646 = vpop.f32.mrb[0].mxu0
          %v2647 = vadd.f32 %v2534, %v2646
          %v2648 = vpop.f32.mrb[0].mxu0
          %v2649 = vadd.f32 %v2536, %v2648
          %2650 = vmatprep.mubr.bf16.mxu0 %v932
          %2651 = vmatmul.mubr.bf16.gmra.mrb[0].mxu0 %v931
          %v2652 = vpop.f32.mrb[0].mxu0
          %v2653 = vadd.f32 %v2540, %v2652
          %v2654 = vpop.f32.mrb[0].mxu0
          %v2655 = vadd.f32 %v2542, %v2654
          %v2656 = vpop.f32.mrb[0].mxu0
          %v2657 = vadd.f32 %v2544, %v2656
          %v2658 = vpop.f32.mrb[0].mxu0
          %v2659 = vadd.f32 %v2546, %v2658
          %2660 = vmatprep.mubr.bf16.mxu0 %v936
          %2661 = vmatmul.mubr.bf16.gmra.mrb[0].mxu0 %v935
          %v2662 = vpop.f32.mrb[0].mxu0
          %v2663 = vadd.f32 %v2550, %v2662
          %v2664 = vpop.f32.mrb[0].mxu0
          %v2665 = vadd.f32 %v2552, %v2664
          %v2666 = vpop.f32.mrb[0].mxu0
          %v2667 = vadd.f32 %v2554, %v2666
          %v2668 = vpop.f32.mrb[0].mxu0
          %v2669 = vadd.f32 %v2556, %v2668
          %2670 = vmatprep.mubr.bf16.mxu0 %v940
          %2671 = vmatmul.mubr.bf16.gmra.mrb[0].mxu0 %v939
          %v2672 = vpop.f32.mrb[0].mxu0
          %v2673 = vadd.f32 %v2560, %v2672
          %v2674 = vpop.f32.mrb[0].mxu0
          %v2675 = vadd.f32 %v2562, %v2674
          %v2676 = vpop.f32.mrb[0].mxu0
          %v2677 = vadd.f32 %v2564, %v2676
          %v2678 = vpop.f32.mrb[0].mxu0
          %v2679 = vadd.f32 %v2566, %v2678
          %2680 = vmatprep.mubr.bf16.mxu0 %v944
          %2681 = vmatmul.mubr.bf16.gmra.mrb[0].mxu0 %v943
          %v2682 = vpop.f32.mrb[0].mxu0
          %v2683 = vadd.f32 %v2570, %v2682
          %v2684 = vpop.f32.mrb[0].mxu0
          %v2685 = vadd.f32 %v2572, %v2684
          %v2686 = vpop.f32.mrb[0].mxu0
          %v2687 = vadd.f32 %v2574, %v2686
          %v2688 = vpop.f32.mrb[0].mxu0
          %v2689 = vadd.f32 %v2576, %v2688
          %2690 = vmatprep.mubr.bf16.mxu0 %v948
          %2691 = vmatmul.mubr.bf16.gmra.mrb[0].mxu0 %v947
          %v2692 = vpop.f32.mrb[0].mxu0
          %v2693 = vadd.f32 %v2580, %v2692
          %v2694 = vpop.f32.mrb[0].mxu0
          %v2695 = vadd.f32 %v2582, %v2694
          %v2696 = vpop.f32.mrb[0].mxu0
          %v2697 = vadd.f32 %v2584, %v2696
          %v2698 = vpop.f32.mrb[0].mxu0
          %v2699 = vadd.f32 %v2586, %v2698
          %2700 = vmatprep.mubr.bf16.mxu0 %v952
          %2701 = vmatmul.mubr.bf16.gmra.mrb[0].mxu0 %v951
          %v2702 = vpop.f32.mrb[0].mxu0
          %v2703 = vadd.f32 %v2590, %v2702
          %v2704 = vpop.f32.mrb[0].mxu0
          %v2705 = vadd.f32 %v2592, %v2704
          %v2706 = vpop.f32.mrb[0].mxu0
          %v2707 = vadd.f32 %v2594, %v2706
          %v2708 = vpop.f32.mrb[0].mxu0
          %v2709 = vadd.f32 %v2596, %v2708
          %2710 = vmatprep.mubr.bf16.mxu0 %v956
          %2711 = vmatmul.mubr.bf16.gmra.mrb[0].mxu0 %v955
          %v2712 = vpop.f32.mrb[0].mxu0
          %v2713 = vadd.f32 %v2600, %v2712
          %v2714 = vpop.f32.mrb[0].mxu0
          %v2715 = vadd.f32 %v2602, %v2714
          %v2716 = vpop.f32.mrb[0].mxu0
          %v2717 = vadd.f32 %v2604, %v2716
          %v2718 = vpop.f32.mrb[0].mxu0
          %v2719 = vadd.f32 %v2606, %v2718
          %2720 = vdwg.mxu0
          %2721 = vmatprep.subr.bf16.mxu0 %v1762
          %2722 = vmatpush1.bf16.msra.mxu0 %v1761
          %2723 = vmatprep.subr.bf16.mxu0 %v1770
          %2724 = vmatpush1.bf16.msra.mxu0 %v1769
          %2725 = vmatprep.subr.bf16.mxu0 %v1778
          %2726 = vmatpush1.bf16.msra.mxu0 %v1777
          %2727 = vmatprep.subr.bf16.mxu0 %v1786
          %2728 = vmatpush1.bf16.msra.mxu0 %v1785
          %2729 = vmatprep.subr.bf16.mxu0 %v1794
          %2730 = vmatpush1.bf16.msra.mxu0 %v1793
          %2731 = vmatprep.subr.bf16.mxu0 %v1802
          %2732 = vmatpush1.bf16.msra.mxu0 %v1801
          %2733 = vmatprep.subr.bf16.mxu0 %v1810
          %2734 = vmatpush1.bf16.msra.mxu0 %v1809
          %2735 = vmatprep.subr.bf16.mxu0 %v1818
          %2736 = vmatpush1.bf16.msra.mxu0 %v1817
          %2737 = vmatprep.subr.bf16.mxu0 %v1826
          %2738 = vmatpush1.bf16.msra.mxu0 %v1825
          %2739 = vmatprep.subr.bf16.mxu0 %v1834
          %2740 = vmatpush1.bf16.msra.mxu0 %v1833
          %2741 = vmatprep.subr.bf16.mxu0 %v1842
          %2742 = vmatpush1.bf16.msra.mxu0 %v1841
          %2743 = vmatprep.subr.bf16.mxu0 %v1850
          %2744 = vmatpush1.bf16.msra.mxu0 %v1849
          %2745 = vmatprep.subr.bf16.mxu0 %v1858
          %2746 = vmatpush1.bf16.msra.mxu0 %v1857
          %2747 = vmatprep.subr.bf16.mxu0 %v1866
          %2748 = vmatpush1.bf16.msra.mxu0 %v1865
          %2749 = vmatprep.subr.bf16.mxu0 %v1874
          %2750 = vmatpush1.bf16.msra.mxu0 %v1873
          %2751 = vmatprep.subr.bf16.mxu0 %v1882
          %2752 = vmatpush1.bf16.msra.mxu0 %v1881
          %2753 = vmatprep.mubr.bf16.mxu0 %v926
          %2754 = vmatmul.mubr.bf16.gmra.mrb[0].mxu0 %v925
          %v2755 = vpop.f32.mrb[0].mxu0
          %v2756 = vadd.f32 0.0, %v2755
          %v2757 = vpop.f32.mrb[0].mxu0
          %v2758 = vadd.f32 0.0, %v2757
          %v2759 = vpop.f32.mrb[0].mxu0
          %v2760 = vadd.f32 0.0, %v2759
          %v2761 = vpop.f32.mrb[0].mxu0
          %v2762 = vadd.f32 0.0, %v2761
          %2763 = vmatprep.mubr.bf16.mxu0 %v930
          %2764 = vmatmul.mubr.bf16.gmra.mrb[0].mxu0 %v929
          %v2765 = vpop.f32.mrb[0].mxu0
          %v2766 = vadd.f32 0.0, %v2765
          %v2767 = vpop.f32.mrb[0].mxu0
          %v2768 = vadd.f32 0.0, %v2767
          %v2769 = vpop.f32.mrb[0].mxu0
          %v2770 = vadd.f32 0.0, %v2769
          %v2771 = vpop.f32.mrb[0].mxu0
          %v2772 = vadd.f32 0.0, %v2771
          %2773 = vmatprep.mubr.bf16.mxu0 %v934
          %2774 = vmatmul.mubr.bf16.gmra.mrb[0].mxu0 %v933
          %v2775 = vpop.f32.mrb[0].mxu0
          %v2776 = vadd.f32 0.0, %v2775
          %v2777 = vpop.f32.mrb[0].mxu0
          %v2778 = vadd.f32 0.0, %v2777
          %v2779 = vpop.f32.mrb[0].mxu0
          %v2780 = vadd.f32 0.0, %v2779
          %v2781 = vpop.f32.mrb[0].mxu0
          %v2782 = vadd.f32 0.0, %v2781
          %2783 = vmatprep.mubr.bf16.mxu0 %v938
          %2784 = vmatmul.mubr.bf16.gmra.mrb[0].mxu0 %v937
          %v2785 = vpop.f32.mrb[0].mxu0
          %v2786 = vadd.f32 0.0, %v2785
          %v2787 = vpop.f32.mrb[0].mxu0
          %v2788 = vadd.f32 0.0, %v2787
          %v2789 = vpop.f32.mrb[0].mxu0
          %v2790 = vadd.f32 0.0, %v2789
          %v2791 = vpop.f32.mrb[0].mxu0
          %v2792 = vadd.f32 0.0, %v2791
          %2793 = vmatprep.mubr.bf16.mxu0 %v942
          %2794 = vmatmul.mubr.bf16.gmra.mrb[0].mxu0 %v941
          %v2795 = vpop.f32.mrb[0].mxu0
          %v2796 = vadd.f32 0.0, %v2795
          %v2797 = vpop.f32.mrb[0].mxu0
          %v2798 = vadd.f32 0.0, %v2797
          %v2799 = vpop.f32.mrb[0].mxu0
          %v2800 = vadd.f32 0.0, %v2799
          %v2801 = vpop.f32.mrb[0].mxu0
          %v2802 = vadd.f32 0.0, %v2801
          %2803 = vmatprep.mubr.bf16.mxu0 %v946
          %2804 = vmatmul.mubr.bf16.gmra.mrb[0].mxu0 %v945
          %v2805 = vpop.f32.mrb[0].mxu0
          %v2806 = vadd.f32 0.0, %v2805
          %v2807 = vpop.f32.mrb[0].mxu0
          %v2808 = vadd.f32 0.0, %v2807
          %v2809 = vpop.f32.mrb[0].mxu0
          %v2810 = vadd.f32 0.0, %v2809
          %v2811 = vpop.f32.mrb[0].mxu0
          %v2812 = vadd.f32 0.0, %v2811
          %2813 = vmatprep.mubr.bf16.mxu0 %v950
          %2814 = vmatmul.mubr.bf16.gmra.mrb[0].mxu0 %v949
          %v2815 = vpop.f32.mrb[0].mxu0
          %v2816 = vadd.f32 0.0, %v2815
          %v2817 = vpop.f32.mrb[0].mxu0
          %v2818 = vadd.f32 0.0, %v2817
          %v2819 = vpop.f32.mrb[0].mxu0
          %v2820 = vadd.f32 0.0, %v2819
          %v2821 = vpop.f32.mrb[0].mxu0
          %v2822 = vadd.f32 0.0, %v2821
          %2823 = vmatprep.mubr.bf16.mxu0 %v954
          %2824 = vmatmul.mubr.bf16.gmra.mrb[0].mxu0 %v953
          %v2825 = vpop.f32.mrb[0].mxu0
          %v2826 = vadd.f32 0.0, %v2825
          %v2827 = vpop.f32.mrb[0].mxu0
          %v2828 = vadd.f32 0.0, %v2827
          %v2829 = vpop.f32.mrb[0].mxu0
          %v2830 = vadd.f32 0.0, %v2829
          %v2831 = vpop.f32.mrb[0].mxu0
          %v2832 = vadd.f32 0.0, %v2831
          %2833 = vdwg.mxu0
          %2834 = vmatprep.subr.bf16.mxu0 %v1890
          %2835 = vmatpush1.bf16.msra.mxu0 %v1889
          %2836 = vmatprep.subr.bf16.mxu0 %v1898
          %2837 = vmatpush1.bf16.msra.mxu0 %v1897
          %2838 = vmatprep.subr.bf16.mxu0 %v1906
          %2839 = vmatpush1.bf16.msra.mxu0 %v1905
          %2840 = vmatprep.subr.bf16.mxu0 %v1914
          %2841 = vmatpush1.bf16.msra.mxu0 %v1913
          %2842 = vmatprep.subr.bf16.mxu0 %v1922
          %2843 = vmatpush1.bf16.msra.mxu0 %v1921
          %2844 = vmatprep.subr.bf16.mxu0 %v1930
          %2845 = vmatpush1.bf16.msra.mxu0 %v1929
          %2846 = vmatprep.subr.bf16.mxu0 %v1938
          %2847 = vmatpush1.bf16.msra.mxu0 %v1937
          %2848 = vmatprep.subr.bf16.mxu0 %v1946
          %2849 = vmatpush1.bf16.msra.mxu0 %v1945
          %2850 = vmatprep.subr.bf16.mxu0 %v1954
          %2851 = vmatpush1.bf16.msra.mxu0 %v1953
          %2852 = vmatprep.subr.bf16.mxu0 %v1962
          %2853 = vmatpush1.bf16.msra.mxu0 %v1961
          %2854 = vmatprep.subr.bf16.mxu0 %v1970
          %2855 = vmatpush1.bf16.msra.mxu0 %v1969
          %2856 = vmatprep.subr.bf16.mxu0 %v1978
          %2857 = vmatpush1.bf16.msra.mxu0 %v1977
          %2858 = vmatprep.subr.bf16.mxu0 %v1986
          %2859 = vmatpush1.bf16.msra.mxu0 %v1985
          %2860 = vmatprep.subr.bf16.mxu0 %v1994
          %2861 = vmatpush1.bf16.msra.mxu0 %v1993
          %2862 = vmatprep.subr.bf16.mxu0 %v2002
          %2863 = vmatpush1.bf16.msra.mxu0 %v2001
          %2864 = vmatprep.subr.bf16.mxu0 %v2010
          %2865 = vmatpush1.bf16.msra.mxu0 %v2009
          %2866 = vmatprep.mubr.bf16.mxu0 %v928
          %2867 = vmatmul.mubr.bf16.gmra.mrb[0].mxu0 %v927
          %v2868 = vpop.f32.mrb[0].mxu0
          %v2869 = vadd.f32 %v2756, %v2868
          %v2870 = vpop.f32.mrb[0].mxu0
          %v2871 = vadd.f32 %v2758, %v2870
          %v2872 = vpop.f32.mrb[0].mxu0
          %v2873 = vadd.f32 %v2760, %v2872
          %v2874 = vpop.f32.mrb[0].mxu0
          %v2875 = vadd.f32 %v2762, %v2874
          %2876 = vmatprep.mubr.bf16.mxu0 %v932
          %2877 = vmatmul.mubr.bf16.gmra.mrb[0].mxu0 %v931
          %v2878 = vpop.f32.mrb[0].mxu0
          %v2879 = vadd.f32 %v2766, %v2878
          %v2880 = vpop.f32.mrb[0].mxu0
          %v2881 = vadd.f32 %v2768, %v2880
          %v2882 = vpop.f32.mrb[0].mxu0
          %v2883 = vadd.f32 %v2770, %v2882
          %v2884 = vpop.f32.mrb[0].mxu0
          %v2885 = vadd.f32 %v2772, %v2884
          %2886 = vmatprep.mubr.bf16.mxu0 %v936
          %2887 = vmatmul.mubr.bf16.gmra.mrb[0].mxu0 %v935
          %v2888 = vpop.f32.mrb[0].mxu0
          %v2889 = vadd.f32 %v2776, %v2888
          %v2890 = vpop.f32.mrb[0].mxu0
          %v2891 = vadd.f32 %v2778, %v2890
          %v2892 = vpop.f32.mrb[0].mxu0
          %v2893 = vadd.f32 %v2780, %v2892
          %v2894 = vpop.f32.mrb[0].mxu0
          %v2895 = vadd.f32 %v2782, %v2894
          %2896 = vmatprep.mubr.bf16.mxu0 %v940
          %2897 = vmatmul.mubr.bf16.gmra.mrb[0].mxu0 %v939
          %v2898 = vpop.f32.mrb[0].mxu0
          %v2899 = vadd.f32 %v2786, %v2898
          %v2900 = vpop.f32.mrb[0].mxu0
          %v2901 = vadd.f32 %v2788, %v2900
          %v2902 = vpop.f32.mrb[0].mxu0
          %v2903 = vadd.f32 %v2790, %v2902
          %v2904 = vpop.f32.mrb[0].mxu0
          %v2905 = vadd.f32 %v2792, %v2904
          %2906 = vmatprep.mubr.bf16.mxu0 %v944
          %2907 = vmatmul.mubr.bf16.gmra.mrb[0].mxu0 %v943
          %v2908 = vpop.f32.mrb[0].mxu0
          %v2909 = vadd.f32 %v2796, %v2908
          %v2910 = vpop.f32.mrb[0].mxu0
          %v2911 = vadd.f32 %v2798, %v2910
          %v2912 = vpop.f32.mrb[0].mxu0
          %v2913 = vadd.f32 %v2800, %v2912
          %v2914 = vpop.f32.mrb[0].mxu0
          %v2915 = vadd.f32 %v2802, %v2914
          %2916 = vmatprep.mubr.bf16.mxu0 %v948
          %2917 = vmatmul.mubr.bf16.gmra.mrb[0].mxu0 %v947
          %v2918 = vpop.f32.mrb[0].mxu0
          %v2919 = vadd.f32 %v2806, %v2918
          %v2920 = vpop.f32.mrb[0].mxu0
          %v2921 = vadd.f32 %v2808, %v2920
          %v2922 = vpop.f32.mrb[0].mxu0
          %v2923 = vadd.f32 %v2810, %v2922
          %v2924 = vpop.f32.mrb[0].mxu0
          %v2925 = vadd.f32 %v2812, %v2924
          %2926 = vmatprep.mubr.bf16.mxu0 %v952
          %2927 = vmatmul.mubr.bf16.gmra.mrb[0].mxu0 %v951
          %v2928 = vpop.f32.mrb[0].mxu0
          %v2929 = vadd.f32 %v2816, %v2928
          %v2930 = vpop.f32.mrb[0].mxu0
          %v2931 = vadd.f32 %v2818, %v2930
          %v2932 = vpop.f32.mrb[0].mxu0
          %v2933 = vadd.f32 %v2820, %v2932
          %v2934 = vpop.f32.mrb[0].mxu0
          %v2935 = vadd.f32 %v2822, %v2934
          %2936 = vmatprep.mubr.bf16.mxu0 %v956
          %2937 = vmatmul.mubr.bf16.gmra.mrb[0].mxu0 %v955
          %v2938 = vpop.f32.mrb[0].mxu0
          %v2939 = vadd.f32 %v2826, %v2938
          %v2940 = vpop.f32.mrb[0].mxu0
          %v2941 = vadd.f32 %v2828, %v2940
          %v2942 = vpop.f32.mrb[0].mxu0
          %v2943 = vadd.f32 %v2830, %v2942
          %v2944 = vpop.f32.mrb[0].mxu0
          %v2945 = vadd.f32 %v2832, %v2944
          %2946 = vdwg.mxu0
          %2947 = vmatprep.subr.bf16.mxu0 %v1764
          %2948 = vmatpush1.bf16.msra.mxu0 %v1763
          %2949 = vmatprep.subr.bf16.mxu0 %v1772
          %2950 = vmatpush1.bf16.msra.mxu0 %v1771
          %2951 = vmatprep.subr.bf16.mxu0 %v1780
          %2952 = vmatpush1.bf16.msra.mxu0 %v1779
          %2953 = vmatprep.subr.bf16.mxu0 %v1788
          %2954 = vmatpush1.bf16.msra.mxu0 %v1787
          %2955 = vmatprep.subr.bf16.mxu0 %v1796
          %2956 = vmatpush1.bf16.msra.mxu0 %v1795
          %2957 = vmatprep.subr.bf16.mxu0 %v1804
          %2958 = vmatpush1.bf16.msra.mxu0 %v1803
          %2959 = vmatprep.subr.bf16.mxu0 %v1812
          %2960 = vmatpush1.bf16.msra.mxu0 %v1811
          %2961 = vmatprep.subr.bf16.mxu0 %v1820
          %2962 = vmatpush1.bf16.msra.mxu0 %v1819
          %2963 = vmatprep.subr.bf16.mxu0 %v1828
          %2964 = vmatpush1.bf16.msra.mxu0 %v1827
          %2965 = vmatprep.subr.bf16.mxu0 %v1836
          %2966 = vmatpush1.bf16.msra.mxu0 %v1835
          %2967 = vmatprep.subr.bf16.mxu0 %v1844
          %2968 = vmatpush1.bf16.msra.mxu0 %v1843
          %2969 = vmatprep.subr.bf16.mxu0 %v1852
          %2970 = vmatpush1.bf16.msra.mxu0 %v1851
          %2971 = vmatprep.subr.bf16.mxu0 %v1860
          %2972 = vmatpush1.bf16.msra.mxu0 %v1859
          %2973 = vmatprep.subr.bf16.mxu0 %v1868
          %2974 = vmatpush1.bf16.msra.mxu0 %v1867
          %2975 = vmatprep.subr.bf16.mxu0 %v1876
          %2976 = vmatpush1.bf16.msra.mxu0 %v1875
          %2977 = vmatprep.subr.bf16.mxu0 %v1884
          %2978 = vmatpush1.bf16.msra.mxu0 %v1883
          %2979 = vmatprep.mubr.bf16.mxu0 %v926
          %2980 = vmatmul.mubr.bf16.gmra.mrb[0].mxu0 %v925
          %v2981 = vpop.f32.mrb[0].mxu0
          %v2982 = vadd.f32 0.0, %v2981
          %v2983 = vpop.f32.mrb[0].mxu0
          %v2984 = vadd.f32 0.0, %v2983
          %v2985 = vpop.f32.mrb[0].mxu0
          %v2986 = vadd.f32 0.0, %v2985
          %v2987 = vpop.f32.mrb[0].mxu0
          %v2988 = vadd.f32 0.0, %v2987
          %2989 = vmatprep.mubr.bf16.mxu0 %v930
          %2990 = vmatmul.mubr.bf16.gmra.mrb[0].mxu0 %v929
          %v2991 = vpop.f32.mrb[0].mxu0
          %v2992 = vadd.f32 0.0, %v2991
          %v2993 = vpop.f32.mrb[0].mxu0
          %v2994 = vadd.f32 0.0, %v2993
          %v2995 = vpop.f32.mrb[0].mxu0
          %v2996 = vadd.f32 0.0, %v2995
          %v2997 = vpop.f32.mrb[0].mxu0
          %v2998 = vadd.f32 0.0, %v2997
          %2999 = vmatprep.mubr.bf16.mxu0 %v934
          %3000 = vmatmul.mubr.bf16.gmra.mrb[0].mxu0 %v933
          %v3001 = vpop.f32.mrb[0].mxu0
          %v3002 = vadd.f32 0.0, %v3001
          %v3003 = vpop.f32.mrb[0].mxu0
          %v3004 = vadd.f32 0.0, %v3003
          %v3005 = vpop.f32.mrb[0].mxu0
          %v3006 = vadd.f32 0.0, %v3005
          %v3007 = vpop.f32.mrb[0].mxu0
          %v3008 = vadd.f32 0.0, %v3007
          %3009 = vmatprep.mubr.bf16.mxu0 %v938
          %3010 = vmatmul.mubr.bf16.gmra.mrb[0].mxu0 %v937
          %v3011 = vpop.f32.mrb[0].mxu0
          %v3012 = vadd.f32 0.0, %v3011
          %v3013 = vpop.f32.mrb[0].mxu0
          %v3014 = vadd.f32 0.0, %v3013
          %v3015 = vpop.f32.mrb[0].mxu0
          %v3016 = vadd.f32 0.0, %v3015
          %v3017 = vpop.f32.mrb[0].mxu0
          %v3018 = vadd.f32 0.0, %v3017
          %3019 = vmatprep.mubr.bf16.mxu0 %v942
          %3020 = vmatmul.mubr.bf16.gmra.mrb[0].mxu0 %v941
          %v3021 = vpop.f32.mrb[0].mxu0
          %v3022 = vadd.f32 0.0, %v3021
          %v3023 = vpop.f32.mrb[0].mxu0
          %v3024 = vadd.f32 0.0, %v3023
          %v3025 = vpop.f32.mrb[0].mxu0
          %v3026 = vadd.f32 0.0, %v3025
          %v3027 = vpop.f32.mrb[0].mxu0
          %v3028 = vadd.f32 0.0, %v3027
          %3029 = vmatprep.mubr.bf16.mxu0 %v946
          %3030 = vmatmul.mubr.bf16.gmra.mrb[0].mxu0 %v945
          %v3031 = vpop.f32.mrb[0].mxu0
          %v3032 = vadd.f32 0.0, %v3031
          %v3033 = vpop.f32.mrb[0].mxu0
          %v3034 = vadd.f32 0.0, %v3033
          %v3035 = vpop.f32.mrb[0].mxu0
          %v3036 = vadd.f32 0.0, %v3035
          %v3037 = vpop.f32.mrb[0].mxu0
          %v3038 = vadd.f32 0.0, %v3037
          %3039 = vmatprep.mubr.bf16.mxu0 %v950
          %3040 = vmatmul.mubr.bf16.gmra.mrb[0].mxu0 %v949
          %v3041 = vpop.f32.mrb[0].mxu0
          %v3042 = vadd.f32 0.0, %v3041
          %v3043 = vpop.f32.mrb[0].mxu0
          %v3044 = vadd.f32 0.0, %v3043
          %v3045 = vpop.f32.mrb[0].mxu0
          %v3046 = vadd.f32 0.0, %v3045
          %v3047 = vpop.f32.mrb[0].mxu0
          %v3048 = vadd.f32 0.0, %v3047
          %3049 = vmatprep.mubr.bf16.mxu0 %v954
          %3050 = vmatmul.mubr.bf16.gmra.mrb[0].mxu0 %v953
          %v3051 = vpop.f32.mrb[0].mxu0
          %v3052 = vadd.f32 0.0, %v3051
          %v3053 = vpop.f32.mrb[0].mxu0
          %v3054 = vadd.f32 0.0, %v3053
          %v3055 = vpop.f32.mrb[0].mxu0
          %v3056 = vadd.f32 0.0, %v3055
          %v3057 = vpop.f32.mrb[0].mxu0
          %v3058 = vadd.f32 0.0, %v3057
          %3059 = vdwg.mxu0
          %3060 = vmatprep.subr.bf16.mxu0 %v1892
          %3061 = vmatpush1.bf16.msra.mxu0 %v1891
          %3062 = vmatprep.subr.bf16.mxu0 %v1900
          %3063 = vmatpush1.bf16.msra.mxu0 %v1899
          %3064 = vmatprep.subr.bf16.mxu0 %v1908
          %3065 = vmatpush1.bf16.msra.mxu0 %v1907
          %3066 = vmatprep.subr.bf16.mxu0 %v1916
          %3067 = vmatpush1.bf16.msra.mxu0 %v1915
          %3068 = vmatprep.subr.bf16.mxu0 %v1924
          %3069 = vmatpush1.bf16.msra.mxu0 %v1923
          %3070 = vmatprep.subr.bf16.mxu0 %v1932
          %3071 = vmatpush1.bf16.msra.mxu0 %v1931
          %3072 = vmatprep.subr.bf16.mxu0 %v1940
          %3073 = vmatpush1.bf16.msra.mxu0 %v1939
          %3074 = vmatprep.subr.bf16.mxu0 %v1948
          %3075 = vmatpush1.bf16.msra.mxu0 %v1947
          %3076 = vmatprep.subr.bf16.mxu0 %v1956
          %3077 = vmatpush1.bf16.msra.mxu0 %v1955
          %3078 = vmatprep.subr.bf16.mxu0 %v1964
          %3079 = vmatpush1.bf16.msra.mxu0 %v1963
          %3080 = vmatprep.subr.bf16.mxu0 %v1972
          %3081 = vmatpush1.bf16.msra.mxu0 %v1971
          %3082 = vmatprep.subr.bf16.mxu0 %v1980
          %3083 = vmatpush1.bf16.msra.mxu0 %v1979
          %3084 = vmatprep.subr.bf16.mxu0 %v1988
          %3085 = vmatpush1.bf16.msra.mxu0 %v1987
          %3086 = vmatprep.subr.bf16.mxu0 %v1996
          %3087 = vmatpush1.bf16.msra.mxu0 %v1995
          %3088 = vmatprep.subr.bf16.mxu0 %v2004
          %3089 = vmatpush1.bf16.msra.mxu0 %v2003
          %3090 = vmatprep.subr.bf16.mxu0 %v2012
          %3091 = vmatpush1.bf16.msra.mxu0 %v2011
          %3092 = vmatprep.mubr.bf16.mxu0 %v928
          %3093 = vmatmul.mubr.bf16.gmra.mrb[0].mxu0 %v927
          %v3094 = vpop.f32.mrb[0].mxu0
          %v3095 = vadd.f32 %v2982, %v3094
          %v3096 = vpop.f32.mrb[0].mxu0
          %v3097 = vadd.f32 %v2984, %v3096
          %v3098 = vpop.f32.mrb[0].mxu0
          %v3099 = vadd.f32 %v2986, %v3098
          %v3100 = vpop.f32.mrb[0].mxu0
          %v3101 = vadd.f32 %v2988, %v3100
          %3102 = vmatprep.mubr.bf16.mxu0 %v932
          %3103 = vmatmul.mubr.bf16.gmra.mrb[0].mxu0 %v931
          %v3104 = vpop.f32.mrb[0].mxu0
          %v3105 = vadd.f32 %v2992, %v3104
          %v3106 = vpop.f32.mrb[0].mxu0
          %v3107 = vadd.f32 %v2994, %v3106
          %v3108 = vpop.f32.mrb[0].mxu0
          %v3109 = vadd.f32 %v2996, %v3108
          %v3110 = vpop.f32.mrb[0].mxu0
          %v3111 = vadd.f32 %v2998, %v3110
          %3112 = vmatprep.mubr.bf16.mxu0 %v936
          %3113 = vmatmul.mubr.bf16.gmra.mrb[0].mxu0 %v935
          %v3114 = vpop.f32.mrb[0].mxu0
          %v3115 = vadd.f32 %v3002, %v3114
          %v3116 = vpop.f32.mrb[0].mxu0
          %v3117 = vadd.f32 %v3004, %v3116
          %v3118 = vpop.f32.mrb[0].mxu0
          %v3119 = vadd.f32 %v3006, %v3118
          %v3120 = vpop.f32.mrb[0].mxu0
          %v3121 = vadd.f32 %v3008, %v3120
          %3122 = vmatprep.mubr.bf16.mxu0 %v940
          %3123 = vmatmul.mubr.bf16.gmra.mrb[0].mxu0 %v939
          %v3124 = vpop.f32.mrb[0].mxu0
          %v3125 = vadd.f32 %v3012, %v3124
          %v3126 = vpop.f32.mrb[0].mxu0
          %v3127 = vadd.f32 %v3014, %v3126
          %v3128 = vpop.f32.mrb[0].mxu0
          %v3129 = vadd.f32 %v3016, %v3128
          %v3130 = vpop.f32.mrb[0].mxu0
          %v3131 = vadd.f32 %v3018, %v3130
          %3132 = vmatprep.mubr.bf16.mxu0 %v944
          %3133 = vmatmul.mubr.bf16.gmra.mrb[0].mxu0 %v943
          %v3134 = vpop.f32.mrb[0].mxu0
          %v3135 = vadd.f32 %v3022, %v3134
          %v3136 = vpop.f32.mrb[0].mxu0
          %v3137 = vadd.f32 %v3024, %v3136
          %v3138 = vpop.f32.mrb[0].mxu0
          %v3139 = vadd.f32 %v3026, %v3138
          %v3140 = vpop.f32.mrb[0].mxu0
          %v3141 = vadd.f32 %v3028, %v3140
          %3142 = vmatprep.mubr.bf16.mxu0 %v948
          %3143 = vmatmul.mubr.bf16.gmra.mrb[0].mxu0 %v947
          %v3144 = vpop.f32.mrb[0].mxu0
          %v3145 = vadd.f32 %v3032, %v3144
          %v3146 = vpop.f32.mrb[0].mxu0
          %v3147 = vadd.f32 %v3034, %v3146
          %v3148 = vpop.f32.mrb[0].mxu0
          %v3149 = vadd.f32 %v3036, %v3148
          %v3150 = vpop.f32.mrb[0].mxu0
          %v3151 = vadd.f32 %v3038, %v3150
          %3152 = vmatprep.mubr.bf16.mxu0 %v952
          %3153 = vmatmul.mubr.bf16.gmra.mrb[0].mxu0 %v951
          %v3154 = vpop.f32.mrb[0].mxu0
          %v3155 = vadd.f32 %v3042, %v3154
          %v3156 = vpop.f32.mrb[0].mxu0
          %v3157 = vadd.f32 %v3044, %v3156
          %v3158 = vpop.f32.mrb[0].mxu0
          %v3159 = vadd.f32 %v3046, %v3158
          %v3160 = vpop.f32.mrb[0].mxu0
          %v3161 = vadd.f32 %v3048, %v3160
          %3162 = vmatprep.mubr.bf16.mxu0 %v956
          %3163 = vmatmul.mubr.bf16.gmra.mrb[0].mxu0 %v955
          %v3164 = vpop.f32.mrb[0].mxu0
          %v3165 = vadd.f32 %v3052, %v3164
          %v3166 = vpop.f32.mrb[0].mxu0
          %v3167 = vadd.f32 %v3054, %v3166
          %v3168 = vpop.f32.mrb[0].mxu0
          %v3169 = vadd.f32 %v3056, %v3168
          %v3170 = vpop.f32.mrb[0].mxu0
          %v3171 = vadd.f32 %v3058, %v3170
          %3172 = vdwg.mxu0
          %v3173 = vxor.u32 %v2417, 2147483648
          %v3174 = vxor.u32 %v2419, 2147483648
          %v3175 = vxor.u32 %v2643, 2147483648
          %v3176 = vxor.u32 %v2645, 2147483648
          %v3177 = vxor.u32 %v2421, 2147483648
          %v3178 = vxor.u32 %v2423, 2147483648
          %v3179 = vxor.u32 %v2647, 2147483648
          %v3180 = vxor.u32 %v2649, 2147483648
          %v3181 = vxor.u32 %v2427, 2147483648
          %v3182 = vxor.u32 %v2429, 2147483648
          %v3183 = vxor.u32 %v2653, 2147483648
          %v3184 = vxor.u32 %v2655, 2147483648
          %v3185 = vxor.u32 %v2431, 2147483648
          %v3186 = vxor.u32 %v2433, 2147483648
          %v3187 = vxor.u32 %v2657, 2147483648
          %v3188 = vxor.u32 %v2659, 2147483648
          %v3189 = vxor.u32 %v2437, 2147483648
          %v3190 = vxor.u32 %v2439, 2147483648
          %v3191 = vxor.u32 %v2663, 2147483648
          %v3192 = vxor.u32 %v2665, 2147483648
          %v3193 = vxor.u32 %v2441, 2147483648
          %v3194 = vxor.u32 %v2443, 2147483648
          %v3195 = vxor.u32 %v2667, 2147483648
          %v3196 = vxor.u32 %v2669, 2147483648
          %v3197 = vxor.u32 %v2447, 2147483648
          %v3198 = vxor.u32 %v2449, 2147483648
          %v3199 = vxor.u32 %v2673, 2147483648
          %v3200 = vxor.u32 %v2675, 2147483648
          %v3201 = vxor.u32 %v2451, 2147483648
          %v3202 = vxor.u32 %v2453, 2147483648
          %v3203 = vxor.u32 %v2677, 2147483648
          %v3204 = vxor.u32 %v2679, 2147483648
          %v3205 = vxor.u32 %v2457, 2147483648
          %v3206 = vxor.u32 %v2459, 2147483648
          %v3207 = vxor.u32 %v2683, 2147483648
          %v3208 = vxor.u32 %v2685, 2147483648
          %v3209 = vxor.u32 %v2461, 2147483648
          %v3210 = vxor.u32 %v2463, 2147483648
          %v3211 = vxor.u32 %v2687, 2147483648
          %v3212 = vxor.u32 %v2689, 2147483648
          %v3213 = vxor.u32 %v2467, 2147483648
          %v3214 = vxor.u32 %v2469, 2147483648
          %v3215 = vxor.u32 %v2693, 2147483648
          %v3216 = vxor.u32 %v2695, 2147483648
          %v3217 = vxor.u32 %v2471, 2147483648
          %v3218 = vxor.u32 %v2473, 2147483648
          %v3219 = vxor.u32 %v2697, 2147483648
          %v3220 = vxor.u32 %v2699, 2147483648
          %v3221 = vxor.u32 %v2477, 2147483648
          %v3222 = vxor.u32 %v2479, 2147483648
          %v3223 = vxor.u32 %v2703, 2147483648
          %v3224 = vxor.u32 %v2705, 2147483648
          %v3225 = vxor.u32 %v2481, 2147483648
          %v3226 = vxor.u32 %v2483, 2147483648
          %v3227 = vxor.u32 %v2707, 2147483648
          %v3228 = vxor.u32 %v2709, 2147483648
          %v3229 = vxor.u32 %v2487, 2147483648
          %v3230 = vxor.u32 %v2489, 2147483648
          %v3231 = vxor.u32 %v2713, 2147483648
          %v3232 = vxor.u32 %v2715, 2147483648
          %v3233 = vxor.u32 %v2491, 2147483648
          %v3234 = vxor.u32 %v2493, 2147483648
          %v3235 = vxor.u32 %v2717, 2147483648
          %v3236 = vxor.u32 %v2719, 2147483648
          %v3237 = vmul.f32 %v3173, 1.442695
          %v3238 = vpow.pop %v3237
          %v3239 = vmul.f32 %v3174, 1.442695
          %v3240 = vpow.pop %v3239
          %v3241 = vmul.f32 %v3175, 1.442695
          %v3242 = vpow.pop %v3241
          %v3243 = vmul.f32 %v3176, 1.442695
          %v3244 = vpow.pop %v3243
          %v3245 = vmul.f32 %v3177, 1.442695
          %v3246 = vpow.pop %v3245
          %v3247 = vmul.f32 %v3178, 1.442695
          %v3248 = vpow.pop %v3247
          %v3249 = vmul.f32 %v3179, 1.442695
          %v3250 = vpow.pop %v3249
          %v3251 = vmul.f32 %v3180, 1.442695
          %v3252 = vpow.pop %v3251
          %v3253 = vmul.f32 %v3181, 1.442695
          %v3254 = vpow.pop %v3253
          %v3255 = vmul.f32 %v3182, 1.442695
          %v3256 = vpow.pop %v3255
          %v3257 = vmul.f32 %v3183, 1.442695
          %v3258 = vpow.pop %v3257
          %v3259 = vmul.f32 %v3184, 1.442695
          %v3260 = vpow.pop %v3259
          %v3261 = vmul.f32 %v3185, 1.442695
          %v3262 = vpow.pop %v3261
          %v3263 = vmul.f32 %v3186, 1.442695
          %v3264 = vpow.pop %v3263
          %v3265 = vmul.f32 %v3187, 1.442695
          %v3266 = vpow.pop %v3265
          %v3267 = vmul.f32 %v3188, 1.442695
          %v3268 = vpow.pop %v3267
          %v3269 = vmul.f32 %v3189, 1.442695
          %v3270 = vpow.pop %v3269
          %v3271 = vmul.f32 %v3190, 1.442695
          %v3272 = vpow.pop %v3271
          %v3273 = vmul.f32 %v3191, 1.442695
          %v3274 = vpow.pop %v3273
          %v3275 = vmul.f32 %v3192, 1.442695
          %v3276 = vpow.pop %v3275
          %v3277 = vmul.f32 %v3193, 1.442695
          %v3278 = vpow.pop %v3277
          %v3279 = vmul.f32 %v3194, 1.442695
          %v3280 = vpow.pop %v3279
          %v3281 = vmul.f32 %v3195, 1.442695
          %v3282 = vpow.pop %v3281
          %v3283 = vmul.f32 %v3196, 1.442695
          %v3284 = vpow.pop %v3283
          %v3285 = vmul.f32 %v3197, 1.442695
          %v3286 = vpow.pop %v3285
          %v3287 = vmul.f32 %v3198, 1.442695
          %v3288 = vpow.pop %v3287
          %v3289 = vmul.f32 %v3199, 1.442695
          %v3290 = vpow.pop %v3289
          %v3291 = vmul.f32 %v3200, 1.442695
          %v3292 = vpow.pop %v3291
          %v3293 = vmul.f32 %v3201, 1.442695
          %v3294 = vpow.pop %v3293
          %v3295 = vmul.f32 %v3202, 1.442695
          %v3296 = vpow.pop %v3295
          %v3297 = vmul.f32 %v3203, 1.442695
          %v3298 = vpow.pop %v3297
          %v3299 = vmul.f32 %v3204, 1.442695
          %v3300 = vpow.pop %v3299
          %v3301 = vmul.f32 %v3205, 1.442695
          %v3302 = vpow.pop %v3301
          %v3303 = vmul.f32 %v3206, 1.442695
          %v3304 = vpow.pop %v3303
          %v3305 = vmul.f32 %v3207, 1.442695
          %v3306 = vpow.pop %v3305
          %v3307 = vmul.f32 %v3208, 1.442695
          %v3308 = vpow.pop %v3307
          %v3309 = vmul.f32 %v3209, 1.442695
          %v3310 = vpow.pop %v3309
          %v3311 = vmul.f32 %v3210, 1.442695
          %v3312 = vpow.pop %v3311
          %v3313 = vmul.f32 %v3211, 1.442695
          %v3314 = vpow.pop %v3313
          %v3315 = vmul.f32 %v3212, 1.442695
          %v3316 = vpow.pop %v3315
          %v3317 = vmul.f32 %v3213, 1.442695
          %v3318 = vpow.pop %v3317
          %v3319 = vmul.f32 %v3214, 1.442695
          %v3320 = vpow.pop %v3319
          %v3321 = vmul.f32 %v3215, 1.442695
          %v3322 = vpow.pop %v3321
          %v3323 = vmul.f32 %v3216, 1.442695
          %v3324 = vpow.pop %v3323
          %v3325 = vmul.f32 %v3217, 1.442695
          %v3326 = vpow.pop %v3325
          %v3327 = vmul.f32 %v3218, 1.442695
          %v3328 = vpow.pop %v3327
          %v3329 = vmul.f32 %v3219, 1.442695
          %v3330 = vpow.pop %v3329
          %v3331 = vmul.f32 %v3220, 1.442695
          %v3332 = vpow.pop %v3331
          %v3333 = vmul.f32 %v3221, 1.442695
          %v3334 = vpow.pop %v3333
          %v3335 = vmul.f32 %v3222, 1.442695
          %v3336 = vpow.pop %v3335
          %v3337 = vmul.f32 %v3223, 1.442695
          %v3338 = vpow.pop %v3337
          %v3339 = vmul.f32 %v3224, 1.442695
          %v3340 = vpow.pop %v3339
          %v3341 = vmul.f32 %v3225, 1.442695
          %v3342 = vpow.pop %v3341
          %v3343 = vmul.f32 %v3226, 1.442695
          %v3344 = vpow.pop %v3343
          %v3345 = vmul.f32 %v3227, 1.442695
          %v3346 = vpow.pop %v3345
          %v3347 = vmul.f32 %v3228, 1.442695
          %v3348 = vpow.pop %v3347
          %v3349 = vmul.f32 %v3229, 1.442695
          %v3350 = vpow.pop %v3349
          %v3351 = vmul.f32 %v3230, 1.442695
          %v3352 = vpow.pop %v3351
          %v3353 = vmul.f32 %v3231, 1.442695
          %v3354 = vpow.pop %v3353
          %v3355 = vmul.f32 %v3232, 1.442695
          %v3356 = vpow.pop %v3355
          %v3357 = vmul.f32 %v3233, 1.442695
          %v3358 = vpow.pop %v3357
          %v3359 = vmul.f32 %v3234, 1.442695
          %v3360 = vpow.pop %v3359
          %v3361 = vmul.f32 %v3235, 1.442695
          %v3362 = vpow.pop %v3361
          %v3363 = vmul.f32 %v3236, 1.442695
          %v3364 = vpow.pop %v3363
          %v3365 = vadd.f32 %v3238, 1.0
          %v3366 = vadd.f32 %v3240, 1.0
          %v3367 = vadd.f32 %v3242, 1.0
          %v3368 = vadd.f32 %v3244, 1.0
          %v3369 = vadd.f32 %v3246, 1.0
          %v3370 = vadd.f32 %v3248, 1.0
          %v3371 = vadd.f32 %v3250, 1.0
          %v3372 = vadd.f32 %v3252, 1.0
          %v3373 = vadd.f32 %v3254, 1.0
          %v3374 = vadd.f32 %v3256, 1.0
          %v3375 = vadd.f32 %v3258, 1.0
          %v3376 = vadd.f32 %v3260, 1.0
          %v3377 = vadd.f32 %v3262, 1.0
          %v3378 = vadd.f32 %v3264, 1.0
          %v3379 = vadd.f32 %v3266, 1.0
          %v3380 = vadd.f32 %v3268, 1.0
          %v3381 = vadd.f32 %v3270, 1.0
          %v3382 = vadd.f32 %v3272, 1.0
          %v3383 = vadd.f32 %v3274, 1.0
          %v3384 = vadd.f32 %v3276, 1.0
          %v3385 = vadd.f32 %v3278, 1.0
          %v3386 = vadd.f32 %v3280, 1.0
          %v3387 = vadd.f32 %v3282, 1.0
          %v3388 = vadd.f32 %v3284, 1.0
          %v3389 = vadd.f32 %v3286, 1.0
          %v3390 = vadd.f32 %v3288, 1.0
          %v3391 = vadd.f32 %v3290, 1.0
          %v3392 = vadd.f32 %v3292, 1.0
          %v3393 = vadd.f32 %v3294, 1.0
          %v3394 = vadd.f32 %v3296, 1.0
          %v3395 = vadd.f32 %v3298, 1.0
          %v3396 = vadd.f32 %v3300, 1.0
          %v3397 = vadd.f32 %v3302, 1.0
          %v3398 = vadd.f32 %v3304, 1.0
          %v3399 = vadd.f32 %v3306, 1.0
          %v3400 = vadd.f32 %v3308, 1.0
          %v3401 = vadd.f32 %v3310, 1.0
          %v3402 = vadd.f32 %v3312, 1.0
          %v3403 = vadd.f32 %v3314, 1.0
          %v3404 = vadd.f32 %v3316, 1.0
          %v3405 = vadd.f32 %v3318, 1.0
          %v3406 = vadd.f32 %v3320, 1.0
          %v3407 = vadd.f32 %v3322, 1.0
          %v3408 = vadd.f32 %v3324, 1.0
          %v3409 = vadd.f32 %v3326, 1.0
          %v3410 = vadd.f32 %v3328, 1.0
          %v3411 = vadd.f32 %v3330, 1.0
          %v3412 = vadd.f32 %v3332, 1.0
          %v3413 = vadd.f32 %v3334, 1.0
          %v3414 = vadd.f32 %v3336, 1.0
          %v3415 = vadd.f32 %v3338, 1.0
          %v3416 = vadd.f32 %v3340, 1.0
          %v3417 = vadd.f32 %v3342, 1.0
          %v3418 = vadd.f32 %v3344, 1.0
          %v3419 = vadd.f32 %v3346, 1.0
          %v3420 = vadd.f32 %v3348, 1.0
          %v3421 = vadd.f32 %v3350, 1.0
          %v3422 = vadd.f32 %v3352, 1.0
          %v3423 = vadd.f32 %v3354, 1.0
          %v3424 = vadd.f32 %v3356, 1.0
          %v3425 = vadd.f32 %v3358, 1.0
          %v3426 = vadd.f32 %v3360, 1.0
          %v3427 = vadd.f32 %v3362, 1.0
          %v3428 = vadd.f32 %v3364, 1.0
          %v3429 = vrcp.pop %v3365
          %v3430 = vmul.f32 1.0, %v3429
          %v3431 = vrcp.pop %v3366
          %v3432 = vmul.f32 1.0, %v3431
          %v3433 = vrcp.pop %v3367
          %v3434 = vmul.f32 1.0, %v3433
          %v3435 = vrcp.pop %v3368
          %v3436 = vmul.f32 1.0, %v3435
          %v3437 = vrcp.pop %v3369
          %v3438 = vmul.f32 1.0, %v3437
          %v3439 = vrcp.pop %v3370
          %v3440 = vmul.f32 1.0, %v3439
          %v3441 = vrcp.pop %v3371
          %v3442 = vmul.f32 1.0, %v3441
          %v3443 = vrcp.pop %v3372
          %v3444 = vmul.f32 1.0, %v3443
          %v3445 = vrcp.pop %v3373
          %v3446 = vmul.f32 1.0, %v3445
          %v3447 = vrcp.pop %v3374
          %v3448 = vmul.f32 1.0, %v3447
          %v3449 = vrcp.pop %v3375
          %v3450 = vmul.f32 1.0, %v3449
          %v3451 = vrcp.pop %v3376
          %v3452 = vmul.f32 1.0, %v3451
          %v3453 = vrcp.pop %v3377
          %v3454 = vmul.f32 1.0, %v3453
          %v3455 = vrcp.pop %v3378
          %v3456 = vmul.f32 1.0, %v3455
          %v3457 = vrcp.pop %v3379
          %v3458 = vmul.f32 1.0, %v3457
          %v3459 = vrcp.pop %v3380
          %v3460 = vmul.f32 1.0, %v3459
          %v3461 = vrcp.pop %v3381
          %v3462 = vmul.f32 1.0, %v3461
          %v3463 = vrcp.pop %v3382
          %v3464 = vmul.f32 1.0, %v3463
          %v3465 = vrcp.pop %v3383
          %v3466 = vmul.f32 1.0, %v3465
          %v3467 = vrcp.pop %v3384
          %v3468 = vmul.f32 1.0, %v3467
          %v3469 = vrcp.pop %v3385
          %v3470 = vmul.f32 1.0, %v3469
          %v3471 = vrcp.pop %v3386
          %v3472 = vmul.f32 1.0, %v3471
          %v3473 = vrcp.pop %v3387
          %v3474 = vmul.f32 1.0, %v3473
          %v3475 = vrcp.pop %v3388
          %v3476 = vmul.f32 1.0, %v3475
          %v3477 = vrcp.pop %v3389
          %v3478 = vmul.f32 1.0, %v3477
          %v3479 = vrcp.pop %v3390
          %v3480 = vmul.f32 1.0, %v3479
          %v3481 = vrcp.pop %v3391
          %v3482 = vmul.f32 1.0, %v3481
          %v3483 = vrcp.pop %v3392
          %v3484 = vmul.f32 1.0, %v3483
          %v3485 = vrcp.pop %v3393
          %v3486 = vmul.f32 1.0, %v3485
          %v3487 = vrcp.pop %v3394
          %v3488 = vmul.f32 1.0, %v3487
          %v3489 = vrcp.pop %v3395
          %v3490 = vmul.f32 1.0, %v3489
          %v3491 = vrcp.pop %v3396
          %v3492 = vmul.f32 1.0, %v3491
          %v3493 = vrcp.pop %v3397
          %v3494 = vmul.f32 1.0, %v3493
          %v3495 = vrcp.pop %v3398
          %v3496 = vmul.f32 1.0, %v3495
          %v3497 = vrcp.pop %v3399
          %v3498 = vmul.f32 1.0, %v3497
          %v3499 = vrcp.pop %v3400
          %v3500 = vmul.f32 1.0, %v3499
          %v3501 = vrcp.pop %v3401
          %v3502 = vmul.f32 1.0, %v3501
          %v3503 = vrcp.pop %v3402
          %v3504 = vmul.f32 1.0, %v3503
          %v3505 = vrcp.pop %v3403
          %v3506 = vmul.f32 1.0, %v3505
          %v3507 = vrcp.pop %v3404
          %v3508 = vmul.f32 1.0, %v3507
          %v3509 = vrcp.pop %v3405
          %v3510 = vmul.f32 1.0, %v3509
          %v3511 = vrcp.pop %v3406
          %v3512 = vmul.f32 1.0, %v3511
          %v3513 = vrcp.pop %v3407
          %v3514 = vmul.f32 1.0, %v3513
          %v3515 = vrcp.pop %v3408
          %v3516 = vmul.f32 1.0, %v3515
          %v3517 = vrcp.pop %v3409
          %v3518 = vmul.f32 1.0, %v3517
          %v3519 = vrcp.pop %v3410
          %v3520 = vmul.f32 1.0, %v3519
          %v3521 = vrcp.pop %v3411
          %v3522 = vmul.f32 1.0, %v3521
          %v3523 = vrcp.pop %v3412
          %v3524 = vmul.f32 1.0, %v3523
          %v3525 = vrcp.pop %v3413
          %v3526 = vmul.f32 1.0, %v3525
          %v3527 = vrcp.pop %v3414
          %v3528 = vmul.f32 1.0, %v3527
          %v3529 = vrcp.pop %v3415
          %v3530 = vmul.f32 1.0, %v3529
          %v3531 = vrcp.pop %v3416
          %v3532 = vmul.f32 1.0, %v3531
          %v3533 = vrcp.pop %v3417
          %v3534 = vmul.f32 1.0, %v3533
          %v3535 = vrcp.pop %v3418
          %v3536 = vmul.f32 1.0, %v3535
          %v3537 = vrcp.pop %v3419
          %v3538 = vmul.f32 1.0, %v3537
          %v3539 = vrcp.pop %v3420
          %v3540 = vmul.f32 1.0, %v3539
          %v3541 = vrcp.pop %v3421
          %v3542 = vmul.f32 1.0, %v3541
          %v3543 = vrcp.pop %v3422
          %v3544 = vmul.f32 1.0, %v3543
          %v3545 = vrcp.pop %v3423
          %v3546 = vmul.f32 1.0, %v3545
          %v3547 = vrcp.pop %v3424
          %v3548 = vmul.f32 1.0, %v3547
          %v3549 = vrcp.pop %v3425
          %v3550 = vmul.f32 1.0, %v3549
          %v3551 = vrcp.pop %v3426
          %v3552 = vmul.f32 1.0, %v3551
          %v3553 = vrcp.pop %v3427
          %v3554 = vmul.f32 1.0, %v3553
          %v3555 = vrcp.pop %v3428
          %v3556 = vmul.f32 1.0, %v3555
          %v3557 = vmul.f32 %v2417, %v3430
          %v3558 = vmul.f32 %v2419, %v3432
          %v3559 = vmul.f32 %v2643, %v3434
          %v3560 = vmul.f32 %v2645, %v3436
          %v3561 = vmul.f32 %v2421, %v3438
          %v3562 = vmul.f32 %v2423, %v3440
          %v3563 = vmul.f32 %v2647, %v3442
          %v3564 = vmul.f32 %v2649, %v3444
          %v3565 = vmul.f32 %v2427, %v3446
          %v3566 = vmul.f32 %v2429, %v3448
          %v3567 = vmul.f32 %v2653, %v3450
          %v3568 = vmul.f32 %v2655, %v3452
          %v3569 = vmul.f32 %v2431, %v3454
          %v3570 = vmul.f32 %v2433, %v3456
          %v3571 = vmul.f32 %v2657, %v3458
          %v3572 = vmul.f32 %v2659, %v3460
          %v3573 = vmul.f32 %v2437, %v3462
          %v3574 = vmul.f32 %v2439, %v3464
          %v3575 = vmul.f32 %v2663, %v3466
          %v3576 = vmul.f32 %v2665, %v3468
          %v3577 = vmul.f32 %v2441, %v3470
          %v3578 = vmul.f32 %v2443, %v3472
          %v3579 = vmul.f32 %v2667, %v3474
          %v3580 = vmul.f32 %v2669, %v3476
          %v3581 = vmul.f32 %v2447, %v3478
          %v3582 = vmul.f32 %v2449, %v3480
          %v3583 = vmul.f32 %v2673, %v3482
          %v3584 = vmul.f32 %v2675, %v3484
          %v3585 = vmul.f32 %v2451, %v3486
          %v3586 = vmul.f32 %v2453, %v3488
          %v3587 = vmul.f32 %v2677, %v3490
          %v3588 = vmul.f32 %v2679, %v3492
          %v3589 = vmul.f32 %v2457, %v3494
          %v3590 = vmul.f32 %v2459, %v3496
          %v3591 = vmul.f32 %v2683, %v3498
          %v3592 = vmul.f32 %v2685, %v3500
          %v3593 = vmul.f32 %v2461, %v3502
          %v3594 = vmul.f32 %v2463, %v3504
          %v3595 = vmul.f32 %v2687, %v3506
          %v3596 = vmul.f32 %v2689, %v3508
          %v3597 = vmul.f32 %v2467, %v3510
          %v3598 = vmul.f32 %v2469, %v3512
          %v3599 = vmul.f32 %v2693, %v3514
          %v3600 = vmul.f32 %v2695, %v3516
          %v3601 = vmul.f32 %v2471, %v3518
          %v3602 = vmul.f32 %v2473, %v3520
          %v3603 = vmul.f32 %v2697, %v3522
          %v3604 = vmul.f32 %v2699, %v3524
          %v3605 = vmul.f32 %v2477, %v3526
          %v3606 = vmul.f32 %v2479, %v3528
          %v3607 = vmul.f32 %v2703, %v3530
          %v3608 = vmul.f32 %v2705, %v3532
          %v3609 = vmul.f32 %v2481, %v3534
          %v3610 = vmul.f32 %v2483, %v3536
          %v3611 = vmul.f32 %v2707, %v3538
          %v3612 = vmul.f32 %v2709, %v3540
          %v3613 = vmul.f32 %v2487, %v3542
          %v3614 = vmul.f32 %v2489, %v3544
          %v3615 = vmul.f32 %v2713, %v3546
          %v3616 = vmul.f32 %v2715, %v3548
          %v3617 = vmul.f32 %v2491, %v3550
          %v3618 = vmul.f32 %v2493, %v3552
          %v3619 = vmul.f32 %v2717, %v3554
          %v3620 = vmul.f32 %v2719, %v3556
          %v3621 = vmul.f32 %v3557, %v2869
          %v3622 = vmul.f32 %v3558, %v2871
          %v3623 = vmul.f32 %v3559, %v3095
          %v3624 = vmul.f32 %v3560, %v3097
          %v3625 = vmul.f32 %v3561, %v2873
          %v3626 = vmul.f32 %v3562, %v2875
          %v3627 = vmul.f32 %v3563, %v3099
          %v3628 = vmul.f32 %v3564, %v3101
          %v3629 = vmul.f32 %v3565, %v2879
          %v3630 = vmul.f32 %v3566, %v2881
          %v3631 = vmul.f32 %v3567, %v3105
          %v3632 = vmul.f32 %v3568, %v3107
          %v3633 = vmul.f32 %v3569, %v2883
          %v3634 = vmul.f32 %v3570, %v2885
          %v3635 = vmul.f32 %v3571, %v3109
          %v3636 = vmul.f32 %v3572, %v3111
          %v3637 = vmul.f32 %v3573, %v2889
          %v3638 = vmul.f32 %v3574, %v2891
          %v3639 = vmul.f32 %v3575, %v3115
          %v3640 = vmul.f32 %v3576, %v3117
          %v3641 = vmul.f32 %v3577, %v2893
          %v3642 = vmul.f32 %v3578, %v2895
          %v3643 = vmul.f32 %v3579, %v3119
          %v3644 = vmul.f32 %v3580, %v3121
          %v3645 = vmul.f32 %v3581, %v2899
          %v3646 = vmul.f32 %v3582, %v2901
          %v3647 = vmul.f32 %v3583, %v3125
          %v3648 = vmul.f32 %v3584, %v3127
          %v3649 = vmul.f32 %v3585, %v2903
          %v3650 = vmul.f32 %v3586, %v2905
          %v3651 = vmul.f32 %v3587, %v3129
          %v3652 = vmul.f32 %v3588, %v3131
          %v3653 = vmul.f32 %v3589, %v2909
          %v3654 = vmul.f32 %v3590, %v2911
          %v3655 = vmul.f32 %v3591, %v3135
          %v3656 = vmul.f32 %v3592, %v3137
          %v3657 = vmul.f32 %v3593, %v2913
          %v3658 = vmul.f32 %v3594, %v2915
          %v3659 = vmul.f32 %v3595, %v3139
          %v3660 = vmul.f32 %v3596, %v3141
          %v3661 = vmul.f32 %v3597, %v2919
          %v3662 = vmul.f32 %v3598, %v2921
          %v3663 = vmul.f32 %v3599, %v3145
          %v3664 = vmul.f32 %v3600, %v3147
          %v3665 = vmul.f32 %v3601, %v2923
          %v3666 = vmul.f32 %v3602, %v2925
          %v3667 = vmul.f32 %v3603, %v3149
          %v3668 = vmul.f32 %v3604, %v3151
          %v3669 = vmul.f32 %v3605, %v2929
          %v3670 = vmul.f32 %v3606, %v2931
          %v3671 = vmul.f32 %v3607, %v3155
          %v3672 = vmul.f32 %v3608, %v3157
          %v3673 = vmul.f32 %v3609, %v2933
          %v3674 = vmul.f32 %v3610, %v2935
          %v3675 = vmul.f32 %v3611, %v3159
          %v3676 = vmul.f32 %v3612, %v3161
          %v3677 = vmul.f32 %v3613, %v2939
          %v3678 = vmul.f32 %v3614, %v2941
          %v3679 = vmul.f32 %v3615, %v3165
          %v3680 = vmul.f32 %v3616, %v3167
          %v3681 = vmul.f32 %v3617, %v2943
          %v3682 = vmul.f32 %v3618, %v2945
          %v3683 = vmul.f32 %v3619, %v3169
          %v3684 = vmul.f32 %v3620, %v3171
          %v3685 = vpack.c.bf16 %v3625, %v3621
          %v3686 = vpack.c.bf16 %v3626, %v3622
          %v3687 = vpack.c.bf16 %v3627, %v3623
          %v3688 = vpack.c.bf16 %v3628, %v3624
          %v3689 = vpack.c.bf16 %v3633, %v3629
          %v3690 = vpack.c.bf16 %v3634, %v3630
          %v3691 = vpack.c.bf16 %v3635, %v3631
          %v3692 = vpack.c.bf16 %v3636, %v3632
          %v3693 = vpack.c.bf16 %v3641, %v3637
          %v3694 = vpack.c.bf16 %v3642, %v3638
          %v3695 = vpack.c.bf16 %v3643, %v3639
          %v3696 = vpack.c.bf16 %v3644, %v3640
          %v3697 = vpack.c.bf16 %v3649, %v3645
          %v3698 = vpack.c.bf16 %v3650, %v3646
          %v3699 = vpack.c.bf16 %v3651, %v3647
          %v3700 = vpack.c.bf16 %v3652, %v3648
          %v3701 = vpack.c.bf16 %v3657, %v3653
          %v3702 = vpack.c.bf16 %v3658, %v3654
          %v3703 = vpack.c.bf16 %v3659, %v3655
          %v3704 = vpack.c.bf16 %v3660, %v3656
          %v3705 = vpack.c.bf16 %v3665, %v3661
          %v3706 = vpack.c.bf16 %v3666, %v3662
          %v3707 = vpack.c.bf16 %v3667, %v3663
          %v3708 = vpack.c.bf16 %v3668, %v3664
          %v3709 = vpack.c.bf16 %v3673, %v3669
          %v3710 = vpack.c.bf16 %v3674, %v3670
          %v3711 = vpack.c.bf16 %v3675, %v3671
          %v3712 = vpack.c.bf16 %v3676, %v3672
          %v3713 = vpack.c.bf16 %v3681, %v3677
          %v3714 = vpack.c.bf16 %v3682, %v3678
          %v3715 = vpack.c.bf16 %v3683, %v3679
          %v3716 = vpack.c.bf16 %v3684, %v3680
          %v3717 = vld [vmem:[#allocation11] sm:$0xff]
          %v3718 = vld [vmem:[#allocation11 + $0x8] sm:$0xff]
          %v3719 = vld [vmem:[#allocation11 + $0x10] sm:$0xff]
          %v3720 = vld [vmem:[#allocation11 + $0x18] sm:$0xff]
          %v3721 = vld [vmem:[#allocation11 + $0x20] sm:$0xff]
          %v3722 = vld [vmem:[#allocation11 + $0x28] sm:$0xff]
          %v3723 = vld [vmem:[#allocation11 + $0x30] sm:$0xff]
          %v3724 = vld [vmem:[#allocation11 + $0x38] sm:$0xff]
          %v3725 = vld [vmem:[#allocation11 + $0x40] sm:$0xff]
          %v3726 = vld [vmem:[#allocation11 + $0x48] sm:$0xff]
          %v3727 = vld [vmem:[#allocation11 + $0x50] sm:$0xff]
          %v3728 = vld [vmem:[#allocation11 + $0x58] sm:$0xff]
          %v3729 = vld [vmem:[#allocation11 + $0x60] sm:$0xff]
          %v3730 = vld [vmem:[#allocation11 + $0x68] sm:$0xff]
          %v3731 = vld [vmem:[#allocation11 + $0x70] sm:$0xff]
          %v3732 = vld [vmem:[#allocation11 + $0x78] sm:$0xff]
          %v3733 = vld [vmem:[#allocation11 + $0x80] sm:$0xff]
          %v3734 = vld [vmem:[#allocation11 + $0x88] sm:$0xff]
          %v3735 = vld [vmem:[#allocation11 + $0x90] sm:$0xff]
          %v3736 = vld [vmem:[#allocation11 + $0x98] sm:$0xff]
          %v3737 = vld [vmem:[#allocation11 + $0xa0] sm:$0xff]
          %v3738 = vld [vmem:[#allocation11 + $0xa8] sm:$0xff]
          %v3739 = vld [vmem:[#allocation11 + $0xb0] sm:$0xff]
          %v3740 = vld [vmem:[#allocation11 + $0xb8] sm:$0xff]
          %v3741 = vld [vmem:[#allocation11 + $0xc0] sm:$0xff]
          %v3742 = vld [vmem:[#allocation11 + $0xc8] sm:$0xff]
          %v3743 = vld [vmem:[#allocation11 + $0xd0] sm:$0xff]
          %v3744 = vld [vmem:[#allocation11 + $0xd8] sm:$0xff]
          %v3745 = vld [vmem:[#allocation11 + $0xe0] sm:$0xff]
          %v3746 = vld [vmem:[#allocation11 + $0xe8] sm:$0xff]
          %v3747 = vld [vmem:[#allocation11 + $0xf0] sm:$0xff]
          %v3748 = vld [vmem:[#allocation11 + $0xf8] sm:$0xff]
          %v3749 = vld [vmem:[#allocation11 + $0x100] sm:$0xff]
          %v3750 = vld [vmem:[#allocation11 + $0x108] sm:$0xff]
          %v3751 = vld [vmem:[#allocation11 + $0x110] sm:$0xff]
          %v3752 = vld [vmem:[#allocation11 + $0x118] sm:$0xff]
          %v3753 = vld [vmem:[#allocation11 + $0x120] sm:$0xff]
          %v3754 = vld [vmem:[#allocation11 + $0x128] sm:$0xff]
          %v3755 = vld [vmem:[#allocation11 + $0x130] sm:$0xff]
          %v3756 = vld [vmem:[#allocation11 + $0x138] sm:$0xff]
          %v3757 = vld [vmem:[#allocation11 + $0x140] sm:$0xff]
          %v3758 = vld [vmem:[#allocation11 + $0x148] sm:$0xff]
          %v3759 = vld [vmem:[#allocation11 + $0x150] sm:$0xff]
          %v3760 = vld [vmem:[#allocation11 + $0x158] sm:$0xff]
          %v3761 = vld [vmem:[#allocation11 + $0x160] sm:$0xff]
          %v3762 = vld [vmem:[#allocation11 + $0x168] sm:$0xff]
          %v3763 = vld [vmem:[#allocation11 + $0x170] sm:$0xff]
          %v3764 = vld [vmem:[#allocation11 + $0x178] sm:$0xff]
          %v3765 = vld [vmem:[#allocation11 + $0x180] sm:$0xff]
          %v3766 = vld [vmem:[#allocation11 + $0x188] sm:$0xff]
          %v3767 = vld [vmem:[#allocation11 + $0x190] sm:$0xff]
          %v3768 = vld [vmem:[#allocation11 + $0x198] sm:$0xff]
          %v3769 = vld [vmem:[#allocation11 + $0x1a0] sm:$0xff]
          %v3770 = vld [vmem:[#allocation11 + $0x1a8] sm:$0xff]
          %v3771 = vld [vmem:[#allocation11 + $0x1b0] sm:$0xff]
          %v3772 = vld [vmem:[#allocation11 + $0x1b8] sm:$0xff]
          %v3773 = vld [vmem:[#allocation11 + $0x1c0] sm:$0xff]
          %v3774 = vld [vmem:[#allocation11 + $0x1c8] sm:$0xff]
          %v3775 = vld [vmem:[#allocation11 + $0x1d0] sm:$0xff]
          %v3776 = vld [vmem:[#allocation11 + $0x1d8] sm:$0xff]
          %v3777 = vld [vmem:[#allocation11 + $0x1e0] sm:$0xff]
          %v3778 = vld [vmem:[#allocation11 + $0x1e8] sm:$0xff]
          %v3779 = vld [vmem:[#allocation11 + $0x1f0] sm:$0xff]
          %v3780 = vld [vmem:[#allocation11 + $0x1f8] sm:$0xff]
          %v3781 = vld [vmem:[#allocation11 + $0x200] sm:$0xff]
          %v3782 = vld [vmem:[#allocation11 + $0x208] sm:$0xff]
          %v3783 = vld [vmem:[#allocation11 + $0x210] sm:$0xff]
          %v3784 = vld [vmem:[#allocation11 + $0x218] sm:$0xff]
          %v3785 = vld [vmem:[#allocation11 + $0x220] sm:$0xff]
          %v3786 = vld [vmem:[#allocation11 + $0x228] sm:$0xff]
          %v3787 = vld [vmem:[#allocation11 + $0x230] sm:$0xff]
          %v3788 = vld [vmem:[#allocation11 + $0x238] sm:$0xff]
          %v3789 = vld [vmem:[#allocation11 + $0x240] sm:$0xff]
          %v3790 = vld [vmem:[#allocation11 + $0x248] sm:$0xff]
          %v3791 = vld [vmem:[#allocation11 + $0x250] sm:$0xff]
          %v3792 = vld [vmem:[#allocation11 + $0x258] sm:$0xff]
          %v3793 = vld [vmem:[#allocation11 + $0x260] sm:$0xff]
          %v3794 = vld [vmem:[#allocation11 + $0x268] sm:$0xff]
          %v3795 = vld [vmem:[#allocation11 + $0x270] sm:$0xff]
          %v3796 = vld [vmem:[#allocation11 + $0x278] sm:$0xff]
          %v3797 = vld [vmem:[#allocation11 + $0x280] sm:$0xff]
          %v3798 = vld [vmem:[#allocation11 + $0x288] sm:$0xff]
          %v3799 = vld [vmem:[#allocation11 + $0x290] sm:$0xff]
          %v3800 = vld [vmem:[#allocation11 + $0x298] sm:$0xff]
          %v3801 = vld [vmem:[#allocation11 + $0x2a0] sm:$0xff]
          %v3802 = vld [vmem:[#allocation11 + $0x2a8] sm:$0xff]
          %v3803 = vld [vmem:[#allocation11 + $0x2b0] sm:$0xff]
          %v3804 = vld [vmem:[#allocation11 + $0x2b8] sm:$0xff]
          %v3805 = vld [vmem:[#allocation11 + $0x2c0] sm:$0xff]
          %v3806 = vld [vmem:[#allocation11 + $0x2c8] sm:$0xff]
          %v3807 = vld [vmem:[#allocation11 + $0x2d0] sm:$0xff]
          %v3808 = vld [vmem:[#allocation11 + $0x2d8] sm:$0xff]
          %v3809 = vld [vmem:[#allocation11 + $0x2e0] sm:$0xff]
          %v3810 = vld [vmem:[#allocation11 + $0x2e8] sm:$0xff]
          %v3811 = vld [vmem:[#allocation11 + $0x2f0] sm:$0xff]
          %v3812 = vld [vmem:[#allocation11 + $0x2f8] sm:$0xff]
          %v3813 = vld [vmem:[#allocation11 + $0x300] sm:$0xff]
          %v3814 = vld [vmem:[#allocation11 + $0x308] sm:$0xff]
          %v3815 = vld [vmem:[#allocation11 + $0x310] sm:$0xff]
          %v3816 = vld [vmem:[#allocation11 + $0x318] sm:$0xff]
          %v3817 = vld [vmem:[#allocation11 + $0x320] sm:$0xff]
          %v3818 = vld [vmem:[#allocation11 + $0x328] sm:$0xff]
          %v3819 = vld [vmem:[#allocation11 + $0x330] sm:$0xff]
          %v3820 = vld [vmem:[#allocation11 + $0x338] sm:$0xff]
          %v3821 = vld [vmem:[#allocation11 + $0x340] sm:$0xff]
          %v3822 = vld [vmem:[#allocation11 + $0x348] sm:$0xff]
          %v3823 = vld [vmem:[#allocation11 + $0x350] sm:$0xff]
          %v3824 = vld [vmem:[#allocation11 + $0x358] sm:$0xff]
          %v3825 = vld [vmem:[#allocation11 + $0x360] sm:$0xff]
          %v3826 = vld [vmem:[#allocation11 + $0x368] sm:$0xff]
          %v3827 = vld [vmem:[#allocation11 + $0x370] sm:$0xff]
          %v3828 = vld [vmem:[#allocation11 + $0x378] sm:$0xff]
          %v3829 = vld [vmem:[#allocation11 + $0x380] sm:$0xff]
          %v3830 = vld [vmem:[#allocation11 + $0x388] sm:$0xff]
          %v3831 = vld [vmem:[#allocation11 + $0x390] sm:$0xff]
          %v3832 = vld [vmem:[#allocation11 + $0x398] sm:$0xff]
          %v3833 = vld [vmem:[#allocation11 + $0x3a0] sm:$0xff]
          %v3834 = vld [vmem:[#allocation11 + $0x3a8] sm:$0xff]
          %v3835 = vld [vmem:[#allocation11 + $0x3b0] sm:$0xff]
          %v3836 = vld [vmem:[#allocation11 + $0x3b8] sm:$0xff]
          %v3837 = vld [vmem:[#allocation11 + $0x3c0] sm:$0xff]
          %v3838 = vld [vmem:[#allocation11 + $0x3c8] sm:$0xff]
          %v3839 = vld [vmem:[#allocation11 + $0x3d0] sm:$0xff]
          %v3840 = vld [vmem:[#allocation11 + $0x3d8] sm:$0xff]
          %v3841 = vld [vmem:[#allocation11 + $0x3e0] sm:$0xff]
          %v3842 = vld [vmem:[#allocation11 + $0x3e8] sm:$0xff]
          %v3843 = vld [vmem:[#allocation11 + $0x3f0] sm:$0xff]
          %v3844 = vld [vmem:[#allocation11 + $0x3f8] sm:$0xff]
          %v3973 = vunpack.c.l.b16 %v3717
          %v3974 = vunpack.c.h.b16 %v3717
          %v3975 = vunpack.c.l.b16 %v3718
          %v3976 = vunpack.c.h.b16 %v3718
          %v3977 = vunpack.c.l.b16 %v3719
          %v3978 = vunpack.c.h.b16 %v3719
          %v3979 = vunpack.c.l.b16 %v3720
          %v3980 = vunpack.c.h.b16 %v3720
          %v3981 = vunpack.c.l.b16 %v3721
          %v3982 = vunpack.c.h.b16 %v3721
          %v3983 = vunpack.c.l.b16 %v3722
          %v3984 = vunpack.c.h.b16 %v3722
          %v3985 = vunpack.c.l.b16 %v3723
          %v3986 = vunpack.c.h.b16 %v3723
          %v3987 = vunpack.c.l.b16 %v3724
          %v3988 = vunpack.c.h.b16 %v3724
          %v3989 = vunpack.c.l.b16 %v3725
          %v3990 = vunpack.c.h.b16 %v3725
          %v3991 = vunpack.c.l.b16 %v3726
          %v3992 = vunpack.c.h.b16 %v3726
          %v3993 = vunpack.c.l.b16 %v3727
          %v3994 = vunpack.c.h.b16 %v3727
          %v3995 = vunpack.c.l.b16 %v3728
          %v3996 = vunpack.c.h.b16 %v3728
          %v3997 = vunpack.c.l.b16 %v3729
          %v3998 = vunpack.c.h.b16 %v3729
          %v3999 = vunpack.c.l.b16 %v3730
          %v4000 = vunpack.c.h.b16 %v3730
          %v4001 = vunpack.c.l.b16 %v3731
          %v4002 = vunpack.c.h.b16 %v3731
          %v4003 = vunpack.c.l.b16 %v3732
          %v4004 = vunpack.c.h.b16 %v3732
          %v4005 = vunpack.c.l.b16 %v3733
          %v4006 = vunpack.c.h.b16 %v3733
          %v4007 = vunpack.c.l.b16 %v3734
          %v4008 = vunpack.c.h.b16 %v3734
          %v4009 = vunpack.c.l.b16 %v3735
          %v4010 = vunpack.c.h.b16 %v3735
          %v4011 = vunpack.c.l.b16 %v3736
          %v4012 = vunpack.c.h.b16 %v3736
          %v4013 = vunpack.c.l.b16 %v3737
          %v4014 = vunpack.c.h.b16 %v3737
          %v4015 = vunpack.c.l.b16 %v3738
          %v4016 = vunpack.c.h.b16 %v3738
          %v4017 = vunpack.c.l.b16 %v3739
          %v4018 = vunpack.c.h.b16 %v3739
          %v4019 = vunpack.c.l.b16 %v3740
          %v4020 = vunpack.c.h.b16 %v3740
          %v4021 = vunpack.c.l.b16 %v3741
          %v4022 = vunpack.c.h.b16 %v3741
          %v4023 = vunpack.c.l.b16 %v3742
          %v4024 = vunpack.c.h.b16 %v3742
          %v4025 = vunpack.c.l.b16 %v3743
          %v4026 = vunpack.c.h.b16 %v3743
          %v4027 = vunpack.c.l.b16 %v3744
          %v4028 = vunpack.c.h.b16 %v3744
          %v4029 = vunpack.c.l.b16 %v3745
          %v4030 = vunpack.c.h.b16 %v3745
          %v4031 = vunpack.c.l.b16 %v3746
          %v4032 = vunpack.c.h.b16 %v3746
          %v4033 = vunpack.c.l.b16 %v3747
          %v4034 = vunpack.c.h.b16 %v3747
          %v4035 = vunpack.c.l.b16 %v3748
          %v4036 = vunpack.c.h.b16 %v3748
          %v4037 = vunpack.c.l.b16 %v3749
          %v4038 = vunpack.c.h.b16 %v3749
          %v4039 = vunpack.c.l.b16 %v3750
          %v4040 = vunpack.c.h.b16 %v3750
          %v4041 = vunpack.c.l.b16 %v3751
          %v4042 = vunpack.c.h.b16 %v3751
          %v4043 = vunpack.c.l.b16 %v3752
          %v4044 = vunpack.c.h.b16 %v3752
          %v4045 = vunpack.c.l.b16 %v3753
          %v4046 = vunpack.c.h.b16 %v3753
          %v4047 = vunpack.c.l.b16 %v3754
          %v4048 = vunpack.c.h.b16 %v3754
          %v4049 = vunpack.c.l.b16 %v3755
          %v4050 = vunpack.c.h.b16 %v3755
          %v4051 = vunpack.c.l.b16 %v3756
          %v4052 = vunpack.c.h.b16 %v3756
          %v4053 = vunpack.c.l.b16 %v3757
          %v4054 = vunpack.c.h.b16 %v3757
          %v4055 = vunpack.c.l.b16 %v3758
          %v4056 = vunpack.c.h.b16 %v3758
          %v4057 = vunpack.c.l.b16 %v3759
          %v4058 = vunpack.c.h.b16 %v3759
          %v4059 = vunpack.c.l.b16 %v3760
          %v4060 = vunpack.c.h.b16 %v3760
          %v4061 = vunpack.c.l.b16 %v3761
          %v4062 = vunpack.c.h.b16 %v3761
          %v4063 = vunpack.c.l.b16 %v3762
          %v4064 = vunpack.c.h.b16 %v3762
          %v4065 = vunpack.c.l.b16 %v3763
          %v4066 = vunpack.c.h.b16 %v3763
          %v4067 = vunpack.c.l.b16 %v3764
          %v4068 = vunpack.c.h.b16 %v3764
          %v4069 = vunpack.c.l.b16 %v3765
          %v4070 = vunpack.c.h.b16 %v3765
          %v4071 = vunpack.c.l.b16 %v3766
          %v4072 = vunpack.c.h.b16 %v3766
          %v4073 = vunpack.c.l.b16 %v3767
          %v4074 = vunpack.c.h.b16 %v3767
          %v4075 = vunpack.c.l.b16 %v3768
          %v4076 = vunpack.c.h.b16 %v3768
          %v4077 = vunpack.c.l.b16 %v3769
          %v4078 = vunpack.c.h.b16 %v3769
          %v4079 = vunpack.c.l.b16 %v3770
          %v4080 = vunpack.c.h.b16 %v3770
          %v4081 = vunpack.c.l.b16 %v3771
          %v4082 = vunpack.c.h.b16 %v3771
          %v4083 = vunpack.c.l.b16 %v3772
          %v4084 = vunpack.c.h.b16 %v3772
          %v4085 = vunpack.c.l.b16 %v3773
          %v4086 = vunpack.c.h.b16 %v3773
          %v4087 = vunpack.c.l.b16 %v3774
          %v4088 = vunpack.c.h.b16 %v3774
          %v4089 = vunpack.c.l.b16 %v3775
          %v4090 = vunpack.c.h.b16 %v3775
          %v4091 = vunpack.c.l.b16 %v3776
          %v4092 = vunpack.c.h.b16 %v3776
          %v4093 = vunpack.c.l.b16 %v3777
          %v4094 = vunpack.c.h.b16 %v3777
          %v4095 = vunpack.c.l.b16 %v3778
          %v4096 = vunpack.c.h.b16 %v3778
          %v4097 = vunpack.c.l.b16 %v3779
          %v4098 = vunpack.c.h.b16 %v3779
          %v4099 = vunpack.c.l.b16 %v3780
          %v4100 = vunpack.c.h.b16 %v3780
          %v4101 = vunpack.c.l.b16 %v3781
          %v4102 = vunpack.c.h.b16 %v3781
          %v4103 = vunpack.c.l.b16 %v3782
          %v4104 = vunpack.c.h.b16 %v3782
          %v4105 = vunpack.c.l.b16 %v3783
          %v4106 = vunpack.c.h.b16 %v3783
          %v4107 = vunpack.c.l.b16 %v3784
          %v4108 = vunpack.c.h.b16 %v3784
          %v4109 = vunpack.c.l.b16 %v3785
          %v4110 = vunpack.c.h.b16 %v3785
          %v4111 = vunpack.c.l.b16 %v3786
          %v4112 = vunpack.c.h.b16 %v3786
          %v4113 = vunpack.c.l.b16 %v3787
          %v4114 = vunpack.c.h.b16 %v3787
          %v4115 = vunpack.c.l.b16 %v3788
          %v4116 = vunpack.c.h.b16 %v3788
          %v4117 = vunpack.c.l.b16 %v3789
          %v4118 = vunpack.c.h.b16 %v3789
          %v4119 = vunpack.c.l.b16 %v3790
          %v4120 = vunpack.c.h.b16 %v3790
          %v4121 = vunpack.c.l.b16 %v3791
          %v4122 = vunpack.c.h.b16 %v3791
          %v4123 = vunpack.c.l.b16 %v3792
          %v4124 = vunpack.c.h.b16 %v3792
          %v4125 = vunpack.c.l.b16 %v3793
          %v4126 = vunpack.c.h.b16 %v3793
          %v4127 = vunpack.c.l.b16 %v3794
          %v4128 = vunpack.c.h.b16 %v3794
          %v4129 = vunpack.c.l.b16 %v3795
          %v4130 = vunpack.c.h.b16 %v3795
          %v4131 = vunpack.c.l.b16 %v3796
          %v4132 = vunpack.c.h.b16 %v3796
          %v4133 = vunpack.c.l.b16 %v3797
          %v4134 = vunpack.c.h.b16 %v3797
          %v4135 = vunpack.c.l.b16 %v3798
          %v4136 = vunpack.c.h.b16 %v3798
          %v4137 = vunpack.c.l.b16 %v3799
          %v4138 = vunpack.c.h.b16 %v3799
          %v4139 = vunpack.c.l.b16 %v3800
          %v4140 = vunpack.c.h.b16 %v3800
          %v4141 = vunpack.c.l.b16 %v3801
          %v4142 = vunpack.c.h.b16 %v3801
          %v4143 = vunpack.c.l.b16 %v3802
          %v4144 = vunpack.c.h.b16 %v3802
          %v4145 = vunpack.c.l.b16 %v3803
          %v4146 = vunpack.c.h.b16 %v3803
          %v4147 = vunpack.c.l.b16 %v3804
          %v4148 = vunpack.c.h.b16 %v3804
          %v4149 = vunpack.c.l.b16 %v3805
          %v4150 = vunpack.c.h.b16 %v3805
          %v4151 = vunpack.c.l.b16 %v3806
          %v4152 = vunpack.c.h.b16 %v3806
          %v4153 = vunpack.c.l.b16 %v3807
          %v4154 = vunpack.c.h.b16 %v3807
          %v4155 = vunpack.c.l.b16 %v3808
          %v4156 = vunpack.c.h.b16 %v3808
          %v4157 = vunpack.c.l.b16 %v3809
          %v4158 = vunpack.c.h.b16 %v3809
          %v4159 = vunpack.c.l.b16 %v3810
          %v4160 = vunpack.c.h.b16 %v3810
          %v4161 = vunpack.c.l.b16 %v3811
          %v4162 = vunpack.c.h.b16 %v3811
          %v4163 = vunpack.c.l.b16 %v3812
          %v4164 = vunpack.c.h.b16 %v3812
          %v4165 = vunpack.c.l.b16 %v3813
          %v4166 = vunpack.c.h.b16 %v3813
          %v4167 = vunpack.c.l.b16 %v3814
          %v4168 = vunpack.c.h.b16 %v3814
          %v4169 = vunpack.c.l.b16 %v3815
          %v4170 = vunpack.c.h.b16 %v3815
          %v4171 = vunpack.c.l.b16 %v3816
          %v4172 = vunpack.c.h.b16 %v3816
          %v4173 = vunpack.c.l.b16 %v3817
          %v4174 = vunpack.c.h.b16 %v3817
          %v4175 = vunpack.c.l.b16 %v3818
          %v4176 = vunpack.c.h.b16 %v3818
          %v4177 = vunpack.c.l.b16 %v3819
          %v4178 = vunpack.c.h.b16 %v3819
          %v4179 = vunpack.c.l.b16 %v3820
          %v4180 = vunpack.c.h.b16 %v3820
          %v4181 = vunpack.c.l.b16 %v3821
          %v4182 = vunpack.c.h.b16 %v3821
          %v4183 = vunpack.c.l.b16 %v3822
          %v4184 = vunpack.c.h.b16 %v3822
          %v4185 = vunpack.c.l.b16 %v3823
          %v4186 = vunpack.c.h.b16 %v3823
          %v4187 = vunpack.c.l.b16 %v3824
          %v4188 = vunpack.c.h.b16 %v3824
          %v4189 = vunpack.c.l.b16 %v3825
          %v4190 = vunpack.c.h.b16 %v3825
          %v4191 = vunpack.c.l.b16 %v3826
          %v4192 = vunpack.c.h.b16 %v3826
          %v4193 = vunpack.c.l.b16 %v3827
          %v4194 = vunpack.c.h.b16 %v3827
          %v4195 = vunpack.c.l.b16 %v3828
          %v4196 = vunpack.c.h.b16 %v3828
          %v4197 = vunpack.c.l.b16 %v3829
          %v4198 = vunpack.c.h.b16 %v3829
          %v4199 = vunpack.c.l.b16 %v3830
          %v4200 = vunpack.c.h.b16 %v3830
          %v4201 = vunpack.c.l.b16 %v3831
          %v4202 = vunpack.c.h.b16 %v3831
          %v4203 = vunpack.c.l.b16 %v3832
          %v4204 = vunpack.c.h.b16 %v3832
          %v4205 = vunpack.c.l.b16 %v3833
          %v4206 = vunpack.c.h.b16 %v3833
          %v4207 = vunpack.c.l.b16 %v3834
          %v4208 = vunpack.c.h.b16 %v3834
          %v4209 = vunpack.c.l.b16 %v3835
          %v4210 = vunpack.c.h.b16 %v3835
          %v4211 = vunpack.c.l.b16 %v3836
          %v4212 = vunpack.c.h.b16 %v3836
          %v4213 = vunpack.c.l.b16 %v3837
          %v4214 = vunpack.c.h.b16 %v3837
          %v4215 = vunpack.c.l.b16 %v3838
          %v4216 = vunpack.c.h.b16 %v3838
          %v4217 = vunpack.c.l.b16 %v3839
          %v4218 = vunpack.c.h.b16 %v3839
          %v4219 = vunpack.c.l.b16 %v3840
          %v4220 = vunpack.c.h.b16 %v3840
          %v4221 = vunpack.c.l.b16 %v3841
          %v4222 = vunpack.c.h.b16 %v3841
          %v4223 = vunpack.c.l.b16 %v3842
          %v4224 = vunpack.c.h.b16 %v3842
          %v4225 = vunpack.c.l.b16 %v3843
          %v4226 = vunpack.c.h.b16 %v3843
          %v4227 = vunpack.c.l.b16 %v3844
          %v4228 = vunpack.c.h.b16 %v3844
          %v4229 = vpack.c.b16 %v3977, %v3973
          %v4230 = vpack.c.b16 %v3978, %v3974
          %v4231 = vpack.c.b16 %v3979, %v3975
          %v4232 = vpack.c.b16 %v3980, %v3976
          %v4233 = vpack.c.b16 %v3985, %v3981
          %v4234 = vpack.c.b16 %v3986, %v3982
          %v4235 = vpack.c.b16 %v3987, %v3983
          %v4236 = vpack.c.b16 %v3988, %v3984
          %v4237 = vpack.c.b16 %v3993, %v3989
          %v4238 = vpack.c.b16 %v3994, %v3990
          %v4239 = vpack.c.b16 %v3995, %v3991
          %v4240 = vpack.c.b16 %v3996, %v3992
          %v4241 = vpack.c.b16 %v4001, %v3997
          %v4242 = vpack.c.b16 %v4002, %v3998
          %v4243 = vpack.c.b16 %v4003, %v3999
          %v4244 = vpack.c.b16 %v4004, %v4000
          %v4245 = vpack.c.b16 %v4009, %v4005
          %v4246 = vpack.c.b16 %v4010, %v4006
          %v4247 = vpack.c.b16 %v4011, %v4007
          %v4248 = vpack.c.b16 %v4012, %v4008
          %v4249 = vpack.c.b16 %v4017, %v4013
          %v4250 = vpack.c.b16 %v4018, %v4014
          %v4251 = vpack.c.b16 %v4019, %v4015
          %v4252 = vpack.c.b16 %v4020, %v4016
          %v4253 = vpack.c.b16 %v4025, %v4021
          %v4254 = vpack.c.b16 %v4026, %v4022
          %v4255 = vpack.c.b16 %v4027, %v4023
          %v4256 = vpack.c.b16 %v4028, %v4024
          %v4257 = vpack.c.b16 %v4033, %v4029
          %v4258 = vpack.c.b16 %v4034, %v4030
          %v4259 = vpack.c.b16 %v4035, %v4031
          %v4260 = vpack.c.b16 %v4036, %v4032
          %v4261 = vpack.c.b16 %v4041, %v4037
          %v4262 = vpack.c.b16 %v4042, %v4038
          %v4263 = vpack.c.b16 %v4043, %v4039
          %v4264 = vpack.c.b16 %v4044, %v4040
          %v4265 = vpack.c.b16 %v4049, %v4045
          %v4266 = vpack.c.b16 %v4050, %v4046
          %v4267 = vpack.c.b16 %v4051, %v4047
          %v4268 = vpack.c.b16 %v4052, %v4048
          %v4269 = vpack.c.b16 %v4057, %v4053
          %v4270 = vpack.c.b16 %v4058, %v4054
          %v4271 = vpack.c.b16 %v4059, %v4055
          %v4272 = vpack.c.b16 %v4060, %v4056
          %v4273 = vpack.c.b16 %v4065, %v4061
          %v4274 = vpack.c.b16 %v4066, %v4062
          %v4275 = vpack.c.b16 %v4067, %v4063
          %v4276 = vpack.c.b16 %v4068, %v4064
          %v4277 = vpack.c.b16 %v4073, %v4069
          %v4278 = vpack.c.b16 %v4074, %v4070
          %v4279 = vpack.c.b16 %v4075, %v4071
          %v4280 = vpack.c.b16 %v4076, %v4072
          %v4281 = vpack.c.b16 %v4081, %v4077
          %v4282 = vpack.c.b16 %v4082, %v4078
          %v4283 = vpack.c.b16 %v4083, %v4079
          %v4284 = vpack.c.b16 %v4084, %v4080
          %v4285 = vpack.c.b16 %v4089, %v4085
          %v4286 = vpack.c.b16 %v4090, %v4086
          %v4287 = vpack.c.b16 %v4091, %v4087
          %v4288 = vpack.c.b16 %v4092, %v4088
          %v4289 = vpack.c.b16 %v4097, %v4093
          %v4290 = vpack.c.b16 %v4098, %v4094
          %v4291 = vpack.c.b16 %v4099, %v4095
          %v4292 = vpack.c.b16 %v4100, %v4096
          %v4293 = vpack.c.b16 %v4105, %v4101
          %v4294 = vpack.c.b16 %v4106, %v4102
          %v4295 = vpack.c.b16 %v4107, %v4103
          %v4296 = vpack.c.b16 %v4108, %v4104
          %v4297 = vpack.c.b16 %v4113, %v4109
          %v4298 = vpack.c.b16 %v4114, %v4110
          %v4299 = vpack.c.b16 %v4115, %v4111
          %v4300 = vpack.c.b16 %v4116, %v4112
          %v4301 = vpack.c.b16 %v4121, %v4117
          %v4302 = vpack.c.b16 %v4122, %v4118
          %v4303 = vpack.c.b16 %v4123, %v4119
          %v4304 = vpack.c.b16 %v4124, %v4120
          %v4305 = vpack.c.b16 %v4129, %v4125
          %v4306 = vpack.c.b16 %v4130, %v4126
          %v4307 = vpack.c.b16 %v4131, %v4127
          %v4308 = vpack.c.b16 %v4132, %v4128
          %v4309 = vpack.c.b16 %v4137, %v4133
          %v4310 = vpack.c.b16 %v4138, %v4134
          %v4311 = vpack.c.b16 %v4139, %v4135
          %v4312 = vpack.c.b16 %v4140, %v4136
          %v4313 = vpack.c.b16 %v4145, %v4141
          %v4314 = vpack.c.b16 %v4146, %v4142
          %v4315 = vpack.c.b16 %v4147, %v4143
          %v4316 = vpack.c.b16 %v4148, %v4144
          %v4317 = vpack.c.b16 %v4153, %v4149
          %v4318 = vpack.c.b16 %v4154, %v4150
          %v4319 = vpack.c.b16 %v4155, %v4151
          %v4320 = vpack.c.b16 %v4156, %v4152
          %v4321 = vpack.c.b16 %v4161, %v4157
          %v4322 = vpack.c.b16 %v4162, %v4158
          %v4323 = vpack.c.b16 %v4163, %v4159
          %v4324 = vpack.c.b16 %v4164, %v4160
          %v4325 = vpack.c.b16 %v4169, %v4165
          %v4326 = vpack.c.b16 %v4170, %v4166
          %v4327 = vpack.c.b16 %v4171, %v4167
          %v4328 = vpack.c.b16 %v4172, %v4168
          %v4329 = vpack.c.b16 %v4177, %v4173
          %v4330 = vpack.c.b16 %v4178, %v4174
          %v4331 = vpack.c.b16 %v4179, %v4175
          %v4332 = vpack.c.b16 %v4180, %v4176
          %v4333 = vpack.c.b16 %v4185, %v4181
          %v4334 = vpack.c.b16 %v4186, %v4182
          %v4335 = vpack.c.b16 %v4187, %v4183
          %v4336 = vpack.c.b16 %v4188, %v4184
          %v4337 = vpack.c.b16 %v4193, %v4189
          %v4338 = vpack.c.b16 %v4194, %v4190
          %v4339 = vpack.c.b16 %v4195, %v4191
          %v4340 = vpack.c.b16 %v4196, %v4192
          %v4341 = vpack.c.b16 %v4201, %v4197
          %v4342 = vpack.c.b16 %v4202, %v4198
          %v4343 = vpack.c.b16 %v4203, %v4199
          %v4344 = vpack.c.b16 %v4204, %v4200
          %v4345 = vpack.c.b16 %v4209, %v4205
          %v4346 = vpack.c.b16 %v4210, %v4206
          %v4347 = vpack.c.b16 %v4211, %v4207
          %v4348 = vpack.c.b16 %v4212, %v4208
          %v4349 = vpack.c.b16 %v4217, %v4213
          %v4350 = vpack.c.b16 %v4218, %v4214
          %v4351 = vpack.c.b16 %v4219, %v4215
          %v4352 = vpack.c.b16 %v4220, %v4216
          %v4353 = vpack.c.b16 %v4225, %v4221
          %v4354 = vpack.c.b16 %v4226, %v4222
          %v4355 = vpack.c.b16 %v4227, %v4223
          %v4356 = vpack.c.b16 %v4228, %v4224
          %4485 = vmatprep.subr.bf16.mxu0 %v4230
          %4486 = vmatpush1.bf16.msra.mxu0 %v4229
          %4487 = vmatprep.subr.bf16.mxu0 %v4234
          %4488 = vmatpush1.bf16.msra.mxu0 %v4233
          %4489 = vmatprep.subr.bf16.mxu0 %v4238
          %4490 = vmatpush1.bf16.msra.mxu0 %v4237
          %4491 = vmatprep.subr.bf16.mxu0 %v4242
          %4492 = vmatpush1.bf16.msra.mxu0 %v4241
          %4493 = vmatprep.subr.bf16.mxu0 %v4246
          %4494 = vmatpush1.bf16.msra.mxu0 %v4245
          %4495 = vmatprep.subr.bf16.mxu0 %v4250
          %4496 = vmatpush1.bf16.msra.mxu0 %v4249
          %4497 = vmatprep.subr.bf16.mxu0 %v4254
          %4498 = vmatpush1.bf16.msra.mxu0 %v4253
          %4499 = vmatprep.subr.bf16.mxu0 %v4258
          %4500 = vmatpush1.bf16.msra.mxu0 %v4257
          %4501 = vmatprep.subr.bf16.mxu0 %v4262
          %4502 = vmatpush1.bf16.msra.mxu0 %v4261
          %4503 = vmatprep.subr.bf16.mxu0 %v4266
          %4504 = vmatpush1.bf16.msra.mxu0 %v4265
          %4505 = vmatprep.subr.bf16.mxu0 %v4270
          %4506 = vmatpush1.bf16.msra.mxu0 %v4269
          %4507 = vmatprep.subr.bf16.mxu0 %v4274
          %4508 = vmatpush1.bf16.msra.mxu0 %v4273
          %4509 = vmatprep.subr.bf16.mxu0 %v4278
          %4510 = vmatpush1.bf16.msra.mxu0 %v4277
          %4511 = vmatprep.subr.bf16.mxu0 %v4282
          %4512 = vmatpush1.bf16.msra.mxu0 %v4281
          %4513 = vmatprep.subr.bf16.mxu0 %v4286
          %4514 = vmatpush1.bf16.msra.mxu0 %v4285
          %4515 = vmatprep.subr.bf16.mxu0 %v4290
          %4516 = vmatpush1.bf16.msra.mxu0 %v4289
          %4517 = vmatprep.mubr.bf16.mxu0 %v3686
          %4518 = vmatmul.mubr.bf16.gmra.mrb[0].mxu0 %v3685
          %v4519 = vpop.f32.mrb[0].mxu0
          %v4520 = vadd.f32 0.0, %v4519
          %v4521 = vpop.f32.mrb[0].mxu0
          %v4522 = vadd.f32 0.0, %v4521
          %v4523 = vpop.f32.mrb[0].mxu0
          %v4524 = vadd.f32 0.0, %v4523
          %v4525 = vpop.f32.mrb[0].mxu0
          %v4526 = vadd.f32 0.0, %v4525
          %4527 = vmatprep.mubr.bf16.mxu0 %v3690
          %4528 = vmatmul.mubr.bf16.gmra.mrb[0].mxu0 %v3689
          %v4529 = vpop.f32.mrb[0].mxu0
          %v4530 = vadd.f32 0.0, %v4529
          %v4531 = vpop.f32.mrb[0].mxu0
          %v4532 = vadd.f32 0.0, %v4531
          %v4533 = vpop.f32.mrb[0].mxu0
          %v4534 = vadd.f32 0.0, %v4533
          %v4535 = vpop.f32.mrb[0].mxu0
          %v4536 = vadd.f32 0.0, %v4535
          %4537 = vmatprep.mubr.bf16.mxu0 %v3694
          %4538 = vmatmul.mubr.bf16.gmra.mrb[0].mxu0 %v3693
          %v4539 = vpop.f32.mrb[0].mxu0
          %v4540 = vadd.f32 0.0, %v4539
          %v4541 = vpop.f32.mrb[0].mxu0
          %v4542 = vadd.f32 0.0, %v4541
          %v4543 = vpop.f32.mrb[0].mxu0
          %v4544 = vadd.f32 0.0, %v4543
          %v4545 = vpop.f32.mrb[0].mxu0
          %v4546 = vadd.f32 0.0, %v4545
          %4547 = vmatprep.mubr.bf16.mxu0 %v3698
          %4548 = vmatmul.mubr.bf16.gmra.mrb[0].mxu0 %v3697
          %v4549 = vpop.f32.mrb[0].mxu0
          %v4550 = vadd.f32 0.0, %v4549
          %v4551 = vpop.f32.mrb[0].mxu0
          %v4552 = vadd.f32 0.0, %v4551
          %v4553 = vpop.f32.mrb[0].mxu0
          %v4554 = vadd.f32 0.0, %v4553
          %v4555 = vpop.f32.mrb[0].mxu0
          %v4556 = vadd.f32 0.0, %v4555
          %4557 = vmatprep.mubr.bf16.mxu0 %v3702
          %4558 = vmatmul.mubr.bf16.gmra.mrb[0].mxu0 %v3701
          %v4559 = vpop.f32.mrb[0].mxu0
          %v4560 = vadd.f32 0.0, %v4559
          %v4561 = vpop.f32.mrb[0].mxu0
          %v4562 = vadd.f32 0.0, %v4561
          %v4563 = vpop.f32.mrb[0].mxu0
          %v4564 = vadd.f32 0.0, %v4563
          %v4565 = vpop.f32.mrb[0].mxu0
          %v4566 = vadd.f32 0.0, %v4565
          %4567 = vmatprep.mubr.bf16.mxu0 %v3706
          %4568 = vmatmul.mubr.bf16.gmra.mrb[0].mxu0 %v3705
          %v4569 = vpop.f32.mrb[0].mxu0
          %v4570 = vadd.f32 0.0, %v4569
          %v4571 = vpop.f32.mrb[0].mxu0
          %v4572 = vadd.f32 0.0, %v4571
          %v4573 = vpop.f32.mrb[0].mxu0
          %v4574 = vadd.f32 0.0, %v4573
          %v4575 = vpop.f32.mrb[0].mxu0
          %v4576 = vadd.f32 0.0, %v4575
          %4577 = vmatprep.mubr.bf16.mxu0 %v3710
          %4578 = vmatmul.mubr.bf16.gmra.mrb[0].mxu0 %v3709
          %v4579 = vpop.f32.mrb[0].mxu0
          %v4580 = vadd.f32 0.0, %v4579
          %v4581 = vpop.f32.mrb[0].mxu0
          %v4582 = vadd.f32 0.0, %v4581
          %v4583 = vpop.f32.mrb[0].mxu0
          %v4584 = vadd.f32 0.0, %v4583
          %v4585 = vpop.f32.mrb[0].mxu0
          %v4586 = vadd.f32 0.0, %v4585
          %4587 = vmatprep.mubr.bf16.mxu0 %v3714
          %4588 = vmatmul.mubr.bf16.gmra.mrb[0].mxu0 %v3713
          %v4589 = vpop.f32.mrb[0].mxu0
          %v4590 = vadd.f32 0.0, %v4589
          %v4591 = vpop.f32.mrb[0].mxu0
          %v4592 = vadd.f32 0.0, %v4591
          %v4593 = vpop.f32.mrb[0].mxu0
          %v4594 = vadd.f32 0.0, %v4593
          %v4595 = vpop.f32.mrb[0].mxu0
          %v4596 = vadd.f32 0.0, %v4595
          %4597 = vdwg.mxu0
          %4598 = vmatprep.subr.bf16.mxu0 %v4294
          %4599 = vmatpush1.bf16.msra.mxu0 %v4293
          %4600 = vmatprep.subr.bf16.mxu0 %v4298
          %4601 = vmatpush1.bf16.msra.mxu0 %v4297
          %4602 = vmatprep.subr.bf16.mxu0 %v4302
          %4603 = vmatpush1.bf16.msra.mxu0 %v4301
          %4604 = vmatprep.subr.bf16.mxu0 %v4306
          %4605 = vmatpush1.bf16.msra.mxu0 %v4305
          %4606 = vmatprep.subr.bf16.mxu0 %v4310
          %4607 = vmatpush1.bf16.msra.mxu0 %v4309
          %4608 = vmatprep.subr.bf16.mxu0 %v4314
          %4609 = vmatpush1.bf16.msra.mxu0 %v4313
          %4610 = vmatprep.subr.bf16.mxu0 %v4318
          %4611 = vmatpush1.bf16.msra.mxu0 %v4317
          %4612 = vmatprep.subr.bf16.mxu0 %v4322
          %4613 = vmatpush1.bf16.msra.mxu0 %v4321
          %4614 = vmatprep.subr.bf16.mxu0 %v4326
          %4615 = vmatpush1.bf16.msra.mxu0 %v4325
          %4616 = vmatprep.subr.bf16.mxu0 %v4330
          %4617 = vmatpush1.bf16.msra.mxu0 %v4329
          %4618 = vmatprep.subr.bf16.mxu0 %v4334
          %4619 = vmatpush1.bf16.msra.mxu0 %v4333
          %4620 = vmatprep.subr.bf16.mxu0 %v4338
          %4621 = vmatpush1.bf16.msra.mxu0 %v4337
          %4622 = vmatprep.subr.bf16.mxu0 %v4342
          %4623 = vmatpush1.bf16.msra.mxu0 %v4341
          %4624 = vmatprep.subr.bf16.mxu0 %v4346
          %4625 = vmatpush1.bf16.msra.mxu0 %v4345
          %4626 = vmatprep.subr.bf16.mxu0 %v4350
          %4627 = vmatpush1.bf16.msra.mxu0 %v4349
          %4628 = vmatprep.subr.bf16.mxu0 %v4354
          %4629 = vmatpush1.bf16.msra.mxu0 %v4353
          %4630 = vmatprep.mubr.bf16.mxu0 %v3688
          %4631 = vmatmul.mubr.bf16.gmra.mrb[0].mxu0 %v3687
          %v4632 = vpop.f32.mrb[0].mxu0
          %v4633 = vadd.f32 %v4520, %v4632
          %v4634 = vpop.f32.mrb[0].mxu0
          %v4635 = vadd.f32 %v4522, %v4634
          %v4636 = vpop.f32.mrb[0].mxu0
          %v4637 = vadd.f32 %v4524, %v4636
          %v4638 = vpop.f32.mrb[0].mxu0
          %v4639 = vadd.f32 %v4526, %v4638
          %4640 = vmatprep.mubr.bf16.mxu0 %v3692
          %4641 = vmatmul.mubr.bf16.gmra.mrb[0].mxu0 %v3691
          %v4642 = vpop.f32.mrb[0].mxu0
          %v4643 = vadd.f32 %v4530, %v4642
          %v4644 = vpop.f32.mrb[0].mxu0
          %v4645 = vadd.f32 %v4532, %v4644
          %v4646 = vpop.f32.mrb[0].mxu0
          %v4647 = vadd.f32 %v4534, %v4646
          %v4648 = vpop.f32.mrb[0].mxu0
          %v4649 = vadd.f32 %v4536, %v4648
          %4650 = vmatprep.mubr.bf16.mxu0 %v3696
          %4651 = vmatmul.mubr.bf16.gmra.mrb[0].mxu0 %v3695
          %v4652 = vpop.f32.mrb[0].mxu0
          %v4653 = vadd.f32 %v4540, %v4652
          %v4654 = vpop.f32.mrb[0].mxu0
          %v4655 = vadd.f32 %v4542, %v4654
          %v4656 = vpop.f32.mrb[0].mxu0
          %v4657 = vadd.f32 %v4544, %v4656
          %v4658 = vpop.f32.mrb[0].mxu0
          %v4659 = vadd.f32 %v4546, %v4658
          %4660 = vmatprep.mubr.bf16.mxu0 %v3700
          %4661 = vmatmul.mubr.bf16.gmra.mrb[0].mxu0 %v3699
          %v4662 = vpop.f32.mrb[0].mxu0
          %v4663 = vadd.f32 %v4550, %v4662
          %v4664 = vpop.f32.mrb[0].mxu0
          %v4665 = vadd.f32 %v4552, %v4664
          %v4666 = vpop.f32.mrb[0].mxu0
          %v4667 = vadd.f32 %v4554, %v4666
          %v4668 = vpop.f32.mrb[0].mxu0
          %v4669 = vadd.f32 %v4556, %v4668
          %4670 = vmatprep.mubr.bf16.mxu0 %v3704
          %4671 = vmatmul.mubr.bf16.gmra.mrb[0].mxu0 %v3703
          %v4672 = vpop.f32.mrb[0].mxu0
          %v4673 = vadd.f32 %v4560, %v4672
          %v4674 = vpop.f32.mrb[0].mxu0
          %v4675 = vadd.f32 %v4562, %v4674
          %v4676 = vpop.f32.mrb[0].mxu0
          %v4677 = vadd.f32 %v4564, %v4676
          %v4678 = vpop.f32.mrb[0].mxu0
          %v4679 = vadd.f32 %v4566, %v4678
          %4680 = vmatprep.mubr.bf16.mxu0 %v3708
          %4681 = vmatmul.mubr.bf16.gmra.mrb[0].mxu0 %v3707
          %v4682 = vpop.f32.mrb[0].mxu0
          %v4683 = vadd.f32 %v4570, %v4682
          %v4684 = vpop.f32.mrb[0].mxu0
          %v4685 = vadd.f32 %v4572, %v4684
          %v4686 = vpop.f32.mrb[0].mxu0
          %v4687 = vadd.f32 %v4574, %v4686
          %v4688 = vpop.f32.mrb[0].mxu0
          %v4689 = vadd.f32 %v4576, %v4688
          %4690 = vmatprep.mubr.bf16.mxu0 %v3712
          %4691 = vmatmul.mubr.bf16.gmra.mrb[0].mxu0 %v3711
          %v4692 = vpop.f32.mrb[0].mxu0
          %v4693 = vadd.f32 %v4580, %v4692
          %v4694 = vpop.f32.mrb[0].mxu0
          %v4695 = vadd.f32 %v4582, %v4694
          %v4696 = vpop.f32.mrb[0].mxu0
          %v4697 = vadd.f32 %v4584, %v4696
          %v4698 = vpop.f32.mrb[0].mxu0
          %v4699 = vadd.f32 %v4586, %v4698
          %4700 = vmatprep.mubr.bf16.mxu0 %v3716
          %4701 = vmatmul.mubr.bf16.gmra.mrb[0].mxu0 %v3715
          %v4702 = vpop.f32.mrb[0].mxu0
          %v4703 = vadd.f32 %v4590, %v4702
          %v4704 = vpop.f32.mrb[0].mxu0
          %v4705 = vadd.f32 %v4592, %v4704
          %v4706 = vpop.f32.mrb[0].mxu0
          %v4707 = vadd.f32 %v4594, %v4706
          %v4708 = vpop.f32.mrb[0].mxu0
          %v4709 = vadd.f32 %v4596, %v4708
          %4710 = vdwg.mxu0
          %4711 = vmatprep.subr.bf16.mxu0 %v4232
          %4712 = vmatpush1.bf16.msra.mxu0 %v4231
          %4713 = vmatprep.subr.bf16.mxu0 %v4236
          %4714 = vmatpush1.bf16.msra.mxu0 %v4235
          %4715 = vmatprep.subr.bf16.mxu0 %v4240
          %4716 = vmatpush1.bf16.msra.mxu0 %v4239
          %4717 = vmatprep.subr.bf16.mxu0 %v4244
          %4718 = vmatpush1.bf16.msra.mxu0 %v4243
          %4719 = vmatprep.subr.bf16.mxu0 %v4248
          %4720 = vmatpush1.bf16.msra.mxu0 %v4247
          %4721 = vmatprep.subr.bf16.mxu0 %v4252
          %4722 = vmatpush1.bf16.msra.mxu0 %v4251
          %4723 = vmatprep.subr.bf16.mxu0 %v4256
          %4724 = vmatpush1.bf16.msra.mxu0 %v4255
          %4725 = vmatprep.subr.bf16.mxu0 %v4260
          %4726 = vmatpush1.bf16.msra.mxu0 %v4259
          %4727 = vmatprep.subr.bf16.mxu0 %v4264
          %4728 = vmatpush1.bf16.msra.mxu0 %v4263
          %4729 = vmatprep.subr.bf16.mxu0 %v4268
          %4730 = vmatpush1.bf16.msra.mxu0 %v4267
          %4731 = vmatprep.subr.bf16.mxu0 %v4272
          %4732 = vmatpush1.bf16.msra.mxu0 %v4271
          %4733 = vmatprep.subr.bf16.mxu0 %v4276
          %4734 = vmatpush1.bf16.msra.mxu0 %v4275
          %4735 = vmatprep.subr.bf16.mxu0 %v4280
          %4736 = vmatpush1.bf16.msra.mxu0 %v4279
          %4737 = vmatprep.subr.bf16.mxu0 %v4284
          %4738 = vmatpush1.bf16.msra.mxu0 %v4283
          %4739 = vmatprep.subr.bf16.mxu0 %v4288
          %4740 = vmatpush1.bf16.msra.mxu0 %v4287
          %4741 = vmatprep.subr.bf16.mxu0 %v4292
          %4742 = vmatpush1.bf16.msra.mxu0 %v4291
          %4743 = vmatprep.mubr.bf16.mxu0 %v3686
          %4744 = vmatmul.mubr.bf16.gmra.mrb[0].mxu0 %v3685
          %v4745 = vpop.f32.mrb[0].mxu0
          %v4746 = vadd.f32 0.0, %v4745
          %v4747 = vpop.f32.mrb[0].mxu0
          %v4748 = vadd.f32 0.0, %v4747
          %v4749 = vpop.f32.mrb[0].mxu0
          %v4750 = vadd.f32 0.0, %v4749
          %v4751 = vpop.f32.mrb[0].mxu0
          %v4752 = vadd.f32 0.0, %v4751
          %4753 = vmatprep.mubr.bf16.mxu0 %v3690
          %4754 = vmatmul.mubr.bf16.gmra.mrb[0].mxu0 %v3689
          %v4755 = vpop.f32.mrb[0].mxu0
          %v4756 = vadd.f32 0.0, %v4755
          %v4757 = vpop.f32.mrb[0].mxu0
          %v4758 = vadd.f32 0.0, %v4757
          %v4759 = vpop.f32.mrb[0].mxu0
          %v4760 = vadd.f32 0.0, %v4759
          %v4761 = vpop.f32.mrb[0].mxu0
          %v4762 = vadd.f32 0.0, %v4761
          %4763 = vmatprep.mubr.bf16.mxu0 %v3694
          %4764 = vmatmul.mubr.bf16.gmra.mrb[0].mxu0 %v3693
          %v4765 = vpop.f32.mrb[0].mxu0
          %v4766 = vadd.f32 0.0, %v4765
          %v4767 = vpop.f32.mrb[0].mxu0
          %v4768 = vadd.f32 0.0, %v4767
          %v4769 = vpop.f32.mrb[0].mxu0
          %v4770 = vadd.f32 0.0, %v4769
          %v4771 = vpop.f32.mrb[0].mxu0
          %v4772 = vadd.f32 0.0, %v4771
          %4773 = vmatprep.mubr.bf16.mxu0 %v3698
          %4774 = vmatmul.mubr.bf16.gmra.mrb[0].mxu0 %v3697
          %v4775 = vpop.f32.mrb[0].mxu0
          %v4776 = vadd.f32 0.0, %v4775
          %v4777 = vpop.f32.mrb[0].mxu0
          %v4778 = vadd.f32 0.0, %v4777
          %v4779 = vpop.f32.mrb[0].mxu0
          %v4780 = vadd.f32 0.0, %v4779
          %v4781 = vpop.f32.mrb[0].mxu0
          %v4782 = vadd.f32 0.0, %v4781
          %4783 = vmatprep.mubr.bf16.mxu0 %v3702
          %4784 = vmatmul.mubr.bf16.gmra.mrb[0].mxu0 %v3701
          %v4785 = vpop.f32.mrb[0].mxu0
          %v4786 = vadd.f32 0.0, %v4785
          %v4787 = vpop.f32.mrb[0].mxu0
          %v4788 = vadd.f32 0.0, %v4787
          %v4789 = vpop.f32.mrb[0].mxu0
          %v4790 = vadd.f32 0.0, %v4789
          %v4791 = vpop.f32.mrb[0].mxu0
          %v4792 = vadd.f32 0.0, %v4791
          %4793 = vmatprep.mubr.bf16.mxu0 %v3706
          %4794 = vmatmul.mubr.bf16.gmra.mrb[0].mxu0 %v3705
          %v4795 = vpop.f32.mrb[0].mxu0
          %v4796 = vadd.f32 0.0, %v4795
          %v4797 = vpop.f32.mrb[0].mxu0
          %v4798 = vadd.f32 0.0, %v4797
          %v4799 = vpop.f32.mrb[0].mxu0
          %v4800 = vadd.f32 0.0, %v4799
          %v4801 = vpop.f32.mrb[0].mxu0
          %v4802 = vadd.f32 0.0, %v4801
          %4803 = vmatprep.mubr.bf16.mxu0 %v3710
          %4804 = vmatmul.mubr.bf16.gmra.mrb[0].mxu0 %v3709
          %v4805 = vpop.f32.mrb[0].mxu0
          %v4806 = vadd.f32 0.0, %v4805
          %v4807 = vpop.f32.mrb[0].mxu0
          %v4808 = vadd.f32 0.0, %v4807
          %v4809 = vpop.f32.mrb[0].mxu0
          %v4810 = vadd.f32 0.0, %v4809
          %v4811 = vpop.f32.mrb[0].mxu0
          %v4812 = vadd.f32 0.0, %v4811
          %4813 = vmatprep.mubr.bf16.mxu0 %v3714
          %4814 = vmatmul.mubr.bf16.gmra.mrb[0].mxu0 %v3713
          %v4815 = vpop.f32.mrb[0].mxu0
          %v4816 = vadd.f32 0.0, %v4815
          %v4817 = vpop.f32.mrb[0].mxu0
          %v4818 = vadd.f32 0.0, %v4817
          %v4819 = vpop.f32.mrb[0].mxu0
          %v4820 = vadd.f32 0.0, %v4819
          %v4821 = vpop.f32.mrb[0].mxu0
          %v4822 = vadd.f32 0.0, %v4821
          %4823 = vdwg.mxu0
          %4824 = vmatprep.subr.bf16.mxu0 %v4296
          %4825 = vmatpush1.bf16.msra.mxu0 %v4295
          %4826 = vmatprep.subr.bf16.mxu0 %v4300
          %4827 = vmatpush1.bf16.msra.mxu0 %v4299
          %4828 = vmatprep.subr.bf16.mxu0 %v4304
          %4829 = vmatpush1.bf16.msra.mxu0 %v4303
          %4830 = vmatprep.subr.bf16.mxu0 %v4308
          %4831 = vmatpush1.bf16.msra.mxu0 %v4307
          %4832 = vmatprep.subr.bf16.mxu0 %v4312
          %4833 = vmatpush1.bf16.msra.mxu0 %v4311
          %4834 = vmatprep.subr.bf16.mxu0 %v4316
          %4835 = vmatpush1.bf16.msra.mxu0 %v4315
          %4836 = vmatprep.subr.bf16.mxu0 %v4320
          %4837 = vmatpush1.bf16.msra.mxu0 %v4319
          %4838 = vmatprep.subr.bf16.mxu0 %v4324
          %4839 = vmatpush1.bf16.msra.mxu0 %v4323
          %4840 = vmatprep.subr.bf16.mxu0 %v4328
          %4841 = vmatpush1.bf16.msra.mxu0 %v4327
          %4842 = vmatprep.subr.bf16.mxu0 %v4332
          %4843 = vmatpush1.bf16.msra.mxu0 %v4331
          %4844 = vmatprep.subr.bf16.mxu0 %v4336
          %4845 = vmatpush1.bf16.msra.mxu0 %v4335
          %4846 = vmatprep.subr.bf16.mxu0 %v4340
          %4847 = vmatpush1.bf16.msra.mxu0 %v4339
          %4848 = vmatprep.subr.bf16.mxu0 %v4344
          %4849 = vmatpush1.bf16.msra.mxu0 %v4343
          %4850 = vmatprep.subr.bf16.mxu0 %v4348
          %4851 = vmatpush1.bf16.msra.mxu0 %v4347
          %4852 = vmatprep.subr.bf16.mxu0 %v4352
          %4853 = vmatpush1.bf16.msra.mxu0 %v4351
          %4854 = vmatprep.subr.bf16.mxu0 %v4356
          %4855 = vmatpush1.bf16.msra.mxu0 %v4355
          %4856 = vmatprep.mubr.bf16.mxu0 %v3688
          %4857 = vmatmul.mubr.bf16.gmra.mrb[0].mxu0 %v3687
          %v4858 = vpop.f32.mrb[0].mxu0
          %v4859 = vadd.f32 %v4746, %v4858
          %v4860 = vpop.f32.mrb[0].mxu0
          %v4861 = vadd.f32 %v4748, %v4860
          %v4862 = vpop.f32.mrb[0].mxu0
          %v4863 = vadd.f32 %v4750, %v4862
          %v4864 = vpop.f32.mrb[0].mxu0
          %v4865 = vadd.f32 %v4752, %v4864
          %4866 = vmatprep.mubr.bf16.mxu0 %v3692
          %4867 = vmatmul.mubr.bf16.gmra.mrb[0].mxu0 %v3691
          %v4868 = vpop.f32.mrb[0].mxu0
          %v4869 = vadd.f32 %v4756, %v4868
          %v4870 = vpop.f32.mrb[0].mxu0
          %v4871 = vadd.f32 %v4758, %v4870
          %v4872 = vpop.f32.mrb[0].mxu0
          %v4873 = vadd.f32 %v4760, %v4872
          %v4874 = vpop.f32.mrb[0].mxu0
          %v4875 = vadd.f32 %v4762, %v4874
          %4876 = vmatprep.mubr.bf16.mxu0 %v3696
          %4877 = vmatmul.mubr.bf16.gmra.mrb[0].mxu0 %v3695
          %v4878 = vpop.f32.mrb[0].mxu0
          %v4879 = vadd.f32 %v4766, %v4878
          %v4880 = vpop.f32.mrb[0].mxu0
          %v4881 = vadd.f32 %v4768, %v4880
          %v4882 = vpop.f32.mrb[0].mxu0
          %v4883 = vadd.f32 %v4770, %v4882
          %v4884 = vpop.f32.mrb[0].mxu0
          %v4885 = vadd.f32 %v4772, %v4884
          %4886 = vmatprep.mubr.bf16.mxu0 %v3700
          %4887 = vmatmul.mubr.bf16.gmra.mrb[0].mxu0 %v3699
          %v4888 = vpop.f32.mrb[0].mxu0
          %v4889 = vadd.f32 %v4776, %v4888
          %v4890 = vpop.f32.mrb[0].mxu0
          %v4891 = vadd.f32 %v4778, %v4890
          %v4892 = vpop.f32.mrb[0].mxu0
          %v4893 = vadd.f32 %v4780, %v4892
          %v4894 = vpop.f32.mrb[0].mxu0
          %v4895 = vadd.f32 %v4782, %v4894
          %4896 = vmatprep.mubr.bf16.mxu0 %v3704
          %4897 = vmatmul.mubr.bf16.gmra.mrb[0].mxu0 %v3703
          %v4898 = vpop.f32.mrb[0].mxu0
          %v4899 = vadd.f32 %v4786, %v4898
          %v4900 = vpop.f32.mrb[0].mxu0
          %v4901 = vadd.f32 %v4788, %v4900
          %v4902 = vpop.f32.mrb[0].mxu0
          %v4903 = vadd.f32 %v4790, %v4902
          %v4904 = vpop.f32.mrb[0].mxu0
          %v4905 = vadd.f32 %v4792, %v4904
          %4906 = vmatprep.mubr.bf16.mxu0 %v3708
          %4907 = vmatmul.mubr.bf16.gmra.mrb[0].mxu0 %v3707
          %v4908 = vpop.f32.mrb[0].mxu0
          %v4909 = vadd.f32 %v4796, %v4908
          %v4910 = vpop.f32.mrb[0].mxu0
          %v4911 = vadd.f32 %v4798, %v4910
          %v4912 = vpop.f32.mrb[0].mxu0
          %v4913 = vadd.f32 %v4800, %v4912
          %v4914 = vpop.f32.mrb[0].mxu0
          %v4915 = vadd.f32 %v4802, %v4914
          %4916 = vmatprep.mubr.bf16.mxu0 %v3712
          %4917 = vmatmul.mubr.bf16.gmra.mrb[0].mxu0 %v3711
          %v4918 = vpop.f32.mrb[0].mxu0
          %v4919 = vadd.f32 %v4806, %v4918
          %v4920 = vpop.f32.mrb[0].mxu0
          %v4921 = vadd.f32 %v4808, %v4920
          %v4922 = vpop.f32.mrb[0].mxu0
          %v4923 = vadd.f32 %v4810, %v4922
          %v4924 = vpop.f32.mrb[0].mxu0
          %v4925 = vadd.f32 %v4812, %v4924
          %4926 = vmatprep.mubr.bf16.mxu0 %v3716
          %4927 = vmatmul.mubr.bf16.gmra.mrb[0].mxu0 %v3715
          %v4928 = vpop.f32.mrb[0].mxu0
          %v4929 = vadd.f32 %v4816, %v4928
          %v4930 = vpop.f32.mrb[0].mxu0
          %v4931 = vadd.f32 %v4818, %v4930
          %v4932 = vpop.f32.mrb[0].mxu0
          %v4933 = vadd.f32 %v4820, %v4932
          %v4934 = vpop.f32.mrb[0].mxu0
          %v4935 = vadd.f32 %v4822, %v4934
          %4936 = vdwg.mxu0
          %v4937 = vld [vmem:[%s533] sm:$0xff]
          %v4938 = vld [vmem:[%s533 + $0x8] sm:$0xff]
          %v4939 = vld [vmem:[%s533 + $0x10] sm:$0xff]
          %v4940 = vld [vmem:[%s533 + $0x18] sm:$0xff]
          %v4941 = vld [vmem:[%s533 + $0x20] sm:$0xff]
          %v4942 = vld [vmem:[%s533 + $0x28] sm:$0xff]
          %v4943 = vld [vmem:[%s533 + $0x30] sm:$0xff]
          %v4944 = vld [vmem:[%s533 + $0x38] sm:$0xff]
          %v4945 = vld [vmem:[%s533 + $0x40] sm:$0xff]
          %v4946 = vld [vmem:[%s533 + $0x48] sm:$0xff]
          %v4947 = vld [vmem:[%s533 + $0x50] sm:$0xff]
          %v4948 = vld [vmem:[%s533 + $0x58] sm:$0xff]
          %v4949 = vld [vmem:[%s533 + $0x60] sm:$0xff]
          %v4950 = vld [vmem:[%s533 + $0x68] sm:$0xff]
          %v4951 = vld [vmem:[%s533 + $0x70] sm:$0xff]
          %v4952 = vld [vmem:[%s533 + $0x78] sm:$0xff]
          %4954 = vset.pattern.permute.xlu0 0
          %4955 = vperm.xlu0 %4954, %v4937
          %v4956 = vpop.permute.xlu0 %4955
          %4959 = vset.pattern.permute.xlu0 0
          %4960 = vperm.xlu0 %4959, %v4938
          %v4961 = vpop.permute.xlu0 %4960
          %4964 = vset.pattern.permute.xlu0 0
          %4965 = vperm.xlu0 %4964, %v4939
          %v4966 = vpop.permute.xlu0 %4965
          %4969 = vset.pattern.permute.xlu0 0
          %4970 = vperm.xlu0 %4969, %v4940
          %v4971 = vpop.permute.xlu0 %4970
          %4974 = vset.pattern.permute.xlu0 0
          %4975 = vperm.xlu0 %4974, %v4941
          %v4976 = vpop.permute.xlu0 %4975
          %4979 = vset.pattern.permute.xlu0 0
          %4980 = vperm.xlu0 %4979, %v4942
          %v4981 = vpop.permute.xlu0 %4980
          %4984 = vset.pattern.permute.xlu0 0
          %4985 = vperm.xlu0 %4984, %v4943
          %v4986 = vpop.permute.xlu0 %4985
          %4989 = vset.pattern.permute.xlu0 0
          %4990 = vperm.xlu0 %4989, %v4944
          %v4991 = vpop.permute.xlu0 %4990
          %4994 = vset.pattern.permute.xlu0 0
          %4995 = vperm.xlu0 %4994, %v4945
          %v4996 = vpop.permute.xlu0 %4995
          %4999 = vset.pattern.permute.xlu0 0
          %5000 = vperm.xlu0 %4999, %v4946
          %v5001 = vpop.permute.xlu0 %5000
          %5004 = vset.pattern.permute.xlu0 0
          %5005 = vperm.xlu0 %5004, %v4947
          %v5006 = vpop.permute.xlu0 %5005
          %5009 = vset.pattern.permute.xlu0 0
          %5010 = vperm.xlu0 %5009, %v4948
          %v5011 = vpop.permute.xlu0 %5010
          %5014 = vset.pattern.permute.xlu0 0
          %5015 = vperm.xlu0 %5014, %v4949
          %v5016 = vpop.permute.xlu0 %5015
          %5019 = vset.pattern.permute.xlu0 0
          %5020 = vperm.xlu0 %5019, %v4950
          %v5021 = vpop.permute.xlu0 %5020
          %5024 = vset.pattern.permute.xlu0 0
          %5025 = vperm.xlu0 %5024, %v4951
          %v5026 = vpop.permute.xlu0 %5025
          %5029 = vset.pattern.permute.xlu0 0
          %5030 = vperm.xlu0 %5029, %v4952
          %v5031 = vpop.permute.xlu0 %5030
          %v5033 = vmul.f32 %v4956, %v4633
          %v5034 = vmul.f32 %v4956, %v4635
          %v5035 = vmul.f32 %v4956, %v4859
          %v5036 = vmul.f32 %v4956, %v4861
          %v5037 = vmul.f32 %v4961, %v4637
          %v5038 = vmul.f32 %v4961, %v4639
          %v5039 = vmul.f32 %v4961, %v4863
          %v5040 = vmul.f32 %v4961, %v4865
          %v5041 = vmul.f32 %v4966, %v4643
          %v5042 = vmul.f32 %v4966, %v4645
          %v5043 = vmul.f32 %v4966, %v4869
          %v5044 = vmul.f32 %v4966, %v4871
          %v5045 = vmul.f32 %v4971, %v4647
          %v5046 = vmul.f32 %v4971, %v4649
          %v5047 = vmul.f32 %v4971, %v4873
          %v5048 = vmul.f32 %v4971, %v4875
          %v5049 = vmul.f32 %v4976, %v4653
          %v5050 = vmul.f32 %v4976, %v4655
          %v5051 = vmul.f32 %v4976, %v4879
          %v5052 = vmul.f32 %v4976, %v4881
          %v5053 = vmul.f32 %v4981, %v4657
          %v5054 = vmul.f32 %v4981, %v4659
          %v5055 = vmul.f32 %v4981, %v4883
          %v5056 = vmul.f32 %v4981, %v4885
          %v5057 = vmul.f32 %v4986, %v4663
          %v5058 = vmul.f32 %v4986, %v4665
          %v5059 = vmul.f32 %v4986, %v4889
          %v5060 = vmul.f32 %v4986, %v4891
          %v5061 = vmul.f32 %v4991, %v4667
          %v5062 = vmul.f32 %v4991, %v4669
          %v5063 = vmul.f32 %v4991, %v4893
          %v5064 = vmul.f32 %v4991, %v4895
          %v5065 = vmul.f32 %v4996, %v4673
          %v5066 = vmul.f32 %v4996, %v4675
          %v5067 = vmul.f32 %v4996, %v4899
          %v5068 = vmul.f32 %v4996, %v4901
          %v5069 = vmul.f32 %v5001, %v4677
          %v5070 = vmul.f32 %v5001, %v4679
          %v5071 = vmul.f32 %v5001, %v4903
          %v5072 = vmul.f32 %v5001, %v4905
          %v5073 = vmul.f32 %v5006, %v4683
          %v5074 = vmul.f32 %v5006, %v4685
          %v5075 = vmul.f32 %v5006, %v4909
          %v5076 = vmul.f32 %v5006, %v4911
          %v5077 = vmul.f32 %v5011, %v4687
          %v5078 = vmul.f32 %v5011, %v4689
          %v5079 = vmul.f32 %v5011, %v4913
          %v5080 = vmul.f32 %v5011, %v4915
          %v5081 = vmul.f32 %v5016, %v4693
          %v5082 = vmul.f32 %v5016, %v4695
          %v5083 = vmul.f32 %v5016, %v4919
          %v5084 = vmul.f32 %v5016, %v4921
          %v5085 = vmul.f32 %v5021, %v4697
          %v5086 = vmul.f32 %v5021, %v4699
          %v5087 = vmul.f32 %v5021, %v4923
          %v5088 = vmul.f32 %v5021, %v4925
          %v5089 = vmul.f32 %v5026, %v4703
          %v5090 = vmul.f32 %v5026, %v4705
          %v5091 = vmul.f32 %v5026, %v4929
          %v5092 = vmul.f32 %v5026, %v4931
          %v5093 = vmul.f32 %v5031, %v4707
          %v5094 = vmul.f32 %v5031, %v4709
          %v5095 = vmul.f32 %v5031, %v4933
          %v5096 = vmul.f32 %v5031, %v4935
          %5097 = vst [vmem:[#allocation2] sm:$0xff] %v5033
          %5098 = vst [vmem:[#allocation2 + $0x8] sm:$0xff] %v5034
          %5099 = vst [vmem:[#allocation2 + $0x10] sm:$0xff] %v5035
          %5100 = vst [vmem:[#allocation2 + $0x18] sm:$0xff] %v5036
          %5101 = vst [vmem:[#allocation2 + $0x20] sm:$0xff] %v5037
          %5102 = vst [vmem:[#allocation2 + $0x28] sm:$0xff] %v5038
          %5103 = vst [vmem:[#allocation2 + $0x30] sm:$0xff] %v5039
          %5104 = vst [vmem:[#allocation2 + $0x38] sm:$0xff] %v5040
          %5105 = vst [vmem:[#allocation2 + $0x40] sm:$0xff] %v5041
          %5106 = vst [vmem:[#allocation2 + $0x48] sm:$0xff] %v5042
          %5107 = vst [vmem:[#allocation2 + $0x50] sm:$0xff] %v5043
          %5108 = vst [vmem:[#allocation2 + $0x58] sm:$0xff] %v5044
          %5109 = vst [vmem:[#allocation2 + $0x60] sm:$0xff] %v5045
          %5110 = vst [vmem:[#allocation2 + $0x68] sm:$0xff] %v5046
          %5111 = vst [vmem:[#allocation2 + $0x70] sm:$0xff] %v5047
          %5112 = vst [vmem:[#allocation2 + $0x78] sm:$0xff] %v5048
          %5113 = vst [vmem:[#allocation2 + $0x80] sm:$0xff] %v5049
          %5114 = vst [vmem:[#allocation2 + $0x88] sm:$0xff] %v5050
          %5115 = vst [vmem:[#allocation2 + $0x90] sm:$0xff] %v5051
          %5116 = vst [vmem:[#allocation2 + $0x98] sm:$0xff] %v5052
          %5117 = vst [vmem:[#allocation2 + $0xa0] sm:$0xff] %v5053
          %5118 = vst [vmem:[#allocation2 + $0xa8] sm:$0xff] %v5054
          %5119 = vst [vmem:[#allocation2 + $0xb0] sm:$0xff] %v5055
          %5120 = vst [vmem:[#allocation2 + $0xb8] sm:$0xff] %v5056
          %5121 = vst [vmem:[#allocation2 + $0xc0] sm:$0xff] %v5057
          %5122 = vst [vmem:[#allocation2 + $0xc8] sm:$0xff] %v5058
          %5123 = vst [vmem:[#allocation2 + $0xd0] sm:$0xff] %v5059
          %5124 = vst [vmem:[#allocation2 + $0xd8] sm:$0xff] %v5060
          %5125 = vst [vmem:[#allocation2 + $0xe0] sm:$0xff] %v5061
          %5126 = vst [vmem:[#allocation2 + $0xe8] sm:$0xff] %v5062
          %5127 = vst [vmem:[#allocation2 + $0xf0] sm:$0xff] %v5063
          %5128 = vst [vmem:[#allocation2 + $0xf8] sm:$0xff] %v5064
          %5129 = vst [vmem:[#allocation2 + $0x100] sm:$0xff] %v5065
          %5130 = vst [vmem:[#allocation2 + $0x108] sm:$0xff] %v5066
          %5131 = vst [vmem:[#allocation2 + $0x110] sm:$0xff] %v5067
          %5132 = vst [vmem:[#allocation2 + $0x118] sm:$0xff] %v5068
          %5133 = vst [vmem:[#allocation2 + $0x120] sm:$0xff] %v5069
          %5134 = vst [vmem:[#allocation2 + $0x128] sm:$0xff] %v5070
          %5135 = vst [vmem:[#allocation2 + $0x130] sm:$0xff] %v5071
          %5136 = vst [vmem:[#allocation2 + $0x138] sm:$0xff] %v5072
          %5137 = vst [vmem:[#allocation2 + $0x140] sm:$0xff] %v5073
          %5138 = vst [vmem:[#allocation2 + $0x148] sm:$0xff] %v5074
          %5139 = vst [vmem:[#allocation2 + $0x150] sm:$0xff] %v5075
          %5140 = vst [vmem:[#allocation2 + $0x158] sm:$0xff] %v5076
          %5141 = vst [vmem:[#allocation2 + $0x160] sm:$0xff] %v5077
          %5142 = vst [vmem:[#allocation2 + $0x168] sm:$0xff] %v5078
          %5143 = vst [vmem:[#allocation2 + $0x170] sm:$0xff] %v5079
          %5144 = vst [vmem:[#allocation2 + $0x178] sm:$0xff] %v5080
          %5145 = vst [vmem:[#allocation2 + $0x180] sm:$0xff] %v5081
          %5146 = vst [vmem:[#allocation2 + $0x188] sm:$0xff] %v5082
          %5147 = vst [vmem:[#allocation2 + $0x190] sm:$0xff] %v5083
          %5148 = vst [vmem:[#allocation2 + $0x198] sm:$0xff] %v5084
          %5149 = vst [vmem:[#allocation2 + $0x1a0] sm:$0xff] %v5085
          %5150 = vst [vmem:[#allocation2 + $0x1a8] sm:$0xff] %v5086
          %5151 = vst [vmem:[#allocation2 + $0x1b0] sm:$0xff] %v5087
          %5152 = vst [vmem:[#allocation2 + $0x1b8] sm:$0xff] %v5088
          %5153 = vst [vmem:[#allocation2 + $0x1c0] sm:$0xff] %v5089
          %5154 = vst [vmem:[#allocation2 + $0x1c8] sm:$0xff] %v5090
          %5155 = vst [vmem:[#allocation2 + $0x1d0] sm:$0xff] %v5091
          %5156 = vst [vmem:[#allocation2 + $0x1d8] sm:$0xff] %v5092
          %5157 = vst [vmem:[#allocation2 + $0x1e0] sm:$0xff] %v5093
          %5158 = vst [vmem:[#allocation2 + $0x1e8] sm:$0xff] %v5094
          %5159 = vst [vmem:[#allocation2 + $0x1f0] sm:$0xff] %v5095
          %5160 = vst [vmem:[#allocation2 + $0x1f8] sm:$0xff] %v5096
        $region68: #{sp_qwen2_moe_sparse_moe_block.1} parent=51 // pred_fallthru
          _
        %s5161 = smul.u32 %s42, 8
        %s5162 = sadd.s32 %s5161, %s43
        %s5163 = sld [smem:[#allocation4 + %s5162]]
        %p5164 = scmp.gt.s32.totalorder %s5163, 0
        // Predicated region
        $region69: #{sp_qwen2_moe_sparse_moe_block.1} parent=51 // pred_check
          %p5165 = pneg %p5164
        $region70: #{sp_qwen2_moe_sparse_moe_block.1} parent=51 // pred_check_branch
          %5167 = sbr.rel (%p5165) target = $region72
        $region71: #{sp_qwen2_moe_sparse_moe_block.1} parent=51 // pred_region
          %v5168 = vld [vmem:[%s496] sm:$0xf]
          %v5169 = vld [vmem:[%s496 + $0x4] sm:$0xf]
          %v5170 = vld [vmem:[%s496 + $0x8] sm:$0xf]
          %v5171 = vld [vmem:[%s496 + $0xc] sm:$0xf]
          %v5172 = vld [vmem:[%s496 + $0x10] sm:$0xf]
          %v5173 = vld [vmem:[%s496 + $0x14] sm:$0xf]
          %v5174 = vld [vmem:[%s496 + $0x18] sm:$0xf]
          %v5175 = vld [vmem:[%s496 + $0x1c] sm:$0xf]
          %v5176 = vld [vmem:[%s496 + $0x20] sm:$0xf]
          %v5177 = vld [vmem:[%s496 + $0x24] sm:$0xf]
          %v5178 = vld [vmem:[%s496 + $0x28] sm:$0xf]
          %v5179 = vld [vmem:[%s496 + $0x2c] sm:$0xf]
          %v5180 = vld [vmem:[%s496 + $0x30] sm:$0xf]
          %v5181 = vld [vmem:[%s496 + $0x34] sm:$0xf]
          %v5182 = vld [vmem:[%s496 + $0x38] sm:$0xf]
          %v5183 = vld [vmem:[%s496 + $0x3c] sm:$0xf]
          %v5184 = vld [vmem:[%s512] sm:$0xff]
          %v5185 = vld [vmem:[%s512 + $0x8] sm:$0xff]
          %v5186 = vld [vmem:[%s512 + $0x10] sm:$0xff]
          %v5187 = vld [vmem:[%s512 + $0x18] sm:$0xff]
          %v5188 = vld [vmem:[%s512 + $0x20] sm:$0xff]
          %v5189 = vld [vmem:[%s512 + $0x28] sm:$0xff]
          %v5190 = vld [vmem:[%s512 + $0x30] sm:$0xff]
          %v5191 = vld [vmem:[%s512 + $0x38] sm:$0xff]
          %v5192 = vld [vmem:[%s512 + $0x40] sm:$0xff]
          %v5193 = vld [vmem:[%s512 + $0x48] sm:$0xff]
          %v5194 = vld [vmem:[%s512 + $0x50] sm:$0xff]
          %v5195 = vld [vmem:[%s512 + $0x58] sm:$0xff]
          %v5196 = vld [vmem:[%s512 + $0x60] sm:$0xff]
          %v5197 = vld [vmem:[%s512 + $0x68] sm:$0xff]
          %v5198 = vld [vmem:[%s512 + $0x70] sm:$0xff]
          %v5199 = vld [vmem:[%s512 + $0x78] sm:$0xff]
          %v5216 = vunpack.c.l.b16 %v5168
          %v5217 = vunpack.c.l.b16 %v5169
          %v5218 = vunpack.c.l.b16 %v5170
          %v5219 = vunpack.c.l.b16 %v5171
          %v5220 = vunpack.c.l.b16 %v5172
          %v5221 = vunpack.c.l.b16 %v5173
          %v5222 = vunpack.c.l.b16 %v5174
          %v5223 = vunpack.c.l.b16 %v5175
          %v5224 = vunpack.c.l.b16 %v5176
          %v5225 = vunpack.c.l.b16 %v5177
          %v5226 = vunpack.c.l.b16 %v5178
          %v5227 = vunpack.c.l.b16 %v5179
          %v5228 = vunpack.c.l.b16 %v5180
          %v5229 = vunpack.c.l.b16 %v5181
          %v5230 = vunpack.c.l.b16 %v5182
          %v5231 = vunpack.c.l.b16 %v5183
          %v5232 = vpack.c.b16 %v5217, %v5216
          %v5233 = vpack.c.b16 %v5219, %v5218
          %v5234 = vpack.c.b16 %v5221, %v5220
          %v5235 = vpack.c.b16 %v5223, %v5222
          %v5236 = vpack.c.b16 %v5225, %v5224
          %v5237 = vpack.c.b16 %v5227, %v5226
          %v5238 = vpack.c.b16 %v5229, %v5228
          %v5239 = vpack.c.b16 %v5231, %v5230
          %v5264 = vunpack.c.l.b16 %v5184
          %v5265 = vunpack.c.h.b16 %v5184
          %v5266 = vunpack.c.l.b16 %v5185
          %v5267 = vunpack.c.h.b16 %v5185
          %v5268 = vunpack.c.l.b16 %v5186
          %v5269 = vunpack.c.h.b16 %v5186
          %v5270 = vunpack.c.l.b16 %v5187
          %v5271 = vunpack.c.h.b16 %v5187
          %v5272 = vunpack.c.l.b16 %v5188
          %v5273 = vunpack.c.h.b16 %v5188
          %v5274 = vunpack.c.l.b16 %v5189
          %v5275 = vunpack.c.h.b16 %v5189
          %v5276 = vunpack.c.l.b16 %v5190
          %v5277 = vunpack.c.h.b16 %v5190
          %v5278 = vunpack.c.l.b16 %v5191
          %v5279 = vunpack.c.h.b16 %v5191
          %v5280 = vunpack.c.l.b16 %v5192
          %v5281 = vunpack.c.h.b16 %v5192
          %v5282 = vunpack.c.l.b16 %v5193
          %v5283 = vunpack.c.h.b16 %v5193
          %v5284 = vunpack.c.l.b16 %v5194
          %v5285 = vunpack.c.h.b16 %v5194
          %v5286 = vunpack.c.l.b16 %v5195
          %v5287 = vunpack.c.h.b16 %v5195
          %v5288 = vunpack.c.l.b16 %v5196
          %v5289 = vunpack.c.h.b16 %v5196
          %v5290 = vunpack.c.l.b16 %v5197
          %v5291 = vunpack.c.h.b16 %v5197
          %v5292 = vunpack.c.l.b16 %v5198
          %v5293 = vunpack.c.h.b16 %v5198
          %v5294 = vunpack.c.l.b16 %v5199
          %v5295 = vunpack.c.h.b16 %v5199
          %v5296 = vpack.c.b16 %v5266, %v5264
          %v5297 = vpack.c.b16 %v5267, %v5265
          %v5298 = vpack.c.b16 %v5270, %v5268
          %v5299 = vpack.c.b16 %v5271, %v5269
          %v5300 = vpack.c.b16 %v5274, %v5272
          %v5301 = vpack.c.b16 %v5275, %v5273
          %v5302 = vpack.c.b16 %v5278, %v5276
          %v5303 = vpack.c.b16 %v5279, %v5277
          %v5304 = vpack.c.b16 %v5282, %v5280
          %v5305 = vpack.c.b16 %v5283, %v5281
          %v5306 = vpack.c.b16 %v5286, %v5284
          %v5307 = vpack.c.b16 %v5287, %v5285
          %v5308 = vpack.c.b16 %v5290, %v5288
          %v5309 = vpack.c.b16 %v5291, %v5289
          %v5310 = vpack.c.b16 %v5294, %v5292
          %v5311 = vpack.c.b16 %v5295, %v5293
          %5328 = vmatprep.subr.bf16.mxu0 %v5297
          %5329 = vmatpush1.bf16.msra.mxu0 %v5296
          %5330 = vmatprep.subr.bf16.mxu0 %v5299
          %5331 = vmatpush1.bf16.msra.mxu0 %v5298
          %5332 = vmatprep.subr.bf16.mxu0 %v5301
          %5333 = vmatpush1.bf16.msra.mxu0 %v5300
          %5334 = vmatprep.subr.bf16.mxu0 %v5303
          %5335 = vmatpush1.bf16.msra.mxu0 %v5302
          %5336 = vmatprep.subr.bf16.mxu0 %v5305
          %5337 = vmatpush1.bf16.msra.mxu0 %v5304
          %5338 = vmatprep.subr.bf16.mxu0 %v5307
          %5339 = vmatpush1.bf16.msra.mxu0 %v5306
          %5340 = vmatprep.subr.bf16.mxu0 %v5309
          %5341 = vmatpush1.bf16.msra.mxu0 %v5308
          %5342 = vmatprep.subr.bf16.mxu0 %v5311
          %5343 = vmatpush1.bf16.msra.mxu0 %v5310
          %5344 = vmatprep.subr.bf16.mxu0 0
          %5345 = vmatpush1.bf16.msra.mxu0 0
          %5346 = vmatprep.subr.bf16.mxu0 0
          %5347 = vmatpush1.bf16.msra.mxu0 0
          %5348 = vmatprep.subr.bf16.mxu0 0
          %5349 = vmatpush1.bf16.msra.mxu0 0
          %5350 = vmatprep.subr.bf16.mxu0 0
          %5351 = vmatpush1.bf16.msra.mxu0 0
          %5352 = vmatprep.subr.bf16.mxu0 0
          %5353 = vmatpush1.bf16.msra.mxu0 0
          %5354 = vmatprep.subr.bf16.mxu0 0
          %5355 = vmatpush1.bf16.msra.mxu0 0
          %5356 = vmatprep.subr.bf16.mxu0 0
          %5357 = vmatpush1.bf16.msra.mxu0 0
          %5358 = vmatprep.subr.bf16.mxu0 0
          %5359 = vmatpush1.bf16.msra.mxu0 0
          %5360 = vmatprep.mubr.bf16.mxu0 0
          %5361 = vmatmul.mubr.bf16.gmra.mrb[0].mxu0 %v5232
          %v5362 = vpop.f32.mrb[0].mxu0
          %v5363 = vadd.f32 0.0, %v5362
          %v5364 = vpop.f32.mrb[0].mxu0
          %v5365 = vadd.f32 0.0, %v5364
          %v5366 = vpop.f32.mrb[0].mxu0
          %v5367 = vadd.f32 0.0, %v5366
          %v5368 = vpop.f32.mrb[0].mxu0
          %v5369 = vadd.f32 0.0, %v5368
          %5370 = vmatprep.mubr.bf16.mxu0 0
          %5371 = vmatmul.mubr.bf16.gmra.mrb[0].mxu0 %v5233
          %v5372 = vpop.f32.mrb[0].mxu0
          %v5373 = vadd.f32 0.0, %v5372
          %v5374 = vpop.f32.mrb[0].mxu0
          %v5375 = vadd.f32 0.0, %v5374
          %v5376 = vpop.f32.mrb[0].mxu0
          %v5377 = vadd.f32 0.0, %v5376
          %v5378 = vpop.f32.mrb[0].mxu0
          %v5379 = vadd.f32 0.0, %v5378
          %5380 = vmatprep.mubr.bf16.mxu0 0
          %5381 = vmatmul.mubr.bf16.gmra.mrb[0].mxu0 %v5234
          %v5382 = vpop.f32.mrb[0].mxu0
          %v5383 = vadd.f32 0.0, %v5382
          %v5384 = vpop.f32.mrb[0].mxu0
          %v5385 = vadd.f32 0.0, %v5384
          %v5386 = vpop.f32.mrb[0].mxu0
          %v5387 = vadd.f32 0.0, %v5386
          %v5388 = vpop.f32.mrb[0].mxu0
          %v5389 = vadd.f32 0.0, %v5388
          %5390 = vmatprep.mubr.bf16.mxu0 0
          %5391 = vmatmul.mubr.bf16.gmra.mrb[0].mxu0 %v5235
          %v5392 = vpop.f32.mrb[0].mxu0
          %v5393 = vadd.f32 0.0, %v5392
          %v5394 = vpop.f32.mrb[0].mxu0
          %v5395 = vadd.f32 0.0, %v5394
          %v5396 = vpop.f32.mrb[0].mxu0
          %v5397 = vadd.f32 0.0, %v5396
          %v5398 = vpop.f32.mrb[0].mxu0
          %v5399 = vadd.f32 0.0, %v5398
          %5400 = vmatprep.mubr.bf16.mxu0 0
          %5401 = vmatmul.mubr.bf16.gmra.mrb[0].mxu0 %v5236
          %v5402 = vpop.f32.mrb[0].mxu0
          %v5403 = vadd.f32 0.0, %v5402
          %v5404 = vpop.f32.mrb[0].mxu0
          %v5405 = vadd.f32 0.0, %v5404
          %v5406 = vpop.f32.mrb[0].mxu0
          %v5407 = vadd.f32 0.0, %v5406
          %v5408 = vpop.f32.mrb[0].mxu0
          %v5409 = vadd.f32 0.0, %v5408
          %5410 = vmatprep.mubr.bf16.mxu0 0
          %5411 = vmatmul.mubr.bf16.gmra.mrb[0].mxu0 %v5237
          %v5412 = vpop.f32.mrb[0].mxu0
          %v5413 = vadd.f32 0.0, %v5412
          %v5414 = vpop.f32.mrb[0].mxu0
          %v5415 = vadd.f32 0.0, %v5414
          %v5416 = vpop.f32.mrb[0].mxu0
          %v5417 = vadd.f32 0.0, %v5416
          %v5418 = vpop.f32.mrb[0].mxu0
          %v5419 = vadd.f32 0.0, %v5418
          %5420 = vmatprep.mubr.bf16.mxu0 0
          %5421 = vmatmul.mubr.bf16.gmra.mrb[0].mxu0 %v5238
          %v5422 = vpop.f32.mrb[0].mxu0
          %v5423 = vadd.f32 0.0, %v5422
          %v5424 = vpop.f32.mrb[0].mxu0
          %v5425 = vadd.f32 0.0, %v5424
          %v5426 = vpop.f32.mrb[0].mxu0
          %v5427 = vadd.f32 0.0, %v5426
          %v5428 = vpop.f32.mrb[0].mxu0
          %v5429 = vadd.f32 0.0, %v5428
          %5430 = vmatprep.mubr.bf16.mxu0 0
          %5431 = vmatmul.mubr.bf16.gmra.mrb[0].mxu0 %v5239
          %v5432 = vpop.f32.mrb[0].mxu0
          %v5433 = vadd.f32 0.0, %v5432
          %v5434 = vpop.f32.mrb[0].mxu0
          %v5435 = vadd.f32 0.0, %v5434
          %v5436 = vpop.f32.mrb[0].mxu0
          %v5437 = vadd.f32 0.0, %v5436
          %v5438 = vpop.f32.mrb[0].mxu0
          %v5439 = vadd.f32 0.0, %v5438
          %5440 = vdwg.mxu0
          %v5441 = vxor.u32 %v5363, 2147483648
          %v5442 = vxor.u32 %v5367, 2147483648
          %v5443 = vxor.u32 %v5373, 2147483648
          %v5444 = vxor.u32 %v5377, 2147483648
          %v5445 = vxor.u32 %v5383, 2147483648
          %v5446 = vxor.u32 %v5387, 2147483648
          %v5447 = vxor.u32 %v5393, 2147483648
          %v5448 = vxor.u32 %v5397, 2147483648
          %v5449 = vxor.u32 %v5403, 2147483648
          %v5450 = vxor.u32 %v5407, 2147483648
          %v5451 = vxor.u32 %v5413, 2147483648
          %v5452 = vxor.u32 %v5417, 2147483648
          %v5453 = vxor.u32 %v5423, 2147483648
          %v5454 = vxor.u32 %v5427, 2147483648
          %v5455 = vxor.u32 %v5433, 2147483648
          %v5456 = vxor.u32 %v5437, 2147483648
          %v5457 = vmul.f32 %v5441, 1.442695
          %v5458 = vpow.pop %v5457
          %v5459 = vmul.f32 %v5442, 1.442695
          %v5460 = vpow.pop %v5459
          %v5461 = vmul.f32 %v5443, 1.442695
          %v5462 = vpow.pop %v5461
          %v5463 = vmul.f32 %v5444, 1.442695
          %v5464 = vpow.pop %v5463
          %v5465 = vmul.f32 %v5445, 1.442695
          %v5466 = vpow.pop %v5465
          %v5467 = vmul.f32 %v5446, 1.442695
          %v5468 = vpow.pop %v5467
          %v5469 = vmul.f32 %v5447, 1.442695
          %v5470 = vpow.pop %v5469
          %v5471 = vmul.f32 %v5448, 1.442695
          %v5472 = vpow.pop %v5471
          %v5473 = vmul.f32 %v5449, 1.442695
          %v5474 = vpow.pop %v5473
          %v5475 = vmul.f32 %v5450, 1.442695
          %v5476 = vpow.pop %v5475
          %v5477 = vmul.f32 %v5451, 1.442695
          %v5478 = vpow.pop %v5477
          %v5479 = vmul.f32 %v5452, 1.442695
          %v5480 = vpow.pop %v5479
          %v5481 = vmul.f32 %v5453, 1.442695
          %v5482 = vpow.pop %v5481
          %v5483 = vmul.f32 %v5454, 1.442695
          %v5484 = vpow.pop %v5483
          %v5485 = vmul.f32 %v5455, 1.442695
          %v5486 = vpow.pop %v5485
          %v5487 = vmul.f32 %v5456, 1.442695
          %v5488 = vpow.pop %v5487
          %v5489 = vadd.f32 %v5458, 1.0
          %v5490 = vadd.f32 %v5460, 1.0
          %v5491 = vadd.f32 %v5462, 1.0
          %v5492 = vadd.f32 %v5464, 1.0
          %v5493 = vadd.f32 %v5466, 1.0
          %v5494 = vadd.f32 %v5468, 1.0
          %v5495 = vadd.f32 %v5470, 1.0
          %v5496 = vadd.f32 %v5472, 1.0
          %v5497 = vadd.f32 %v5474, 1.0
          %v5498 = vadd.f32 %v5476, 1.0
          %v5499 = vadd.f32 %v5478, 1.0
          %v5500 = vadd.f32 %v5480, 1.0
          %v5501 = vadd.f32 %v5482, 1.0
          %v5502 = vadd.f32 %v5484, 1.0
          %v5503 = vadd.f32 %v5486, 1.0
          %v5504 = vadd.f32 %v5488, 1.0
          %v5505 = vrcp.pop %v5489
          %v5506 = vmul.f32 1.0, %v5505
          %v5507 = vrcp.pop %v5490
          %v5508 = vmul.f32 1.0, %v5507
          %v5509 = vrcp.pop %v5491
          %v5510 = vmul.f32 1.0, %v5509
          %v5511 = vrcp.pop %v5492
          %v5512 = vmul.f32 1.0, %v5511
          %v5513 = vrcp.pop %v5493
          %v5514 = vmul.f32 1.0, %v5513
          %v5515 = vrcp.pop %v5494
          %v5516 = vmul.f32 1.0, %v5515
          %v5517 = vrcp.pop %v5495
          %v5518 = vmul.f32 1.0, %v5517
          %v5519 = vrcp.pop %v5496
          %v5520 = vmul.f32 1.0, %v5519
          %v5521 = vrcp.pop %v5497
          %v5522 = vmul.f32 1.0, %v5521
          %v5523 = vrcp.pop %v5498
          %v5524 = vmul.f32 1.0, %v5523
          %v5525 = vrcp.pop %v5499
          %v5526 = vmul.f32 1.0, %v5525
          %v5527 = vrcp.pop %v5500
          %v5528 = vmul.f32 1.0, %v5527
          %v5529 = vrcp.pop %v5501
          %v5530 = vmul.f32 1.0, %v5529
          %v5531 = vrcp.pop %v5502
          %v5532 = vmul.f32 1.0, %v5531
          %v5533 = vrcp.pop %v5503
          %v5534 = vmul.f32 1.0, %v5533
          %v5535 = vrcp.pop %v5504
          %v5536 = vmul.f32 1.0, %v5535
          %v5537 = vmul.f32 %v5363, %v5506
          %v5538 = vmul.f32 %v5367, %v5508
          %v5539 = vmul.f32 %v5373, %v5510
          %v5540 = vmul.f32 %v5377, %v5512
          %v5541 = vmul.f32 %v5383, %v5514
          %v5542 = vmul.f32 %v5387, %v5516
          %v5543 = vmul.f32 %v5393, %v5518
          %v5544 = vmul.f32 %v5397, %v5520
          %v5545 = vmul.f32 %v5403, %v5522
          %v5546 = vmul.f32 %v5407, %v5524
          %v5547 = vmul.f32 %v5413, %v5526
          %v5548 = vmul.f32 %v5417, %v5528
          %v5549 = vmul.f32 %v5423, %v5530
          %v5550 = vmul.f32 %v5427, %v5532
          %v5551 = vmul.f32 %v5433, %v5534
          %v5552 = vmul.f32 %v5437, %v5536
          %v5553 = vmul.f32 %v5537, %v5365
          %v5554 = vmul.f32 %v5538, %v5369
          %v5555 = vmul.f32 %v5539, %v5375
          %v5556 = vmul.f32 %v5540, %v5379
          %v5557 = vmul.f32 %v5541, %v5385
          %v5558 = vmul.f32 %v5542, %v5389
          %v5559 = vmul.f32 %v5543, %v5395
          %v5560 = vmul.f32 %v5544, %v5399
          %v5561 = vmul.f32 %v5545, %v5405
          %v5562 = vmul.f32 %v5546, %v5409
          %v5563 = vmul.f32 %v5547, %v5415
          %v5564 = vmul.f32 %v5548, %v5419
          %v5565 = vmul.f32 %v5549, %v5425
          %v5566 = vmul.f32 %v5550, %v5429
          %v5567 = vmul.f32 %v5551, %v5435
          %v5568 = vmul.f32 %v5552, %v5439
          %v5569 = vpack.c.bf16 %v5554, %v5553
          %v5570 = vpack.c.bf16 %v5556, %v5555
          %v5571 = vpack.c.bf16 %v5558, %v5557
          %v5572 = vpack.c.bf16 %v5560, %v5559
          %v5573 = vpack.c.bf16 %v5562, %v5561
          %v5574 = vpack.c.bf16 %v5564, %v5563
          %v5575 = vpack.c.bf16 %v5566, %v5565
          %v5576 = vpack.c.bf16 %v5568, %v5567
          %v5577 = vld [vmem:[%s418] sm:$0xff]
          %v5578 = vld [vmem:[%s418 + $0x8] sm:$0xff]
          %v5579 = vld [vmem:[%s418 + $0x10] sm:$0xff]
          %v5580 = vld [vmem:[%s418 + $0x18] sm:$0xff]
          %v5581 = vld [vmem:[%s418 + $0x20] sm:$0xff]
          %v5582 = vld [vmem:[%s418 + $0x28] sm:$0xff]
          %v5583 = vld [vmem:[%s418 + $0x30] sm:$0xff]
          %v5584 = vld [vmem:[%s418 + $0x38] sm:$0xff]
          %v5585 = vld [vmem:[%s418 + $0x40] sm:$0xff]
          %v5586 = vld [vmem:[%s418 + $0x48] sm:$0xff]
          %v5587 = vld [vmem:[%s418 + $0x50] sm:$0xff]
          %v5588 = vld [vmem:[%s418 + $0x58] sm:$0xff]
          %v5589 = vld [vmem:[%s418 + $0x60] sm:$0xff]
          %v5590 = vld [vmem:[%s418 + $0x68] sm:$0xff]
          %v5591 = vld [vmem:[%s418 + $0x70] sm:$0xff]
          %v5592 = vld [vmem:[%s418 + $0x78] sm:$0xff]
          %v5593 = vld [vmem:[%s418 + $0x80] sm:$0xff]
          %v5594 = vld [vmem:[%s418 + $0x88] sm:$0xff]
          %v5595 = vld [vmem:[%s418 + $0x90] sm:$0xff]
          %v5596 = vld [vmem:[%s418 + $0x98] sm:$0xff]
          %v5597 = vld [vmem:[%s418 + $0xa0] sm:$0xff]
          %v5598 = vld [vmem:[%s418 + $0xa8] sm:$0xff]
          %v5599 = vld [vmem:[%s418 + $0xb0] sm:$0xff]
          %v5600 = vld [vmem:[%s418 + $0xb8] sm:$0xff]
          %v5601 = vld [vmem:[%s418 + $0xc0] sm:$0xff]
          %v5602 = vld [vmem:[%s418 + $0xc8] sm:$0xff]
          %v5603 = vld [vmem:[%s418 + $0xd0] sm:$0xff]
          %v5604 = vld [vmem:[%s418 + $0xd8] sm:$0xff]
          %v5605 = vld [vmem:[%s418 + $0xe0] sm:$0xff]
          %v5606 = vld [vmem:[%s418 + $0xe8] sm:$0xff]
          %v5607 = vld [vmem:[%s418 + $0xf0] sm:$0xff]
          %v5608 = vld [vmem:[%s418 + $0xf8] sm:$0xff]
          %v5641 = vunpack.c.l.b16 %v5577
          %v5642 = vunpack.c.h.b16 %v5577
          %v5643 = vunpack.c.l.b16 %v5578
          %v5644 = vunpack.c.h.b16 %v5578
          %v5645 = vunpack.c.l.b16 %v5579
          %v5646 = vunpack.c.h.b16 %v5579
          %v5647 = vunpack.c.l.b16 %v5580
          %v5648 = vunpack.c.h.b16 %v5580
          %v5649 = vunpack.c.l.b16 %v5581
          %v5650 = vunpack.c.h.b16 %v5581
          %v5651 = vunpack.c.l.b16 %v5582
          %v5652 = vunpack.c.h.b16 %v5582
          %v5653 = vunpack.c.l.b16 %v5583
          %v5654 = vunpack.c.h.b16 %v5583
          %v5655 = vunpack.c.l.b16 %v5584
          %v5656 = vunpack.c.h.b16 %v5584
          %v5657 = vunpack.c.l.b16 %v5585
          %v5658 = vunpack.c.h.b16 %v5585
          %v5659 = vunpack.c.l.b16 %v5586
          %v5660 = vunpack.c.h.b16 %v5586
          %v5661 = vunpack.c.l.b16 %v5587
          %v5662 = vunpack.c.h.b16 %v5587
          %v5663 = vunpack.c.l.b16 %v5588
          %v5664 = vunpack.c.h.b16 %v5588
          %v5665 = vunpack.c.l.b16 %v5589
          %v5666 = vunpack.c.h.b16 %v5589
          %v5667 = vunpack.c.l.b16 %v5590
          %v5668 = vunpack.c.h.b16 %v5590
          %v5669 = vunpack.c.l.b16 %v5591
          %v5670 = vunpack.c.h.b16 %v5591
          %v5671 = vunpack.c.l.b16 %v5592
          %v5672 = vunpack.c.h.b16 %v5592
          %v5673 = vunpack.c.l.b16 %v5593
          %v5674 = vunpack.c.h.b16 %v5593
          %v5675 = vunpack.c.l.b16 %v5594
          %v5676 = vunpack.c.h.b16 %v5594
          %v5677 = vunpack.c.l.b16 %v5595
          %v5678 = vunpack.c.h.b16 %v5595
          %v5679 = vunpack.c.l.b16 %v5596
          %v5680 = vunpack.c.h.b16 %v5596
          %v5681 = vunpack.c.l.b16 %v5597
          %v5682 = vunpack.c.h.b16 %v5597
          %v5683 = vunpack.c.l.b16 %v5598
          %v5684 = vunpack.c.h.b16 %v5598
          %v5685 = vunpack.c.l.b16 %v5599
          %v5686 = vunpack.c.h.b16 %v5599
          %v5687 = vunpack.c.l.b16 %v5600
          %v5688 = vunpack.c.h.b16 %v5600
          %v5689 = vunpack.c.l.b16 %v5601
          %v5690 = vunpack.c.h.b16 %v5601
          %v5691 = vunpack.c.l.b16 %v5602
          %v5692 = vunpack.c.h.b16 %v5602
          %v5693 = vunpack.c.l.b16 %v5603
          %v5694 = vunpack.c.h.b16 %v5603
          %v5695 = vunpack.c.l.b16 %v5604
          %v5696 = vunpack.c.h.b16 %v5604
          %v5697 = vunpack.c.l.b16 %v5605
          %v5698 = vunpack.c.h.b16 %v5605
          %v5699 = vunpack.c.l.b16 %v5606
          %v5700 = vunpack.c.h.b16 %v5606
          %v5701 = vunpack.c.l.b16 %v5607
          %v5702 = vunpack.c.h.b16 %v5607
          %v5703 = vunpack.c.l.b16 %v5608
          %v5704 = vunpack.c.h.b16 %v5608
          %v5705 = vpack.c.b16 %v5645, %v5641
          %v5706 = vpack.c.b16 %v5646, %v5642
          %v5707 = vpack.c.b16 %v5647, %v5643
          %v5708 = vpack.c.b16 %v5648, %v5644
          %v5709 = vpack.c.b16 %v5653, %v5649
          %v5710 = vpack.c.b16 %v5654, %v5650
          %v5711 = vpack.c.b16 %v5655, %v5651
          %v5712 = vpack.c.b16 %v5656, %v5652
          %v5713 = vpack.c.b16 %v5661, %v5657
          %v5714 = vpack.c.b16 %v5662, %v5658
          %v5715 = vpack.c.b16 %v5663, %v5659
          %v5716 = vpack.c.b16 %v5664, %v5660
          %v5717 = vpack.c.b16 %v5669, %v5665
          %v5718 = vpack.c.b16 %v5670, %v5666
          %v5719 = vpack.c.b16 %v5671, %v5667
          %v5720 = vpack.c.b16 %v5672, %v5668
          %v5721 = vpack.c.b16 %v5677, %v5673
          %v5722 = vpack.c.b16 %v5678, %v5674
          %v5723 = vpack.c.b16 %v5679, %v5675
          %v5724 = vpack.c.b16 %v5680, %v5676
          %v5725 = vpack.c.b16 %v5685, %v5681
          %v5726 = vpack.c.b16 %v5686, %v5682
          %v5727 = vpack.c.b16 %v5687, %v5683
          %v5728 = vpack.c.b16 %v5688, %v5684
          %v5729 = vpack.c.b16 %v5693, %v5689
          %v5730 = vpack.c.b16 %v5694, %v5690
          %v5731 = vpack.c.b16 %v5695, %v5691
          %v5732 = vpack.c.b16 %v5696, %v5692
          %v5733 = vpack.c.b16 %v5701, %v5697
          %v5734 = vpack.c.b16 %v5702, %v5698
          %v5735 = vpack.c.b16 %v5703, %v5699
          %v5736 = vpack.c.b16 %v5704, %v5700
          %5769 = vmatprep.subr.bf16.mxu0 %v5706
          %5770 = vmatpush1.bf16.msra.mxu0 %v5705
          %5771 = vmatprep.subr.bf16.mxu0 %v5710
          %5772 = vmatpush1.bf16.msra.mxu0 %v5709
          %5773 = vmatprep.subr.bf16.mxu0 %v5714
          %5774 = vmatpush1.bf16.msra.mxu0 %v5713
          %5775 = vmatprep.subr.bf16.mxu0 %v5718
          %5776 = vmatpush1.bf16.msra.mxu0 %v5717
          %5777 = vmatprep.subr.bf16.mxu0 %v5722
          %5778 = vmatpush1.bf16.msra.mxu0 %v5721
          %5779 = vmatprep.subr.bf16.mxu0 %v5726
          %5780 = vmatpush1.bf16.msra.mxu0 %v5725
          %5781 = vmatprep.subr.bf16.mxu0 %v5730
          %5782 = vmatpush1.bf16.msra.mxu0 %v5729
          %5783 = vmatprep.subr.bf16.mxu0 %v5734
          %5784 = vmatpush1.bf16.msra.mxu0 %v5733
          %5785 = vmatprep.subr.bf16.mxu0 0
          %5786 = vmatpush1.bf16.msra.mxu0 0
          %5787 = vmatprep.subr.bf16.mxu0 0
          %5788 = vmatpush1.bf16.msra.mxu0 0
          %5789 = vmatprep.subr.bf16.mxu0 0
          %5790 = vmatpush1.bf16.msra.mxu0 0
          %5791 = vmatprep.subr.bf16.mxu0 0
          %5792 = vmatpush1.bf16.msra.mxu0 0
          %5793 = vmatprep.subr.bf16.mxu0 0
          %5794 = vmatpush1.bf16.msra.mxu0 0
          %5795 = vmatprep.subr.bf16.mxu0 0
          %5796 = vmatpush1.bf16.msra.mxu0 0
          %5797 = vmatprep.subr.bf16.mxu0 0
          %5798 = vmatpush1.bf16.msra.mxu0 0
          %5799 = vmatprep.subr.bf16.mxu0 0
          %5800 = vmatpush1.bf16.msra.mxu0 0
          %5801 = vmatprep.mubr.bf16.mxu0 0
          %5802 = vmatmul.mubr.bf16.gmra.mrb[0].mxu0 %v5569
          %v5803 = vpop.f32.mrb[0].mxu0
          %v5804 = vadd.f32 0.0, %v5803
          %v5805 = vpop.f32.mrb[0].mxu0
          %v5806 = vadd.f32 0.0, %v5805
          %v5807 = vpop.f32.mrb[0].mxu0
          %v5808 = vadd.f32 0.0, %v5807
          %v5809 = vpop.f32.mrb[0].mxu0
          %v5810 = vadd.f32 0.0, %v5809
          %5811 = vmatprep.mubr.bf16.mxu0 0
          %5812 = vmatmul.mubr.bf16.gmra.mrb[0].mxu0 %v5570
          %v5813 = vpop.f32.mrb[0].mxu0
          %v5814 = vadd.f32 0.0, %v5813
          %v5815 = vpop.f32.mrb[0].mxu0
          %v5816 = vadd.f32 0.0, %v5815
          %v5817 = vpop.f32.mrb[0].mxu0
          %v5818 = vadd.f32 0.0, %v5817
          %v5819 = vpop.f32.mrb[0].mxu0
          %v5820 = vadd.f32 0.0, %v5819
          %5821 = vmatprep.mubr.bf16.mxu0 0
          %5822 = vmatmul.mubr.bf16.gmra.mrb[0].mxu0 %v5571
          %v5823 = vpop.f32.mrb[0].mxu0
          %v5824 = vadd.f32 0.0, %v5823
          %v5825 = vpop.f32.mrb[0].mxu0
          %v5826 = vadd.f32 0.0, %v5825
          %v5827 = vpop.f32.mrb[0].mxu0
          %v5828 = vadd.f32 0.0, %v5827
          %v5829 = vpop.f32.mrb[0].mxu0
          %v5830 = vadd.f32 0.0, %v5829
          %5831 = vmatprep.mubr.bf16.mxu0 0
          %5832 = vmatmul.mubr.bf16.gmra.mrb[0].mxu0 %v5572
          %v5833 = vpop.f32.mrb[0].mxu0
          %v5834 = vadd.f32 0.0, %v5833
          %v5835 = vpop.f32.mrb[0].mxu0
          %v5836 = vadd.f32 0.0, %v5835
          %v5837 = vpop.f32.mrb[0].mxu0
          %v5838 = vadd.f32 0.0, %v5837
          %v5839 = vpop.f32.mrb[0].mxu0
          %v5840 = vadd.f32 0.0, %v5839
          %5841 = vmatprep.mubr.bf16.mxu0 0
          %5842 = vmatmul.mubr.bf16.gmra.mrb[0].mxu0 %v5573
          %v5843 = vpop.f32.mrb[0].mxu0
          %v5844 = vadd.f32 0.0, %v5843
          %v5845 = vpop.f32.mrb[0].mxu0
          %v5846 = vadd.f32 0.0, %v5845
          %v5847 = vpop.f32.mrb[0].mxu0
          %v5848 = vadd.f32 0.0, %v5847
          %v5849 = vpop.f32.mrb[0].mxu0
          %v5850 = vadd.f32 0.0, %v5849
          %5851 = vmatprep.mubr.bf16.mxu0 0
          %5852 = vmatmul.mubr.bf16.gmra.mrb[0].mxu0 %v5574
          %v5853 = vpop.f32.mrb[0].mxu0
          %v5854 = vadd.f32 0.0, %v5853
          %v5855 = vpop.f32.mrb[0].mxu0
          %v5856 = vadd.f32 0.0, %v5855
          %v5857 = vpop.f32.mrb[0].mxu0
          %v5858 = vadd.f32 0.0, %v5857
          %v5859 = vpop.f32.mrb[0].mxu0
          %v5860 = vadd.f32 0.0, %v5859
          %5861 = vmatprep.mubr.bf16.mxu0 0
          %5862 = vmatmul.mubr.bf16.gmra.mrb[0].mxu0 %v5575
          %v5863 = vpop.f32.mrb[0].mxu0
          %v5864 = vadd.f32 0.0, %v5863
          %v5865 = vpop.f32.mrb[0].mxu0
          %v5866 = vadd.f32 0.0, %v5865
          %v5867 = vpop.f32.mrb[0].mxu0
          %v5868 = vadd.f32 0.0, %v5867
          %v5869 = vpop.f32.mrb[0].mxu0
          %v5870 = vadd.f32 0.0, %v5869
          %5871 = vmatprep.mubr.bf16.mxu0 0
          %5872 = vmatmul.mubr.bf16.gmra.mrb[0].mxu0 %v5576
          %v5873 = vpop.f32.mrb[0].mxu0
          %v5874 = vadd.f32 0.0, %v5873
          %v5875 = vpop.f32.mrb[0].mxu0
          %v5876 = vadd.f32 0.0, %v5875
          %v5877 = vpop.f32.mrb[0].mxu0
          %v5878 = vadd.f32 0.0, %v5877
          %v5879 = vpop.f32.mrb[0].mxu0
          %v5880 = vadd.f32 0.0, %v5879
          %5881 = vdwg.mxu0
          %5882 = vmatprep.subr.bf16.mxu0 %v5708
          %5883 = vmatpush1.bf16.msra.mxu0 %v5707
          %5884 = vmatprep.subr.bf16.mxu0 %v5712
          %5885 = vmatpush1.bf16.msra.mxu0 %v5711
          %5886 = vmatprep.subr.bf16.mxu0 %v5716
          %5887 = vmatpush1.bf16.msra.mxu0 %v5715
          %5888 = vmatprep.subr.bf16.mxu0 %v5720
          %5889 = vmatpush1.bf16.msra.mxu0 %v5719
          %5890 = vmatprep.subr.bf16.mxu0 %v5724
          %5891 = vmatpush1.bf16.msra.mxu0 %v5723
          %5892 = vmatprep.subr.bf16.mxu0 %v5728
          %5893 = vmatpush1.bf16.msra.mxu0 %v5727
          %5894 = vmatprep.subr.bf16.mxu0 %v5732
          %5895 = vmatpush1.bf16.msra.mxu0 %v5731
          %5896 = vmatprep.subr.bf16.mxu0 %v5736
          %5897 = vmatpush1.bf16.msra.mxu0 %v5735
          %5898 = vmatprep.subr.bf16.mxu0 0
          %5899 = vmatpush1.bf16.msra.mxu0 0
          %5900 = vmatprep.subr.bf16.mxu0 0
          %5901 = vmatpush1.bf16.msra.mxu0 0
          %5902 = vmatprep.subr.bf16.mxu0 0
          %5903 = vmatpush1.bf16.msra.mxu0 0
          %5904 = vmatprep.subr.bf16.mxu0 0
          %5905 = vmatpush1.bf16.msra.mxu0 0
          %5906 = vmatprep.subr.bf16.mxu0 0
          %5907 = vmatpush1.bf16.msra.mxu0 0
          %5908 = vmatprep.subr.bf16.mxu0 0
          %5909 = vmatpush1.bf16.msra.mxu0 0
          %5910 = vmatprep.subr.bf16.mxu0 0
          %5911 = vmatpush1.bf16.msra.mxu0 0
          %5912 = vmatprep.subr.bf16.mxu0 0
          %5913 = vmatpush1.bf16.msra.mxu0 0
          %5914 = vmatprep.mubr.bf16.mxu0 0
          %5915 = vmatmul.mubr.bf16.gmra.mrb[0].mxu0 %v5569
          %v5916 = vpop.f32.mrb[0].mxu0
          %v5917 = vadd.f32 0.0, %v5916
          %v5918 = vpop.f32.mrb[0].mxu0
          %v5919 = vadd.f32 0.0, %v5918
          %v5920 = vpop.f32.mrb[0].mxu0
          %v5921 = vadd.f32 0.0, %v5920
          %v5922 = vpop.f32.mrb[0].mxu0
          %v5923 = vadd.f32 0.0, %v5922
          %5924 = vmatprep.mubr.bf16.mxu0 0
          %5925 = vmatmul.mubr.bf16.gmra.mrb[0].mxu0 %v5570
          %v5926 = vpop.f32.mrb[0].mxu0
          %v5927 = vadd.f32 0.0, %v5926
          %v5928 = vpop.f32.mrb[0].mxu0
          %v5929 = vadd.f32 0.0, %v5928
          %v5930 = vpop.f32.mrb[0].mxu0
          %v5931 = vadd.f32 0.0, %v5930
          %v5932 = vpop.f32.mrb[0].mxu0
          %v5933 = vadd.f32 0.0, %v5932
          %5934 = vmatprep.mubr.bf16.mxu0 0
          %5935 = vmatmul.mubr.bf16.gmra.mrb[0].mxu0 %v5571
          %v5936 = vpop.f32.mrb[0].mxu0
          %v5937 = vadd.f32 0.0, %v5936
          %v5938 = vpop.f32.mrb[0].mxu0
          %v5939 = vadd.f32 0.0, %v5938
          %v5940 = vpop.f32.mrb[0].mxu0
          %v5941 = vadd.f32 0.0, %v5940
          %v5942 = vpop.f32.mrb[0].mxu0
          %v5943 = vadd.f32 0.0, %v5942
          %5944 = vmatprep.mubr.bf16.mxu0 0
          %5945 = vmatmul.mubr.bf16.gmra.mrb[0].mxu0 %v5572
          %v5946 = vpop.f32.mrb[0].mxu0
          %v5947 = vadd.f32 0.0, %v5946
          %v5948 = vpop.f32.mrb[0].mxu0
          %v5949 = vadd.f32 0.0, %v5948
          %v5950 = vpop.f32.mrb[0].mxu0
          %v5951 = vadd.f32 0.0, %v5950
          %v5952 = vpop.f32.mrb[0].mxu0
          %v5953 = vadd.f32 0.0, %v5952
          %5954 = vmatprep.mubr.bf16.mxu0 0
          %5955 = vmatmul.mubr.bf16.gmra.mrb[0].mxu0 %v5573
          %v5956 = vpop.f32.mrb[0].mxu0
          %v5957 = vadd.f32 0.0, %v5956
          %v5958 = vpop.f32.mrb[0].mxu0
          %v5959 = vadd.f32 0.0, %v5958
          %v5960 = vpop.f32.mrb[0].mxu0
          %v5961 = vadd.f32 0.0, %v5960
          %v5962 = vpop.f32.mrb[0].mxu0
          %v5963 = vadd.f32 0.0, %v5962
          %5964 = vmatprep.mubr.bf16.mxu0 0
          %5965 = vmatmul.mubr.bf16.gmra.mrb[0].mxu0 %v5574
          %v5966 = vpop.f32.mrb[0].mxu0
          %v5967 = vadd.f32 0.0, %v5966
          %v5968 = vpop.f32.mrb[0].mxu0
          %v5969 = vadd.f32 0.0, %v5968
          %v5970 = vpop.f32.mrb[0].mxu0
          %v5971 = vadd.f32 0.0, %v5970
          %v5972 = vpop.f32.mrb[0].mxu0
          %v5973 = vadd.f32 0.0, %v5972
          %5974 = vmatprep.mubr.bf16.mxu0 0
          %5975 = vmatmul.mubr.bf16.gmra.mrb[0].mxu0 %v5575
          %v5976 = vpop.f32.mrb[0].mxu0
          %v5977 = vadd.f32 0.0, %v5976
          %v5978 = vpop.f32.mrb[0].mxu0
          %v5979 = vadd.f32 0.0, %v5978
          %v5980 = vpop.f32.mrb[0].mxu0
          %v5981 = vadd.f32 0.0, %v5980
          %v5982 = vpop.f32.mrb[0].mxu0
          %v5983 = vadd.f32 0.0, %v5982
          %5984 = vmatprep.mubr.bf16.mxu0 0
          %5985 = vmatmul.mubr.bf16.gmra.mrb[0].mxu0 %v5576
          %v5986 = vpop.f32.mrb[0].mxu0
          %v5987 = vadd.f32 0.0, %v5986
          %v5988 = vpop.f32.mrb[0].mxu0
          %v5989 = vadd.f32 0.0, %v5988
          %v5990 = vpop.f32.mrb[0].mxu0
          %v5991 = vadd.f32 0.0, %v5990
          %v5992 = vpop.f32.mrb[0].mxu0
          %v5993 = vadd.f32 0.0, %v5992
          %5994 = vdwg.mxu0
          %v5995 = vld [vmem:[#allocation2] sm:$0xff]
          %v5996 = vld [vmem:[#allocation2 + $0x8] sm:$0xff]
          %v5997 = vld [vmem:[#allocation2 + $0x10] sm:$0xff]
          %v5998 = vld [vmem:[#allocation2 + $0x18] sm:$0xff]
          %v5999 = vld [vmem:[#allocation2 + $0x20] sm:$0xff]
          %v6000 = vld [vmem:[#allocation2 + $0x28] sm:$0xff]
          %v6001 = vld [vmem:[#allocation2 + $0x30] sm:$0xff]
          %v6002 = vld [vmem:[#allocation2 + $0x38] sm:$0xff]
          %v6003 = vld [vmem:[#allocation2 + $0x40] sm:$0xff]
          %v6004 = vld [vmem:[#allocation2 + $0x48] sm:$0xff]
          %v6005 = vld [vmem:[#allocation2 + $0x50] sm:$0xff]
          %v6006 = vld [vmem:[#allocation2 + $0x58] sm:$0xff]
          %v6007 = vld [vmem:[#allocation2 + $0x60] sm:$0xff]
          %v6008 = vld [vmem:[#allocation2 + $0x68] sm:$0xff]
          %v6009 = vld [vmem:[#allocation2 + $0x70] sm:$0xff]
          %v6010 = vld [vmem:[#allocation2 + $0x78] sm:$0xff]
          %v6011 = vld [vmem:[#allocation2 + $0x80] sm:$0xff]
          %v6012 = vld [vmem:[#allocation2 + $0x88] sm:$0xff]
          %v6013 = vld [vmem:[#allocation2 + $0x90] sm:$0xff]
          %v6014 = vld [vmem:[#allocation2 + $0x98] sm:$0xff]
          %v6015 = vld [vmem:[#allocation2 + $0xa0] sm:$0xff]
          %v6016 = vld [vmem:[#allocation2 + $0xa8] sm:$0xff]
          %v6017 = vld [vmem:[#allocation2 + $0xb0] sm:$0xff]
          %v6018 = vld [vmem:[#allocation2 + $0xb8] sm:$0xff]
          %v6019 = vld [vmem:[#allocation2 + $0xc0] sm:$0xff]
          %v6020 = vld [vmem:[#allocation2 + $0xc8] sm:$0xff]
          %v6021 = vld [vmem:[#allocation2 + $0xd0] sm:$0xff]
          %v6022 = vld [vmem:[#allocation2 + $0xd8] sm:$0xff]
          %v6023 = vld [vmem:[#allocation2 + $0xe0] sm:$0xff]
          %v6024 = vld [vmem:[#allocation2 + $0xe8] sm:$0xff]
          %v6025 = vld [vmem:[#allocation2 + $0xf0] sm:$0xff]
          %v6026 = vld [vmem:[#allocation2 + $0xf8] sm:$0xff]
          %v6027 = vld [vmem:[#allocation2 + $0x100] sm:$0xff]
          %v6028 = vld [vmem:[#allocation2 + $0x108] sm:$0xff]
          %v6029 = vld [vmem:[#allocation2 + $0x110] sm:$0xff]
          %v6030 = vld [vmem:[#allocation2 + $0x118] sm:$0xff]
          %v6031 = vld [vmem:[#allocation2 + $0x120] sm:$0xff]
          %v6032 = vld [vmem:[#allocation2 + $0x128] sm:$0xff]
          %v6033 = vld [vmem:[#allocation2 + $0x130] sm:$0xff]
          %v6034 = vld [vmem:[#allocation2 + $0x138] sm:$0xff]
          %v6035 = vld [vmem:[#allocation2 + $0x140] sm:$0xff]
          %v6036 = vld [vmem:[#allocation2 + $0x148] sm:$0xff]
          %v6037 = vld [vmem:[#allocation2 + $0x150] sm:$0xff]
          %v6038 = vld [vmem:[#allocation2 + $0x158] sm:$0xff]
          %v6039 = vld [vmem:[#allocation2 + $0x160] sm:$0xff]
          %v6040 = vld [vmem:[#allocation2 + $0x168] sm:$0xff]
          %v6041 = vld [vmem:[#allocation2 + $0x170] sm:$0xff]
          %v6042 = vld [vmem:[#allocation2 + $0x178] sm:$0xff]
          %v6043 = vld [vmem:[#allocation2 + $0x180] sm:$0xff]
          %v6044 = vld [vmem:[#allocation2 + $0x188] sm:$0xff]
          %v6045 = vld [vmem:[#allocation2 + $0x190] sm:$0xff]
          %v6046 = vld [vmem:[#allocation2 + $0x198] sm:$0xff]
          %v6047 = vld [vmem:[#allocation2 + $0x1a0] sm:$0xff]
          %v6048 = vld [vmem:[#allocation2 + $0x1a8] sm:$0xff]
          %v6049 = vld [vmem:[#allocation2 + $0x1b0] sm:$0xff]
          %v6050 = vld [vmem:[#allocation2 + $0x1b8] sm:$0xff]
          %v6051 = vld [vmem:[#allocation2 + $0x1c0] sm:$0xff]
          %v6052 = vld [vmem:[#allocation2 + $0x1c8] sm:$0xff]
          %v6053 = vld [vmem:[#allocation2 + $0x1d0] sm:$0xff]
          %v6054 = vld [vmem:[#allocation2 + $0x1d8] sm:$0xff]
          %v6055 = vld [vmem:[#allocation2 + $0x1e0] sm:$0xff]
          %v6056 = vld [vmem:[#allocation2 + $0x1e8] sm:$0xff]
          %v6057 = vld [vmem:[#allocation2 + $0x1f0] sm:$0xff]
          %v6058 = vld [vmem:[#allocation2 + $0x1f8] sm:$0xff]
          %v6059 = vld [vmem:[%s527] sm:$0xff]
          %v6060 = vld [vmem:[%s527 + $0x8] sm:$0xff]
          %v6061 = vld [vmem:[%s527 + $0x10] sm:$0xff]
          %v6062 = vld [vmem:[%s527 + $0x18] sm:$0xff]
          %v6063 = vld [vmem:[%s527 + $0x20] sm:$0xff]
          %v6064 = vld [vmem:[%s527 + $0x28] sm:$0xff]
          %v6065 = vld [vmem:[%s527 + $0x30] sm:$0xff]
          %v6066 = vld [vmem:[%s527 + $0x38] sm:$0xff]
          %v6067 = vld [vmem:[%s527 + $0x40] sm:$0xff]
          %v6068 = vld [vmem:[%s527 + $0x48] sm:$0xff]
          %v6069 = vld [vmem:[%s527 + $0x50] sm:$0xff]
          %v6070 = vld [vmem:[%s527 + $0x58] sm:$0xff]
          %v6071 = vld [vmem:[%s527 + $0x60] sm:$0xff]
          %v6072 = vld [vmem:[%s527 + $0x68] sm:$0xff]
          %v6073 = vld [vmem:[%s527 + $0x70] sm:$0xff]
          %v6074 = vld [vmem:[%s527 + $0x78] sm:$0xff]
          %6076 = vset.pattern.permute.xlu0 0
          %6077 = vperm.xlu0 %6076, %v6059
          %v6078 = vpop.permute.xlu0 %6077
          %6081 = vset.pattern.permute.xlu0 0
          %6082 = vperm.xlu0 %6081, %v6060
          %v6083 = vpop.permute.xlu0 %6082
          %6086 = vset.pattern.permute.xlu0 0
          %6087 = vperm.xlu0 %6086, %v6061
          %v6088 = vpop.permute.xlu0 %6087
          %6091 = vset.pattern.permute.xlu0 0
          %6092 = vperm.xlu0 %6091, %v6062
          %v6093 = vpop.permute.xlu0 %6092
          %6096 = vset.pattern.permute.xlu0 0
          %6097 = vperm.xlu0 %6096, %v6063
          %v6098 = vpop.permute.xlu0 %6097
          %6101 = vset.pattern.permute.xlu0 0
          %6102 = vperm.xlu0 %6101, %v6064
          %v6103 = vpop.permute.xlu0 %6102
          %6106 = vset.pattern.permute.xlu0 0
          %6107 = vperm.xlu0 %6106, %v6065
          %v6108 = vpop.permute.xlu0 %6107
          %6111 = vset.pattern.permute.xlu0 0
          %6112 = vperm.xlu0 %6111, %v6066
          %v6113 = vpop.permute.xlu0 %6112
          %6116 = vset.pattern.permute.xlu0 0
          %6117 = vperm.xlu0 %6116, %v6067
          %v6118 = vpop.permute.xlu0 %6117
          %6121 = vset.pattern.permute.xlu0 0
          %6122 = vperm.xlu0 %6121, %v6068
          %v6123 = vpop.permute.xlu0 %6122
          %6126 = vset.pattern.permute.xlu0 0
          %6127 = vperm.xlu0 %6126, %v6069
          %v6128 = vpop.permute.xlu0 %6127
          %6131 = vset.pattern.permute.xlu0 0
          %6132 = vperm.xlu0 %6131, %v6070
          %v6133 = vpop.permute.xlu0 %6132
          %6136 = vset.pattern.permute.xlu0 0
          %6137 = vperm.xlu0 %6136, %v6071
          %v6138 = vpop.permute.xlu0 %6137
          %6141 = vset.pattern.permute.xlu0 0
          %6142 = vperm.xlu0 %6141, %v6072
          %v6143 = vpop.permute.xlu0 %6142
          %6146 = vset.pattern.permute.xlu0 0
          %6147 = vperm.xlu0 %6146, %v6073
          %v6148 = vpop.permute.xlu0 %6147
          %6151 = vset.pattern.permute.xlu0 0
          %6152 = vperm.xlu0 %6151, %v6074
          %v6153 = vpop.permute.xlu0 %6152
          %v6155 = vmul.f32 %v5804, %v6078
          %v6156 = vmul.f32 %v5806, %v6078
          %v6157 = vmul.f32 %v5917, %v6078
          %v6158 = vmul.f32 %v5919, %v6078
          %v6159 = vmul.f32 %v5808, %v6083
          %v6160 = vmul.f32 %v5810, %v6083
          %v6161 = vmul.f32 %v5921, %v6083
          %v6162 = vmul.f32 %v5923, %v6083
          %v6163 = vmul.f32 %v5814, %v6088
          %v6164 = vmul.f32 %v5816, %v6088
          %v6165 = vmul.f32 %v5927, %v6088
          %v6166 = vmul.f32 %v5929, %v6088
          %v6167 = vmul.f32 %v5818, %v6093
          %v6168 = vmul.f32 %v5820, %v6093
          %v6169 = vmul.f32 %v5931, %v6093
          %v6170 = vmul.f32 %v5933, %v6093
          %v6171 = vmul.f32 %v5824, %v6098
          %v6172 = vmul.f32 %v5826, %v6098
          %v6173 = vmul.f32 %v5937, %v6098
          %v6174 = vmul.f32 %v5939, %v6098
          %v6175 = vmul.f32 %v5828, %v6103
          %v6176 = vmul.f32 %v5830, %v6103
          %v6177 = vmul.f32 %v5941, %v6103
          %v6178 = vmul.f32 %v5943, %v6103
          %v6179 = vmul.f32 %v5834, %v6108
          %v6180 = vmul.f32 %v5836, %v6108
          %v6181 = vmul.f32 %v5947, %v6108
          %v6182 = vmul.f32 %v5949, %v6108
          %v6183 = vmul.f32 %v5838, %v6113
          %v6184 = vmul.f32 %v5840, %v6113
          %v6185 = vmul.f32 %v5951, %v6113
          %v6186 = vmul.f32 %v5953, %v6113
          %v6187 = vmul.f32 %v5844, %v6118
          %v6188 = vmul.f32 %v5846, %v6118
          %v6189 = vmul.f32 %v5957, %v6118
          %v6190 = vmul.f32 %v5959, %v6118
          %v6191 = vmul.f32 %v5848, %v6123
          %v6192 = vmul.f32 %v5850, %v6123
          %v6193 = vmul.f32 %v5961, %v6123
          %v6194 = vmul.f32 %v5963, %v6123
          %v6195 = vmul.f32 %v5854, %v6128
          %v6196 = vmul.f32 %v5856, %v6128
          %v6197 = vmul.f32 %v5967, %v6128
          %v6198 = vmul.f32 %v5969, %v6128
          %v6199 = vmul.f32 %v5858, %v6133
          %v6200 = vmul.f32 %v5860, %v6133
          %v6201 = vmul.f32 %v5971, %v6133
          %v6202 = vmul.f32 %v5973, %v6133
          %v6203 = vmul.f32 %v5864, %v6138
          %v6204 = vmul.f32 %v5866, %v6138
          %v6205 = vmul.f32 %v5977, %v6138
          %v6206 = vmul.f32 %v5979, %v6138
          %v6207 = vmul.f32 %v5868, %v6143
          %v6208 = vmul.f32 %v5870, %v6143
          %v6209 = vmul.f32 %v5981, %v6143
          %v6210 = vmul.f32 %v5983, %v6143
          %v6211 = vmul.f32 %v5874, %v6148
          %v6212 = vmul.f32 %v5876, %v6148
          %v6213 = vmul.f32 %v5987, %v6148
          %v6214 = vmul.f32 %v5989, %v6148
          %v6215 = vmul.f32 %v5878, %v6153
          %v6216 = vmul.f32 %v5880, %v6153
          %v6217 = vmul.f32 %v5991, %v6153
          %v6218 = vmul.f32 %v5993, %v6153
          %v6219 = vadd.f32 %v5995, %v6155
          %v6220 = vadd.f32 %v5996, %v6156
          %v6221 = vadd.f32 %v5997, %v6157
          %v6222 = vadd.f32 %v5998, %v6158
          %v6223 = vadd.f32 %v5999, %v6159
          %v6224 = vadd.f32 %v6000, %v6160
          %v6225 = vadd.f32 %v6001, %v6161
          %v6226 = vadd.f32 %v6002, %v6162
          %v6227 = vadd.f32 %v6003, %v6163
          %v6228 = vadd.f32 %v6004, %v6164
          %v6229 = vadd.f32 %v6005, %v6165
          %v6230 = vadd.f32 %v6006, %v6166
          %v6231 = vadd.f32 %v6007, %v6167
          %v6232 = vadd.f32 %v6008, %v6168
          %v6233 = vadd.f32 %v6009, %v6169
          %v6234 = vadd.f32 %v6010, %v6170
          %v6235 = vadd.f32 %v6011, %v6171
          %v6236 = vadd.f32 %v6012, %v6172
          %v6237 = vadd.f32 %v6013, %v6173
          %v6238 = vadd.f32 %v6014, %v6174
          %v6239 = vadd.f32 %v6015, %v6175
          %v6240 = vadd.f32 %v6016, %v6176
          %v6241 = vadd.f32 %v6017, %v6177
          %v6242 = vadd.f32 %v6018, %v6178
          %v6243 = vadd.f32 %v6019, %v6179
          %v6244 = vadd.f32 %v6020, %v6180
          %v6245 = vadd.f32 %v6021, %v6181
          %v6246 = vadd.f32 %v6022, %v6182
          %v6247 = vadd.f32 %v6023, %v6183
          %v6248 = vadd.f32 %v6024, %v6184
          %v6249 = vadd.f32 %v6025, %v6185
          %v6250 = vadd.f32 %v6026, %v6186
          %v6251 = vadd.f32 %v6027, %v6187
          %v6252 = vadd.f32 %v6028, %v6188
          %v6253 = vadd.f32 %v6029, %v6189
          %v6254 = vadd.f32 %v6030, %v6190
          %v6255 = vadd.f32 %v6031, %v6191
          %v6256 = vadd.f32 %v6032, %v6192
          %v6257 = vadd.f32 %v6033, %v6193
          %v6258 = vadd.f32 %v6034, %v6194
          %v6259 = vadd.f32 %v6035, %v6195
          %v6260 = vadd.f32 %v6036, %v6196
          %v6261 = vadd.f32 %v6037, %v6197
          %v6262 = vadd.f32 %v6038, %v6198
          %v6263 = vadd.f32 %v6039, %v6199
          %v6264 = vadd.f32 %v6040, %v6200
          %v6265 = vadd.f32 %v6041, %v6201
          %v6266 = vadd.f32 %v6042, %v6202
          %v6267 = vadd.f32 %v6043, %v6203
          %v6268 = vadd.f32 %v6044, %v6204
          %v6269 = vadd.f32 %v6045, %v6205
          %v6270 = vadd.f32 %v6046, %v6206
          %v6271 = vadd.f32 %v6047, %v6207
          %v6272 = vadd.f32 %v6048, %v6208
          %v6273 = vadd.f32 %v6049, %v6209
          %v6274 = vadd.f32 %v6050, %v6210
          %v6275 = vadd.f32 %v6051, %v6211
          %v6276 = vadd.f32 %v6052, %v6212
          %v6277 = vadd.f32 %v6053, %v6213
          %v6278 = vadd.f32 %v6054, %v6214
          %v6279 = vadd.f32 %v6055, %v6215
          %v6280 = vadd.f32 %v6056, %v6216
          %v6281 = vadd.f32 %v6057, %v6217
          %v6282 = vadd.f32 %v6058, %v6218
          %6283 = vst [vmem:[#allocation2] sm:$0xff] %v6219
          %6284 = vst [vmem:[#allocation2 + $0x8] sm:$0xff] %v6220
          %6285 = vst [vmem:[#allocation2 + $0x10] sm:$0xff] %v6221
          %6286 = vst [vmem:[#allocation2 + $0x18] sm:$0xff] %v6222
          %6287 = vst [vmem:[#allocation2 + $0x20] sm:$0xff] %v6223
          %6288 = vst [vmem:[#allocation2 + $0x28] sm:$0xff] %v6224
          %6289 = vst [vmem:[#allocation2 + $0x30] sm:$0xff] %v6225
          %6290 = vst [vmem:[#allocation2 + $0x38] sm:$0xff] %v6226
          %6291 = vst [vmem:[#allocation2 + $0x40] sm:$0xff] %v6227
          %6292 = vst [vmem:[#allocation2 + $0x48] sm:$0xff] %v6228
          %6293 = vst [vmem:[#allocation2 + $0x50] sm:$0xff] %v6229
          %6294 = vst [vmem:[#allocation2 + $0x58] sm:$0xff] %v6230
          %6295 = vst [vmem:[#allocation2 + $0x60] sm:$0xff] %v6231
          %6296 = vst [vmem:[#allocation2 + $0x68] sm:$0xff] %v6232
          %6297 = vst [vmem:[#allocation2 + $0x70] sm:$0xff] %v6233
          %6298 = vst [vmem:[#allocation2 + $0x78] sm:$0xff] %v6234
          %6299 = vst [vmem:[#allocation2 + $0x80] sm:$0xff] %v6235
          %6300 = vst [vmem:[#allocation2 + $0x88] sm:$0xff] %v6236
          %6301 = vst [vmem:[#allocation2 + $0x90] sm:$0xff] %v6237
          %6302 = vst [vmem:[#allocation2 + $0x98] sm:$0xff] %v6238
          %6303 = vst [vmem:[#allocation2 + $0xa0] sm:$0xff] %v6239
          %6304 = vst [vmem:[#allocation2 + $0xa8] sm:$0xff] %v6240
          %6305 = vst [vmem:[#allocation2 + $0xb0] sm:$0xff] %v6241
          %6306 = vst [vmem:[#allocation2 + $0xb8] sm:$0xff] %v6242
          %6307 = vst [vmem:[#allocation2 + $0xc0] sm:$0xff] %v6243
          %6308 = vst [vmem:[#allocation2 + $0xc8] sm:$0xff] %v6244
          %6309 = vst [vmem:[#allocation2 + $0xd0] sm:$0xff] %v6245
          %6310 = vst [vmem:[#allocation2 + $0xd8] sm:$0xff] %v6246
          %6311 = vst [vmem:[#allocation2 + $0xe0] sm:$0xff] %v6247
          %6312 = vst [vmem:[#allocation2 + $0xe8] sm:$0xff] %v6248
          %6313 = vst [vmem:[#allocation2 + $0xf0] sm:$0xff] %v6249
          %6314 = vst [vmem:[#allocation2 + $0xf8] sm:$0xff] %v6250
          %6315 = vst [vmem:[#allocation2 + $0x100] sm:$0xff] %v6251
          %6316 = vst [vmem:[#allocation2 + $0x108] sm:$0xff] %v6252
          %6317 = vst [vmem:[#allocation2 + $0x110] sm:$0xff] %v6253
          %6318 = vst [vmem:[#allocation2 + $0x118] sm:$0xff] %v6254
          %6319 = vst [vmem:[#allocation2 + $0x120] sm:$0xff] %v6255
          %6320 = vst [vmem:[#allocation2 + $0x128] sm:$0xff] %v6256
          %6321 = vst [vmem:[#allocation2 + $0x130] sm:$0xff] %v6257
          %6322 = vst [vmem:[#allocation2 + $0x138] sm:$0xff] %v6258
          %6323 = vst [vmem:[#allocation2 + $0x140] sm:$0xff] %v6259
          %6324 = vst [vmem:[#allocation2 + $0x148] sm:$0xff] %v6260
          %6325 = vst [vmem:[#allocation2 + $0x150] sm:$0xff] %v6261
          %6326 = vst [vmem:[#allocation2 + $0x158] sm:$0xff] %v6262
          %6327 = vst [vmem:[#allocation2 + $0x160] sm:$0xff] %v6263
          %6328 = vst [vmem:[#allocation2 + $0x168] sm:$0xff] %v6264
          %6329 = vst [vmem:[#allocation2 + $0x170] sm:$0xff] %v6265
          %6330 = vst [vmem:[#allocation2 + $0x178] sm:$0xff] %v6266
          %6331 = vst [vmem:[#allocation2 + $0x180] sm:$0xff] %v6267
          %6332 = vst [vmem:[#allocation2 + $0x188] sm:$0xff] %v6268
          %6333 = vst [vmem:[#allocation2 + $0x190] sm:$0xff] %v6269
          %6334 = vst [vmem:[#allocation2 + $0x198] sm:$0xff] %v6270
          %6335 = vst [vmem:[#allocation2 + $0x1a0] sm:$0xff] %v6271
          %6336 = vst [vmem:[#allocation2 + $0x1a8] sm:$0xff] %v6272
          %6337 = vst [vmem:[#allocation2 + $0x1b0] sm:$0xff] %v6273
          %6338 = vst [vmem:[#allocation2 + $0x1b8] sm:$0xff] %v6274
          %6339 = vst [vmem:[#allocation2 + $0x1c0] sm:$0xff] %v6275
          %6340 = vst [vmem:[#allocation2 + $0x1c8] sm:$0xff] %v6276
          %6341 = vst [vmem:[#allocation2 + $0x1d0] sm:$0xff] %v6277
          %6342 = vst [vmem:[#allocation2 + $0x1d8] sm:$0xff] %v6278
          %6343 = vst [vmem:[#allocation2 + $0x1e0] sm:$0xff] %v6279
          %6344 = vst [vmem:[#allocation2 + $0x1e8] sm:$0xff] %v6280
          %6345 = vst [vmem:[#allocation2 + $0x1f0] sm:$0xff] %v6281
          %6346 = vst [vmem:[#allocation2 + $0x1f8] sm:$0xff] %v6282
        $region72: #{sp_qwen2_moe_sparse_moe_block.1} parent=51 // pred_fallthru
          _
        %p6347 = scmp.eq.s32.totalorder %s43, 7
        // Predicated region
        $region73: #{sp_qwen2_moe_sparse_moe_block.1} parent=51 // pred_check
          %p6348 = pneg %p6347
        $region74: #{sp_qwen2_moe_sparse_moe_block.1} parent=51 // pred_check_branch
          %6350 = sbr.rel (%p6348) target = $region76
        $region75: #{sp_qwen2_moe_sparse_moe_block.1} parent=51 // pred_region
          %v6351 = vld [vmem:[#allocation2] sm:$0xff]
          %v6352 = vld [vmem:[#allocation2 + $0x8] sm:$0xff]
          %v6353 = vld [vmem:[#allocation2 + $0x10] sm:$0xff]
          %v6354 = vld [vmem:[#allocation2 + $0x18] sm:$0xff]
          %v6355 = vld [vmem:[#allocation2 + $0x20] sm:$0xff]
          %v6356 = vld [vmem:[#allocation2 + $0x28] sm:$0xff]
          %v6357 = vld [vmem:[#allocation2 + $0x30] sm:$0xff]
          %v6358 = vld [vmem:[#allocation2 + $0x38] sm:$0xff]
          %v6359 = vld [vmem:[#allocation2 + $0x40] sm:$0xff]
          %v6360 = vld [vmem:[#allocation2 + $0x48] sm:$0xff]
          %v6361 = vld [vmem:[#allocation2 + $0x50] sm:$0xff]
          %v6362 = vld [vmem:[#allocation2 + $0x58] sm:$0xff]
          %v6363 = vld [vmem:[#allocation2 + $0x60] sm:$0xff]
          %v6364 = vld [vmem:[#allocation2 + $0x68] sm:$0xff]
          %v6365 = vld [vmem:[#allocation2 + $0x70] sm:$0xff]
          %v6366 = vld [vmem:[#allocation2 + $0x78] sm:$0xff]
          %v6367 = vld [vmem:[#allocation2 + $0x80] sm:$0xff]
          %v6368 = vld [vmem:[#allocation2 + $0x88] sm:$0xff]
          %v6369 = vld [vmem:[#allocation2 + $0x90] sm:$0xff]
          %v6370 = vld [vmem:[#allocation2 + $0x98] sm:$0xff]
          %v6371 = vld [vmem:[#allocation2 + $0xa0] sm:$0xff]
          %v6372 = vld [vmem:[#allocation2 + $0xa8] sm:$0xff]
          %v6373 = vld [vmem:[#allocation2 + $0xb0] sm:$0xff]
          %v6374 = vld [vmem:[#allocation2 + $0xb8] sm:$0xff]
          %v6375 = vld [vmem:[#allocation2 + $0xc0] sm:$0xff]
          %v6376 = vld [vmem:[#allocation2 + $0xc8] sm:$0xff]
          %v6377 = vld [vmem:[#allocation2 + $0xd0] sm:$0xff]
          %v6378 = vld [vmem:[#allocation2 + $0xd8] sm:$0xff]
          %v6379 = vld [vmem:[#allocation2 + $0xe0] sm:$0xff]
          %v6380 = vld [vmem:[#allocation2 + $0xe8] sm:$0xff]
          %v6381 = vld [vmem:[#allocation2 + $0xf0] sm:$0xff]
          %v6382 = vld [vmem:[#allocation2 + $0xf8] sm:$0xff]
          %v6383 = vld [vmem:[#allocation2 + $0x100] sm:$0xff]
          %v6384 = vld [vmem:[#allocation2 + $0x108] sm:$0xff]
          %v6385 = vld [vmem:[#allocation2 + $0x110] sm:$0xff]
          %v6386 = vld [vmem:[#allocation2 + $0x118] sm:$0xff]
          %v6387 = vld [vmem:[#allocation2 + $0x120] sm:$0xff]
          %v6388 = vld [vmem:[#allocation2 + $0x128] sm:$0xff]
          %v6389 = vld [vmem:[#allocation2 + $0x130] sm:$0xff]
          %v6390 = vld [vmem:[#allocation2 + $0x138] sm:$0xff]
          %v6391 = vld [vmem:[#allocation2 + $0x140] sm:$0xff]
          %v6392 = vld [vmem:[#allocation2 + $0x148] sm:$0xff]
          %v6393 = vld [vmem:[#allocation2 + $0x150] sm:$0xff]
          %v6394 = vld [vmem:[#allocation2 + $0x158] sm:$0xff]
          %v6395 = vld [vmem:[#allocation2 + $0x160] sm:$0xff]
          %v6396 = vld [vmem:[#allocation2 + $0x168] sm:$0xff]
          %v6397 = vld [vmem:[#allocation2 + $0x170] sm:$0xff]
          %v6398 = vld [vmem:[#allocation2 + $0x178] sm:$0xff]
          %v6399 = vld [vmem:[#allocation2 + $0x180] sm:$0xff]
          %v6400 = vld [vmem:[#allocation2 + $0x188] sm:$0xff]
          %v6401 = vld [vmem:[#allocation2 + $0x190] sm:$0xff]
          %v6402 = vld [vmem:[#allocation2 + $0x198] sm:$0xff]
          %v6403 = vld [vmem:[#allocation2 + $0x1a0] sm:$0xff]
          %v6404 = vld [vmem:[#allocation2 + $0x1a8] sm:$0xff]
          %v6405 = vld [vmem:[#allocation2 + $0x1b0] sm:$0xff]
          %v6406 = vld [vmem:[#allocation2 + $0x1b8] sm:$0xff]
          %v6407 = vld [vmem:[#allocation2 + $0x1c0] sm:$0xff]
          %v6408 = vld [vmem:[#allocation2 + $0x1c8] sm:$0xff]
          %v6409 = vld [vmem:[#allocation2 + $0x1d0] sm:$0xff]
          %v6410 = vld [vmem:[#allocation2 + $0x1d8] sm:$0xff]
          %v6411 = vld [vmem:[#allocation2 + $0x1e0] sm:$0xff]
          %v6412 = vld [vmem:[#allocation2 + $0x1e8] sm:$0xff]
          %v6413 = vld [vmem:[#allocation2 + $0x1f0] sm:$0xff]
          %v6414 = vld [vmem:[#allocation2 + $0x1f8] sm:$0xff]
          %6415 = vst [vmem:[%s491] sm:$0xff] %v6351
          %6416 = vst [vmem:[%s491 + $0x8] sm:$0xff] %v6352
          %6417 = vst [vmem:[%s491 + $0x10] sm:$0xff] %v6353
          %6418 = vst [vmem:[%s491 + $0x18] sm:$0xff] %v6354
          %6419 = vst [vmem:[%s491 + $0x20] sm:$0xff] %v6355
          %6420 = vst [vmem:[%s491 + $0x28] sm:$0xff] %v6356
          %6421 = vst [vmem:[%s491 + $0x30] sm:$0xff] %v6357
          %6422 = vst [vmem:[%s491 + $0x38] sm:$0xff] %v6358
          %6423 = vst [vmem:[%s491 + $0x40] sm:$0xff] %v6359
          %6424 = vst [vmem:[%s491 + $0x48] sm:$0xff] %v6360
          %6425 = vst [vmem:[%s491 + $0x50] sm:$0xff] %v6361
          %6426 = vst [vmem:[%s491 + $0x58] sm:$0xff] %v6362
          %6427 = vst [vmem:[%s491 + $0x60] sm:$0xff] %v6363
          %6428 = vst [vmem:[%s491 + $0x68] sm:$0xff] %v6364
          %6429 = vst [vmem:[%s491 + $0x70] sm:$0xff] %v6365
          %6430 = vst [vmem:[%s491 + $0x78] sm:$0xff] %v6366
          %6431 = vst [vmem:[%s491 + $0x80] sm:$0xff] %v6367
          %6432 = vst [vmem:[%s491 + $0x88] sm:$0xff] %v6368
          %6433 = vst [vmem:[%s491 + $0x90] sm:$0xff] %v6369
          %6434 = vst [vmem:[%s491 + $0x98] sm:$0xff] %v6370
          %6435 = vst [vmem:[%s491 + $0xa0] sm:$0xff] %v6371
          %6436 = vst [vmem:[%s491 + $0xa8] sm:$0xff] %v6372
          %6437 = vst [vmem:[%s491 + $0xb0] sm:$0xff] %v6373
          %6438 = vst [vmem:[%s491 + $0xb8] sm:$0xff] %v6374
          %6439 = vst [vmem:[%s491 + $0xc0] sm:$0xff] %v6375
          %6440 = vst [vmem:[%s491 + $0xc8] sm:$0xff] %v6376
          %6441 = vst [vmem:[%s491 + $0xd0] sm:$0xff] %v6377
          %6442 = vst [vmem:[%s491 + $0xd8] sm:$0xff] %v6378
          %6443 = vst [vmem:[%s491 + $0xe0] sm:$0xff] %v6379
          %6444 = vst [vmem:[%s491 + $0xe8] sm:$0xff] %v6380
          %6445 = vst [vmem:[%s491 + $0xf0] sm:$0xff] %v6381
          %6446 = vst [vmem:[%s491 + $0xf8] sm:$0xff] %v6382
          %6447 = vst [vmem:[%s491 + $0x100] sm:$0xff] %v6383
          %6448 = vst [vmem:[%s491 + $0x108] sm:$0xff] %v6384
          %6449 = vst [vmem:[%s491 + $0x110] sm:$0xff] %v6385
          %6450 = vst [vmem:[%s491 + $0x118] sm:$0xff] %v6386
          %6451 = vst [vmem:[%s491 + $0x120] sm:$0xff] %v6387
          %6452 = vst [vmem:[%s491 + $0x128] sm:$0xff] %v6388
          %6453 = vst [vmem:[%s491 + $0x130] sm:$0xff] %v6389
          %6454 = vst [vmem:[%s491 + $0x138] sm:$0xff] %v6390
          %6455 = vst [vmem:[%s491 + $0x140] sm:$0xff] %v6391
          %6456 = vst [vmem:[%s491 + $0x148] sm:$0xff] %v6392
          %6457 = vst [vmem:[%s491 + $0x150] sm:$0xff] %v6393
          %6458 = vst [vmem:[%s491 + $0x158] sm:$0xff] %v6394
          %6459 = vst [vmem:[%s491 + $0x160] sm:$0xff] %v6395
          %6460 = vst [vmem:[%s491 + $0x168] sm:$0xff] %v6396
          %6461 = vst [vmem:[%s491 + $0x170] sm:$0xff] %v6397
          %6462 = vst [vmem:[%s491 + $0x178] sm:$0xff] %v6398
          %6463 = vst [vmem:[%s491 + $0x180] sm:$0xff] %v6399
          %6464 = vst [vmem:[%s491 + $0x188] sm:$0xff] %v6400
          %6465 = vst [vmem:[%s491 + $0x190] sm:$0xff] %v6401
          %6466 = vst [vmem:[%s491 + $0x198] sm:$0xff] %v6402
          %6467 = vst [vmem:[%s491 + $0x1a0] sm:$0xff] %v6403
          %6468 = vst [vmem:[%s491 + $0x1a8] sm:$0xff] %v6404
          %6469 = vst [vmem:[%s491 + $0x1b0] sm:$0xff] %v6405
          %6470 = vst [vmem:[%s491 + $0x1b8] sm:$0xff] %v6406
          %6471 = vst [vmem:[%s491 + $0x1c0] sm:$0xff] %v6407
          %6472 = vst [vmem:[%s491 + $0x1c8] sm:$0xff] %v6408
          %6473 = vst [vmem:[%s491 + $0x1d0] sm:$0xff] %v6409
          %6474 = vst [vmem:[%s491 + $0x1d8] sm:$0xff] %v6410
          %6475 = vst [vmem:[%s491 + $0x1e0] sm:$0xff] %v6411
          %6476 = vst [vmem:[%s491 + $0x1e8] sm:$0xff] %v6412
          %6477 = vst [vmem:[%s491 + $0x1f0] sm:$0xff] %v6413
          %6478 = vst [vmem:[%s491 + $0x1f8] sm:$0xff] %v6414
        $region76: #{sp_qwen2_moe_sparse_moe_block.1} parent=51 // pred_fallthru
          _
        %s6479 = sand.u32 %s270, 1
        %s6480 = scalar_lea.sflag [#allocation8], %s6479
        %s6481 = sand.u32 %s270, 1
        %s6482 = smul.addr %s6481, 512
        %s6483 = scalar_lea.vmem [#allocation12], %s6482
        // Predicated region
        $region77: #{sp_qwen2_moe_sparse_moe_block.1} parent=51 // pred_check
          %p6484 = pneg %p280
        $region78: #{sp_qwen2_moe_sparse_moe_block.1} parent=51 // pred_check_branch
          %6486 = sbr.rel (%p6484) target = $region80
        $region79: #{sp_qwen2_moe_sparse_moe_block.1} parent=51 // pred_region
          %s6487 = smul.u32 16, %s42
          %s6489 = ssub.s32 8192, 8192
          %6490 = vsyncadd %s6480, %s6489
          %s6491 = smul.addr %s6487, 4
          %s6492 = smul.addr %s6491, 128
          %s6493 = scalar_lea.hbm %s10, %s6492
          %s6494 = sshll.u32 %s6483, 4
          %s6495 = int_to_ptr.vmem [resolvable:$true] %s6494
          %6500 = dma.vmem_to_hbm [thread:$0]  %s6495, 8192, %s6493, %s6480, 512, 512, 32
        $region80: #{sp_qwen2_moe_sparse_moe_block.1} parent=51 // pred_fallthru
          _
      $region52: #{sp_qwen2_moe_sparse_moe_block.1} parent=5 // pred_fallthru
        _
      %p6501 = scmp.le.s32.totalorder 2, %s33
      // Predicated region
      $region81: #{sp_qwen2_moe_sparse_moe_block.1} parent=5 // pred_check
        %p6502 = pneg %p6501
      $region82: #{sp_qwen2_moe_sparse_moe_block.1} parent=5 // pred_check_branch
        %6504 = sbr.rel (%p6502) target = $region84
      $region83: #{sp_qwen2_moe_sparse_moe_block.1} parent=5 // pred_region
        %s6505 = ssub.s32 %s33, 2
        // Predicated region
        $region85: #{sp_qwen2_moe_sparse_moe_block.1} parent=83 // pred_check
          %p6506 = pneg %p286
        $region86: #{sp_qwen2_moe_sparse_moe_block.1} parent=83 // pred_check_branch
          %6508 = sbr.rel (%p6506) target = $region88
        $region87: #{sp_qwen2_moe_sparse_moe_block.1} parent=83 // pred_region
          %s6509 = sand.u32 %s271, 1
          %s6510 = scalar_lea.sflag [#allocation8], %s6509
          %s6511 = sand.u32 %s271, 1
          %s6512 = smul.addr %s6511, 512
          %s6513 = scalar_lea.vmem [#allocation12], %s6512
          %6514 = dma.done %s6510, 8192
        $region88: #{sp_qwen2_moe_sparse_moe_block.1} parent=83 // pred_fallthru
          _
      $region84: #{sp_qwen2_moe_sparse_moe_block.1} parent=5 // pred_fallthru
        _
    $region6: #{sp_qwen2_moe_sparse_moe_block.1} parent=1 // loop_footer
      %s37 = sadd.s32 1, %s33
    $region7: #{sp_qwen2_moe_sparse_moe_block.1} parent=1 // loop_footer_branch
      %32 = sbr.rel target = $region3
    $region8: #{sp_qwen2_moe_sparse_moe_block.1} parent=1 // loop_exit
      _
    %6515 = vsyncpa [#allocation7], 1
    %s6516 = scalar_lea.sflag [#allocation7], 1
    %6517 = vsyncpa %s6516, 1
    %6518 = vsyncpa [#allocation10], 1
    %6519 = vsyncpa [#allocation8], 1
    %s6520 = scalar_lea.sflag [#allocation8], 1
    %6521 = vsyncpa %s6520, 1

</llo_original>
